<compile_context>
chip_gen: v7x
topology: tpu7x:2x2x1
jax: 0.10.0
libtpu: 0.0.40
codegen_flags: <defaults>
</compile_context>

<pallas_src>
import functools

import jax
import jax.numpy as jnp
from jax.experimental import pallas as pl
from jax.experimental.pallas import tpu as pltpu


# ----------------------------------------------------------------------------
# Phase 1: gate-major input projection  gi[g] = x @ W_ih[g] + bias[g]
# ----------------------------------------------------------------------------
def _proj_kernel(x_ref, w_ref, b_ref, gi_ref):
    x = x_ref[...]
    for g in range(3):                                   # gate order [r, z, n]
        acc = jnp.dot(x, w_ref[g], preferred_element_type=jnp.float32)
        acc = acc + b_ref[g].astype(jnp.float32)
        gi_ref[g] = acc.astype(gi_ref.dtype)


def _input_projection(x_rows, w_ih, b_proj, *, out_dtype, row_tile=512):
    """x_rows: (rows, I).  w_ih: (3, I, H).  b_proj: (3, 1, H).  -> (3, rows, H)."""
    rows, I = x_rows.shape
    H = w_ih.shape[-1]
    rt = min(row_tile, rows)
    pad = (-rows) % rt
    if pad:
        x_rows = jnp.pad(x_rows, ((0, pad), (0, 0)))
    n_rows = rows + pad

    gi = pl.pallas_call(
        _proj_kernel,
        out_shape=jax.ShapeDtypeStruct((3, n_rows, H), out_dtype),
        grid_spec=pltpu.PrefetchScalarGridSpec(
            num_scalar_prefetch=0,
            grid=(n_rows // rt,),
            in_specs=[
                pl.BlockSpec((rt, I), lambda i: (i, 0)),
                # Loop-invariant weights/bias: full-array resident blocks.
                # TODO(synk): pl.Buffered(1) / K-tiling for production I*H.
                pl.BlockSpec(w_ih.shape, lambda i: (0, 0, 0)),
                pl.BlockSpec(b_proj.shape, lambda i: (0, 0, 0)),
            ],
            out_specs=pl.BlockSpec((3, rt, H), lambda i: (0, i, 0)),
        ),
        compiler_params=pltpu.CompilerParams(
            dimension_semantics=("parallel",),
            vmem_limit_bytes=32 * 1024 * 1024,
        ),
    )(x_rows, w_ih, b_proj)
    return gi[:, :rows] if pad else gi


# ----------------------------------------------------------------------------
# Phase 2+3: sequential GRU recurrence fused with the FC head.
# ----------------------------------------------------------------------------
def _gru_head_kernel(gi_ref, h0_ref, w_hh_ref, b_hn_ref,
                     w1_ref, b1_ref, w2_ref, b2_ref,
                     p_ref, h_out_ref, h_scr, *, t_chunk, t_real):
    c = pl.program_id(1)                       # time-chunk index (sequential)

    @pl.when(c == 0)
    def _():
        h_scr[...] = h0_ref[...].astype(jnp.float32)

    Bb, H = h_scr.shape
    F = w1_ref.shape[1]

    # Loop-invariant loads and broadcasts hoisted off the per-step critical path.
    w_hr, w_hz, w_hn = w_hh_ref[0], w_hh_ref[1], w_hh_ref[2]
    b_hn = jnp.broadcast_to(b_hn_ref[...].astype(jnp.float32), (Bb, H))
    w1 = w1_ref[...]
    w2 = w2_ref[...]
    b1 = jnp.broadcast_to(b1_ref[...].astype(jnp.float32), (Bb, F))
    b2 = b2_ref[...].astype(jnp.float32)
    # Per-chunk, per-gate gi slabs (lane dim = H, gate-major -> lane-aligned).
    gi_r_c = gi_ref[0]                         # (Bb, t_chunk, H)
    gi_z_c = gi_ref[1]
    gi_n_c = gi_ref[2]

    tc_last = (t_real - 1) % t_chunk
    c_last = (t_real - 1) // t_chunk

    # Hidden state carried as a VALUE across the unrolled chunk: no per-step
    # VMEM store/load on the sequential critical path.
    h = h_scr[...]
    for tc in range(t_chunk):
        hc = h.astype(w_hr.dtype)              # bf16 multiplicand, f32 state
        gh_r = jnp.dot(hc, w_hr, preferred_element_type=jnp.float32)
        gh_z = jnp.dot(hc, w_hz, preferred_element_type=jnp.float32)
        gh_n = jnp.dot(hc, w_hn, preferred_element_type=jnp.float32) + b_hn

        gi_r = gi_r_c[:, tc, :].astype(jnp.float32)   # b_ih_r + b_hh_r folded in
        gi_z = gi_z_c[:, tc, :].astype(jnp.float32)   # b_ih_z + b_hh_z folded in
        gi_n = gi_n_c[:, tc, :].astype(jnp.float32)   # b_ih_n only

        r = jax.nn.sigmoid(gi_r + gh_r)
        z = jax.nn.sigmoid(gi_z + gh_z)
        n = jnp.tanh(gi_n + r * gh_n)                 # b_hh_n stays inside r*()
        h = (1.0 - z) * n + z * h

        # Fused FC head on this step's hidden state (hs never touches HBM).
        f1 = jnp.maximum(
            jnp.dot(h.astype(w1.dtype), w1, preferred_element_type=jnp.float32) + b1,
            0.0)
        p_t = jnp.dot(f1.astype(w2.dtype), w2, preferred_element_type=jnp.float32) + b2
        # Time-major p block -> safe leading-dim per-step store.
        # TODO(synk): pad n_outputs to 128 for a lane-dense store at big sizes.
        p_ref[tc] = p_t.astype(p_ref.dtype)

        # Emit h_n at the exact last *real* timestep (T may be padded).
        if tc == tc_last:
            @pl.when(c == c_last)
            def _():
                h_out_ref[...] = h.astype(h_out_ref.dtype)

    h_scr[...] = h                             # carry across time chunks


def _gru_fc(gi, h0, w_hh, b_hn, w1, b1, w2, b2, *, t_chunk, t_real, b_tile=None):
    _, B, T_pad, H = gi.shape
    O = w2.shape[1]
    bt = B if b_tile is None else b_tile
    assert B % bt == 0 and T_pad % t_chunk == 0

    p_tm, h_n = pl.pallas_call(
        functools.partial(_gru_head_kernel, t_chunk=t_chunk, t_real=t_real),
        out_shape=(
            jax.ShapeDtypeStruct((T_pad, B, O), jnp.float32),
            jax.ShapeDtypeStruct((B, H), jnp.float32),
        ),
        grid_spec=pltpu.PrefetchScalarGridSpec(
            num_scalar_prefetch=0,
            grid=(B // bt, T_pad // t_chunk),
            in_specs=[
                pl.BlockSpec((3, bt, t_chunk, H), lambda b, c: (0, b, c, 0)),
                pl.BlockSpec((bt, H), lambda b, c: (b, 0)),
                # Loop-invariant weights: full-array resident blocks.
                # TODO(synk): pl.Buffered(1) + bf16 so they fit v7x's 64 MiB VMEM
                # at production H/F.
                pl.BlockSpec(w_hh.shape, lambda b, c: (0, 0, 0)),
                pl.BlockSpec(b_hn.shape, lambda b, c: (0, 0)),
                pl.BlockSpec(w1.shape, lambda b, c: (0, 0)),
                pl.BlockSpec(b1.shape, lambda b, c: (0, 0)),
                pl.BlockSpec(w2.shape, lambda b, c: (0, 0)),
                pl.BlockSpec(b2.shape, lambda b, c: (0, 0)),
            ],
            out_specs=[
                pl.BlockSpec((t_chunk, bt, O), lambda b, c: (c, b, 0)),
                pl.BlockSpec((bt, H), lambda b, c: (b, 0)),
            ],
            scratch_shapes=[pltpu.VMEM((bt, H), jnp.float32)],
        ),
        compiler_params=pltpu.CompilerParams(
            # Batch blocks are independent (v7x: split across the two TCs);
            # time is the sequential recurrence axis.
            dimension_semantics=("parallel", "arbitrary"),
            vmem_limit_bytes=32 * 1024 * 1024,
        ),
    )(gi, h0, w_hh, b_hn, w1, b1, w2, b2)
    return p_tm, h_n


def _pick_time_chunk(T, target=16):
    # Never shrink the chunk toward 1 for awkward T: pad T up instead, so the
    # ~0.35us per-grid-step overhead is always amortized over >= target steps.
    c = min(target, T)
    T_pad = ((T + c - 1) // c) * c
    return c, T_pad


# ----------------------------------------------------------------------------
# Full forward pass (matches torch GRU2FC.forward semantics).
# ----------------------------------------------------------------------------
@functools.partial(jax.jit, static_argnames=("compute_dtype",))
def gru2fc_forward(x, h, params, compute_dtype=jnp.float32):
    """x: (B, T, I) f32, h: (1, B, H) f32. Returns (p (B, T, O), h_n (1, B, H))."""
    B, T, I = x.shape
    H = params["w_hh"].shape[-1]
    cd = compute_dtype

    # Fold the r/z thirds of b_hh into the projection bias; the n-gate bias must
    # stay inside r*(h @ W_hn + b_hn) to match torch.nn.GRU.
    b_proj = params["b_ih"].at[:2].add(params["b_hh"][:2])

    # Phase 1: input projection over all B*T rows (off the sequential path).
    # Batch-major flatten is a free reshape (no input-side transpose).
    gi = _input_projection(x.reshape(B * T, I).astype(cd),
                           params["w_ih"].astype(cd), b_proj.astype(cd),
                           out_dtype=cd)
    gi = gi.reshape(3, B, T, H)

    t_chunk, T_pad = _pick_time_chunk(T)
    if T_pad != T:
        gi = jnp.pad(gi, ((0, 0), (0, 0), (0, T_pad - T), (0, 0)))

    # Phase 2+3: recurrence fused with the FC head (hidden states never hit HBM).
    p_tm, h_n = _gru_fc(gi, h[0], params["w_hh"].astype(cd), params["b_hh"][2],
                        params["w1"].astype(cd), params["b1"],
                        params["w2"].astype(cd), params["b2"],
                        t_chunk=t_chunk, t_real=T)

    # p is emitted time-major so every per-step store is a safe leading-dim
    # index; the remaining transpose is only B*T*O elements.
    if T_pad != T:
        p_tm = p_tm[:T]
    p = jnp.transpose(p_tm, (1, 0, 2))                    # (B, T, O)
    return p, h_n[None]                                   # h_n -> (1, B, H)


def init_params(key, n_inputs, n_outputs, n_rnn_hidden, n_fc_hidden):
    """Gate-major params matching torch.nn.GRU / nn.Linear shapes & init scale.

    torch stores weight_ih_l0 as (3H, I) with gate order [r, z, n]; we keep the
    same gate order but split/pre-transpose: w_ih[g] = W_i{g}^T (I, H), etc.
    """
    ks = jax.random.split(key, 8)
    s_gru = 1.0 / jnp.sqrt(n_rnn_hidden)
    s_fc1 = 1.0 / jnp.sqrt(n_rnn_hidden)
    s_fc2 = 1.0 / jnp.sqrt(n_fc_hidden)
    u = lambda k, shape, s: jax.random.uniform(k, shape, jnp.float32, -s, s)
    return {
        "w_ih": u(ks[0], (3, n_inputs, n_rnn_hidden), s_gru),
        "w_hh": u(ks[1], (3, n_rnn_hidden, n_rnn_hidden), s_gru),
        "b_ih": u(ks[2], (3, 1, n_rnn_hidden), s_gru),
        "b_hh": u(ks[3], (3, 1, n_rnn_hidden), s_gru),
        "w1":   u(ks[4], (n_rnn_hidden, n_fc_hidden), s_fc1),
        "b1":   u(ks[5], (1, n_fc_hidden), s_fc1),
        "w2":   u(ks[6], (n_fc_hidden, n_outputs), s_fc2),
        "b2":   u(ks[7], (1, n_outputs), s_fc2),
    }


def _reference_forward(x, h, params):
    """Pure-JAX reference (lax.scan) mirroring torch.nn.GRU + FC semantics."""
    w_ih, b_ih = params["w_ih"], params["b_ih"]
    w_hh, b_hh = params["w_hh"], params["b_hh"]

    def step(h_prev, x_t):
        r = jax.nn.sigmoid(x_t @ w_ih[0] + b_ih[0] + h_prev @ w_hh[0] + b_hh[0])
        z = jax.nn.sigmoid(x_t @ w_ih[1] + b_ih[1] + h_prev @ w_hh[1] + b_hh[1])
        n = jnp.tanh(x_t @ w_ih[2] + b_ih[2] + r * (h_prev @ w_hh[2] + b_hh[2]))
        h_new = (1.0 - z) * n + z * h_prev
        return h_new, h_new

    h_last, hs = jax.lax.scan(step, h[0], jnp.transpose(x, (1, 0, 2)))
    hs = jnp.transpose(hs, (1, 0, 2))                     # (B, T, H)
    f1 = jnp.maximum(hs @ params["w1"] + params["b1"], 0.0)
    p = f1 @ params["w2"] + params["b2"]
    return p, h_last[None]


if __name__ == "__main__":
    B, T = 2, 8
    n_inputs, n_outputs = 16, 8
    n_rnn_hidden, n_fc_hidden = 32, 64

    key = jax.random.PRNGKey(0)
    k_x, k_h, k_p = jax.random.split(key, 3)
    x = jax.random.normal(k_x, (B, T, n_inputs), jnp.float32)
    h0 = jax.random.normal(k_h, (1, B, n_rnn_hidden), jnp.float32)
    params = init_params(k_p, n_inputs, n_outputs, n_rnn_hidden, n_fc_hidden)

    p_ref, h_ref = _reference_forward(x, h0, params)

    # f32 path (tight check against the pure-JAX reference).
    p, h_n = gru2fc_forward(x, h0, params)
    jax.block_until_ready((p, h_n))
    assert p.shape == (B, T, n_outputs) and h_n.shape == (1, B, n_rnn_hidden)
    assert jnp.allclose(p, p_ref, atol=1e-5, rtol=1e-5)
    assert jnp.allclose(h_n, h_ref, atol=1e-5, rtol=1e-5)

    # bf16 matmul-operand path (v6e/v7x MXU; f32 accumulation, f32 hidden state).
    p_bf, h_bf = gru2fc_forward(x, h0, params, compute_dtype=jnp.bfloat16)
    jax.block_until_ready((p_bf, h_bf))
    assert jnp.allclose(p_bf, p_ref, atol=5e-2, rtol=5e-2)
    assert jnp.allclose(h_bf, h_ref, atol=5e-2, rtol=5e-2)

    print("KERNEL_OK")
</pallas_src>

<mosaic_0001>
module attributes {stable_mosaic.version = 11 : i64} {
  func.func @_proj_kernel(%arg0: i32, %arg1: memref<16x16xf32, #tpu.memory_space<vmem>>, %arg2: memref<3x16x32xf32, #tpu.memory_space<vmem>>, %arg3: memref<3x1x32xf32, #tpu.memory_space<vmem>>, %arg4: memref<3x16x32xf32, #tpu.memory_space<vmem>>) attributes {dimension_semantics = [#tpu.dimension_semantics<parallel>], iteration_bounds = array<i64: 1>, scalar_prefetch = 0 : i64, scratch_operands = 0 : i64, tpu.core_type = #tpu.core_type<tc>, window_params = [{transform_indices = @transform_0, window_bounds = array<i64: 16, 16>}, {pipeline_mode = #tpu.pipeline_mode<synchronous>, transform_indices = @transform_1, window_bounds = array<i64: 3, 16, 32>}, {pipeline_mode = #tpu.pipeline_mode<synchronous>, transform_indices = @transform_2, window_bounds = array<i64: 3, 1, 32>}, {transform_indices = @transform_3, window_bounds = array<i64: 3, 16, 32>}]} {
    %c0 = arith.constant 0 : index
    %c0_0 = arith.constant 0 : index
    %0 = vector.load %arg1[%c0, %c0_0] : memref<16x16xf32, #tpu.memory_space<vmem>>, vector<16x16xf32>
    %c0_1 = arith.constant 0 : index
    %c0_2 = arith.constant 0 : index
    %c0_3 = arith.constant 0 : index
    %1 = vector.load %arg2[%c0_1, %c0_2, %c0_3] : memref<3x16x32xf32, #tpu.memory_space<vmem>>, vector<1x16x32xf32>
    %2 = vector.shape_cast %1 : vector<1x16x32xf32> to vector<16x32xf32>
    %cst = arith.constant dense<0.000000e+00> : vector<16x32xf32>
    %3 = tpu.matmul %0, %2, %cst {dimension_numbers = #tpu.dot_dimension_numbers<[1], [0], [0], [1], [0, 0, 1, 1], [], []>} : vector<16x16xf32>, vector<16x32xf32>, vector<16x32xf32> -> vector<16x32xf32>
    %c0_4 = arith.constant 0 : index
    %c0_5 = arith.constant 0 : index
    %c0_6 = arith.constant 0 : index
    %4 = vector.load %arg3[%c0_4, %c0_5, %c0_6] : memref<3x1x32xf32, #tpu.memory_space<vmem>>, vector<1x1x32xf32>
    %5 = vector.shape_cast %4 : vector<1x1x32xf32> to vector<1x32xf32>
    %6 = vector.broadcast %5 : vector<1x32xf32> to vector<16x32xf32>
    %7 = arith.addf %3, %6 : vector<16x32xf32>
    %c0_7 = arith.constant 0 : index
    %c0_8 = arith.constant 0 : index
    %c0_9 = arith.constant 0 : index
    %8 = vector.load %arg4[%c0_7, %c0_8, %c0_9] : memref<3x16x32xf32, #tpu.memory_space<vmem>>, vector<1x16x32xf32>
    %9 = vector.shape_cast %8 : vector<1x16x32xf32> to vector<16x32xf32>
    %10 = vector.shape_cast %7 : vector<16x32xf32> to vector<1x16x32xf32>
    tpu.vector_store %arg4[%c0_7, %c0_8, %c0_9], %10 {strides = array<i32>} : memref<3x16x32xf32, #tpu.memory_space<vmem>>, vector<1x16x32xf32>,
    %c1 = arith.constant 1 : index
    %c0_10 = arith.constant 0 : index
    %c0_11 = arith.constant 0 : index
    %11 = vector.load %arg2[%c1, %c0_10, %c0_11] : memref<3x16x32xf32, #tpu.memory_space<vmem>>, vector<1x16x32xf32>
    %12 = vector.shape_cast %11 : vector<1x16x32xf32> to vector<16x32xf32>
    %cst_12 = arith.constant dense<0.000000e+00> : vector<16x32xf32>
    %13 = tpu.matmul %0, %12, %cst_12 {dimension_numbers = #tpu.dot_dimension_numbers<[1], [0], [0], [1], [0, 0, 1, 1], [], []>} : vector<16x16xf32>, vector<16x32xf32>, vector<16x32xf32> -> vector<16x32xf32>
    %c1_13 = arith.constant 1 : index
    %c0_14 = arith.constant 0 : index
    %c0_15 = arith.constant 0 : index
    %14 = vector.load %arg3[%c1_13, %c0_14, %c0_15] : memref<3x1x32xf32, #tpu.memory_space<vmem>>, vector<1x1x32xf32>
    %15 = vector.shape_cast %14 : vector<1x1x32xf32> to vector<1x32xf32>
    %16 = vector.broadcast %15 : vector<1x32xf32> to vector<16x32xf32>
    %17 = arith.addf %13, %16 : vector<16x32xf32>
    %c1_16 = arith.constant 1 : index
    %c0_17 = arith.constant 0 : index
    %c0_18 = arith.constant 0 : index
    %18 = vector.load %arg4[%c1_16, %c0_17, %c0_18] : memref<3x16x32xf32, #tpu.memory_space<vmem>>, vector<1x16x32xf32>
    %19 = vector.shape_cast %18 : vector<1x16x32xf32> to vector<16x32xf32>
    %20 = vector.shape_cast %17 : vector<16x32xf32> to vector<1x16x32xf32>
    tpu.vector_store %arg4[%c1_16, %c0_17, %c0_18], %20 {strides = array<i32>} : memref<3x16x32xf32, #tpu.memory_space<vmem>>, vector<1x16x32xf32>,
    %c2 = arith.constant 2 : index
    %c0_19 = arith.constant 0 : index
    %c0_20 = arith.constant 0 : index
    %21 = vector.load %arg2[%c2, %c0_19, %c0_20] : memref<3x16x32xf32, #tpu.memory_space<vmem>>, vector<1x16x32xf32>
    %22 = vector.shape_cast %21 : vector<1x16x32xf32> to vector<16x32xf32>
    %cst_21 = arith.constant dense<0.000000e+00> : vector<16x32xf32>
    %23 = tpu.matmul %0, %22, %cst_21 {dimension_numbers = #tpu.dot_dimension_numbers<[1], [0], [0], [1], [0, 0, 1, 1], [], []>} : vector<16x16xf32>, vector<16x32xf32>, vector<16x32xf32> -> vector<16x32xf32>
    %c2_22 = arith.constant 2 : index
    %c0_23 = arith.constant 0 : index
    %c0_24 = arith.constant 0 : index
    %24 = vector.load %arg3[%c2_22, %c0_23, %c0_24] : memref<3x1x32xf32, #tpu.memory_space<vmem>>, vector<1x1x32xf32>
    %25 = vector.shape_cast %24 : vector<1x1x32xf32> to vector<1x32xf32>
    %26 = vector.broadcast %25 : vector<1x32xf32> to vector<16x32xf32>
    %27 = arith.addf %23, %26 : vector<16x32xf32>
    %c2_25 = arith.constant 2 : index
    %c0_26 = arith.constant 0 : index
    %c0_27 = arith.constant 0 : index
    %28 = vector.load %arg4[%c2_25, %c0_26, %c0_27] : memref<3x16x32xf32, #tpu.memory_space<vmem>>, vector<1x16x32xf32>
    %29 = vector.shape_cast %28 : vector<1x16x32xf32> to vector<16x32xf32>
    %30 = vector.shape_cast %27 : vector<16x32xf32> to vector<1x16x32xf32>
    tpu.vector_store %arg4[%c2_25, %c0_26, %c0_27], %30 {strides = array<i32>} : memref<3x16x32xf32, #tpu.memory_space<vmem>>, vector<1x16x32xf32>,
    return
  }
  func.func @transform_0(%arg0: i32) -> (i32, i32) {
    %c0_i32 = arith.constant 0 : i32
    %c0_i32_0 = arith.constant 0 : i32
    return %arg0, %c0_i32 : i32, i32
  }
  func.func @transform_1(%arg0: i32) -> (i32, i32, i32) {
    %c0_i32 = arith.constant 0 : i32
    %c0_i32_0 = arith.constant 0 : i32
    %c0_i32_1 = arith.constant 0 : i32
    %c0_i32_2 = arith.constant 0 : i32
    return %c0_i32, %c0_i32_0, %c0_i32_1 : i32, i32, i32
  }
  func.func @transform_2(%arg0: i32) -> (i32, i32, i32) {
    %c0_i32 = arith.constant 0 : i32
    %c0_i32_0 = arith.constant 0 : i32
    %c0_i32_1 = arith.constant 0 : i32
    %c0_i32_2 = arith.constant 0 : i32
    return %c0_i32, %c0_i32_0, %c0_i32_1 : i32, i32, i32
  }
  func.func @transform_3(%arg0: i32) -> (i32, i32, i32) {
    %c0_i32 = arith.constant 0 : i32
    %c0_i32_0 = arith.constant 0 : i32
    %c0_i32_1 = arith.constant 0 : i32
    return %c0_i32, %arg0, %c0_i32_0 : i32, i32, i32
  }
}

module attributes {stable_mosaic.version = 11 : i64} {
  func.func @_gru_head_kernel(%arg0: i32, %arg1: i32, %arg2: memref<3x2x8x32xf32, #tpu.memory_space<vmem>>, %arg3: memref<2x32xf32, #tpu.memory_space<vmem>>, %arg4: memref<3x32x32xf32, #tpu.memory_space<vmem>>, %arg5: memref<1x32xf32, #tpu.memory_space<vmem>>, %arg6: memref<32x64xf32, #tpu.memory_space<vmem>>, %arg7: memref<1x64xf32, #tpu.memory_space<vmem>>, %arg8: memref<64x8xf32, #tpu.memory_space<vmem>>, %arg9: memref<1x8xf32, #tpu.memory_space<vmem>>, %arg10: memref<8x2x8xf32, #tpu.memory_space<vmem>>, %arg11: memref<2x32xf32, #tpu.memory_space<vmem>>, %arg12: memref<2x32xf32, #tpu.memory_space<vmem>>) attributes {dimension_semantics = [#tpu.dimension_semantics<parallel>, #tpu.dimension_semantics<arbitrary>], iteration_bounds = array<i64: 1, 1>, scalar_prefetch = 0 : i64, scratch_operands = 1 : i64, tpu.core_type = #tpu.core_type<tc>, window_params = [{transform_indices = @transform_0, window_bounds = array<i64: 3, 2, 8, 32>}, {transform_indices = @transform_1, window_bounds = array<i64: 2, 32>}, {pipeline_mode = #tpu.pipeline_mode<synchronous>, transform_indices = @transform_2, window_bounds = array<i64: 3, 32, 32>}, {pipeline_mode = #tpu.pipeline_mode<synchronous>, transform_indices = @transform_3, window_bounds = array<i64: 1, 32>}, {pipeline_mode = #tpu.pipeline_mode<synchronous>, transform_indices = @transform_4, window_bounds = array<i64: 32, 64>}, {pipeline_mode = #tpu.pipeline_mode<synchronous>, transform_indices = @transform_5, window_bounds = array<i64: 1, 64>}, {pipeline_mode = #tpu.pipeline_mode<synchronous>, transform_indices = @transform_6, window_bounds = array<i64: 64, 8>}, {pipeline_mode = #tpu.pipeline_mode<synchronous>, transform_indices = @transform_7, window_bounds = array<i64: 1, 8>}, {transform_indices = @transform_8, window_bounds = array<i64: 8, 2, 8>}, {transform_indices = @transform_9, window_bounds = array<i64: 2, 32>}]} {
    %c0_i32 = arith.constant 0 : i32
    %0 = arith.cmpi eq, %arg1, %c0_i32 : i32
    %1 = arith.extui %0 : i1 to i32
    %c0_i32_0 = arith.constant 0 : i32
    %2 = arith.cmpi ne, %1, %c0_i32_0 : i32
    scf.if %2 {
      %c0_125 = arith.constant 0 : index
      %c0_126 = arith.constant 0 : index
      %349 = vector.load %arg3[%c0_125, %c0_126] : memref<2x32xf32, #tpu.memory_space<vmem>>, vector<2x32xf32>
      %c0_127 = arith.constant 0 : index
      %c0_128 = arith.constant 0 : index
      %350 = vector.load %arg12[%c0_127, %c0_128] : memref<2x32xf32, #tpu.memory_space<vmem>>, vector<2x32xf32>
      tpu.vector_store %arg12[%c0_127, %c0_128], %349 {strides = array<i32>} : memref<2x32xf32, #tpu.memory_space<vmem>>, vector<2x32xf32>,
    } else {
    }
    %c0 = arith.constant 0 : index
    %c0_1 = arith.constant 0 : index
    %c0_2 = arith.constant 0 : index
    %3 = vector.load %arg4[%c0, %c0_1, %c0_2] : memref<3x32x32xf32, #tpu.memory_space<vmem>>, vector<1x32x32xf32>
    %4 = vector.shape_cast %3 : vector<1x32x32xf32> to vector<32x32xf32>
    %c1 = arith.constant 1 : index
    %c0_3 = arith.constant 0 : index
    %c0_4 = arith.constant 0 : index
    %5 = vector.load %arg4[%c1, %c0_3, %c0_4] : memref<3x32x32xf32, #tpu.memory_space<vmem>>, vector<1x32x32xf32>
    %6 = vector.shape_cast %5 : vector<1x32x32xf32> to vector<32x32xf32>
    %c2 = arith.constant 2 : index
    %c0_5 = arith.constant 0 : index
    %c0_6 = arith.constant 0 : index
    %7 = vector.load %arg4[%c2, %c0_5, %c0_6] : memref<3x32x32xf32, #tpu.memory_space<vmem>>, vector<1x32x32xf32>
    %8 = vector.shape_cast %7 : vector<1x32x32xf32> to vector<32x32xf32>
    %c0_7 = arith.constant 0 : index
    %c0_8 = arith.constant 0 : index
    %9 = vector.load %arg5[%c0_7, %c0_8] : memref<1x32xf32, #tpu.memory_space<vmem>>, vector<1x32xf32>
    %10 = vector.shape_cast %9 : vector<1x32xf32> to vector<1x32xf32>
    %11 = vector.broadcast %10 : vector<1x32xf32> to vector<2x32xf32>
    %c0_9 = arith.constant 0 : index
    %c0_10 = arith.constant 0 : index
    %12 = vector.load %arg6[%c0_9, %c0_10] : memref<32x64xf32, #tpu.memory_space<vmem>>, vector<32x64xf32>
    %c0_11 = arith.constant 0 : index
    %c0_12 = arith.constant 0 : index
    %13 = vector.load %arg8[%c0_11, %c0_12] : memref<64x8xf32, #tpu.memory_space<vmem>>, vector<64x8xf32>
    %c0_13 = arith.constant 0 : index
    %c0_14 = arith.constant 0 : index
    %14 = vector.load %arg7[%c0_13, %c0_14] : memref<1x64xf32, #tpu.memory_space<vmem>>, vector<1x64xf32>
    %15 = vector.shape_cast %14 : vector<1x64xf32> to vector<1x64xf32>
    %16 = vector.broadcast %15 : vector<1x64xf32> to vector<2x64xf32>
    %c0_15 = arith.constant 0 : index
    %c0_16 = arith.constant 0 : index
    %17 = vector.load %arg9[%c0_15, %c0_16] : memref<1x8xf32, #tpu.memory_space<vmem>>, vector<1x8xf32>
    %c0_17 = arith.constant 0 : index
    %c0_18 = arith.constant 0 : index
    %c0_19 = arith.constant 0 : index
    %c0_20 = arith.constant 0 : index
    %18 = vector.load %arg2[%c0_17, %c0_18, %c0_19, %c0_20] : memref<3x2x8x32xf32, #tpu.memory_space<vmem>>, vector<1x2x8x32xf32>
    %19 = vector.shape_cast %18 : vector<1x2x8x32xf32> to vector<2x8x32xf32>
    %c1_21 = arith.constant 1 : index
    %c0_22 = arith.constant 0 : index
    %c0_23 = arith.constant 0 : index
    %c0_24 = arith.constant 0 : index
    %20 = vector.load %arg2[%c1_21, %c0_22, %c0_23, %c0_24] : memref<3x2x8x32xf32, #tpu.memory_space<vmem>>, vector<1x2x8x32xf32>
    %21 = vector.shape_cast %20 : vector<1x2x8x32xf32> to vector<2x8x32xf32>
    %c2_25 = arith.constant 2 : index
    %c0_26 = arith.constant 0 : index
    %c0_27 = arith.constant 0 : index
    %c0_28 = arith.constant 0 : index
    %22 = vector.load %arg2[%c2_25, %c0_26, %c0_27, %c0_28] : memref<3x2x8x32xf32, #tpu.memory_space<vmem>>, vector<1x2x8x32xf32>
    %23 = vector.shape_cast %22 : vector<1x2x8x32xf32> to vector<2x8x32xf32>
    %c0_29 = arith.constant 0 : index
    %c0_30 = arith.constant 0 : index
    %24 = vector.load %arg12[%c0_29, %c0_30] : memref<2x32xf32, #tpu.memory_space<vmem>>, vector<2x32xf32>
    %cst = arith.constant dense<0.000000e+00> : vector<2x32xf32>
    %25 = tpu.matmul %24, %4, %cst {dimension_numbers = #tpu.dot_dimension_numbers<[1], [0], [0], [1], [0, 0, 1, 1], [], []>} : vector<2x32xf32>, vector<32x32xf32>, vector<2x32xf32> -> vector<2x32xf32>
    %cst_31 = arith.constant dense<0.000000e+00> : vector<2x32xf32>
    %26 = tpu.matmul %24, %6, %cst_31 {dimension_numbers = #tpu.dot_dimension_numbers<[1], [0], [0], [1], [0, 0, 1, 1], [], []>} : vector<2x32xf32>, vector<32x32xf32>, vector<2x32xf32> -> vector<2x32xf32>
    %cst_32 = arith.constant dense<0.000000e+00> : vector<2x32xf32>
    %27 = tpu.matmul %24, %8, %cst_32 {dimension_numbers = #tpu.dot_dimension_numbers<[1], [0], [0], [1], [0, 0, 1, 1], [], []>} : vector<2x32xf32>, vector<32x32xf32>, vector<2x32xf32> -> vector<2x32xf32>
    %28 = arith.addf %27, %11 : vector<2x32xf32>
    %29 = vector.extract_strided_slice %19 {offsets = [0, 0, 0], sizes = [2, 1, 32], strides = [1, 1, 1]} : vector<2x8x32xf32> to vector<2x1x32xf32>
    %30 = vector.shape_cast %29 : vector<2x1x32xf32> to vector<2x32xf32>
    %31 = vector.extract_strided_slice %21 {offsets = [0, 0, 0], sizes = [2, 1, 32], strides = [1, 1, 1]} : vector<2x8x32xf32> to vector<2x1x32xf32>
    %32 = vector.shape_cast %31 : vector<2x1x32xf32> to vector<2x32xf32>
    %33 = vector.extract_strided_slice %23 {offsets = [0, 0, 0], sizes = [2, 1, 32], strides = [1, 1, 1]} : vector<2x8x32xf32> to vector<2x1x32xf32>
    %34 = vector.shape_cast %33 : vector<2x1x32xf32> to vector<2x32xf32>
    %35 = arith.addf %30, %25 : vector<2x32xf32>
    %36 = arith.negf %35 : vector<2x32xf32>
    %37 = math.exp %36 : vector<2x32xf32>
    %cst_33 = arith.constant 1.000000e+00 : f32
    %38 = vector.broadcast %cst_33 : f32 to vector<2x32xf32>
    %39 = arith.addf %38, %37 : vector<2x32xf32>
    %40 = arith.divf %38, %39 : vector<2x32xf32>
    %41 = arith.addf %32, %26 : vector<2x32xf32>
    %42 = arith.negf %41 : vector<2x32xf32>
    %43 = math.exp %42 : vector<2x32xf32>
    %cst_34 = arith.constant 1.000000e+00 : f32
    %44 = vector.broadcast %cst_34 : f32 to vector<2x32xf32>
    %45 = arith.addf %44, %43 : vector<2x32xf32>
    %46 = arith.divf %44, %45 : vector<2x32xf32>
    %47 = arith.mulf %40, %28 : vector<2x32xf32>
    %48 = arith.addf %34, %47 : vector<2x32xf32>
    %49 = math.tanh %48 : vector<2x32xf32>
    %cst_35 = arith.constant 1.000000e+00 : f32
    %50 = vector.broadcast %cst_35 : f32 to vector<2x32xf32>
    %51 = arith.subf %50, %46 : vector<2x32xf32>
    %52 = arith.mulf %51, %49 : vector<2x32xf32>
    %53 = arith.mulf %46, %24 : vector<2x32xf32>
    %54 = arith.addf %52, %53 : vector<2x32xf32>
    %cst_36 = arith.constant dense<0.000000e+00> : vector<2x64xf32>
    %55 = tpu.matmul %54, %12, %cst_36 {dimension_numbers = #tpu.dot_dimension_numbers<[1], [0], [0], [1], [0, 0, 1, 1], [], []>} : vector<2x32xf32>, vector<32x64xf32>, vector<2x64xf32> -> vector<2x64xf32>
    %56 = arith.addf %55, %16 : vector<2x64xf32>
    %cst_37 = arith.constant 0.000000e+00 : f32
    %57 = vector.broadcast %cst_37 : f32 to vector<2x64xf32>
    %58 = arith.maximumf %56, %57 : vector<2x64xf32>
    %cst_38 = arith.constant dense<0.000000e+00> : vector<2x8xf32>
    %59 = tpu.matmul %58, %13, %cst_38 {dimension_numbers = #tpu.dot_dimension_numbers<[1], [0], [0], [1], [0, 0, 1, 1], [], []>} : vector<2x64xf32>, vector<64x8xf32>, vector<2x8xf32> -> vector<2x8xf32>
    %60 = vector.broadcast %17 : vector<1x8xf32> to vector<2x8xf32>
    %61 = arith.addf %59, %60 : vector<2x8xf32>
    %c0_39 = arith.constant 0 : index
    %c0_40 = arith.constant 0 : index
    %c0_41 = arith.constant 0 : index
    %62 = vector.load %arg10[%c0_39, %c0_40, %c0_41] : memref<8x2x8xf32, #tpu.memory_space<vmem>>, vector<1x2x8xf32>
    %63 = vector.shape_cast %62 : vector<1x2x8xf32> to vector<2x8xf32>
    %64 = vector.shape_cast %61 : vector<2x8xf32> to vector<1x2x8xf32>
    tpu.vector_store %arg10[%c0_39, %c0_40, %c0_41], %64 {strides = array<i32>} : memref<8x2x8xf32, #tpu.memory_space<vmem>>, vector<1x2x8xf32>,
    %cst_42 = arith.constant dense<0.000000e+00> : vector<2x32xf32>
    %65 = tpu.matmul %54, %4, %cst_42 {dimension_numbers = #tpu.dot_dimension_numbers<[1], [0], [0], [1], [0, 0, 1, 1], [], []>} : vector<2x32xf32>, vector<32x32xf32>, vector<2x32xf32> -> vector<2x32xf32>
    %cst_43 = arith.constant dense<0.000000e+00> : vector<2x32xf32>
    %66 = tpu.matmul %54, %6, %cst_43 {dimension_numbers = #tpu.dot_dimension_numbers<[1], [0], [0], [1], [0, 0, 1, 1], [], []>} : vector<2x32xf32>, vector<32x32xf32>, vector<2x32xf32> -> vector<2x32xf32>
    %cst_44 = arith.constant dense<0.000000e+00> : vector<2x32xf32>
    %67 = tpu.matmul %54, %8, %cst_44 {dimension_numbers = #tpu.dot_dimension_numbers<[1], [0], [0], [1], [0, 0, 1, 1], [], []>} : vector<2x32xf32>, vector<32x32xf32>, vector<2x32xf32> -> vector<2x32xf32>
    %68 = arith.addf %67, %11 : vector<2x32xf32>
    %69 = vector.extract_strided_slice %19 {offsets = [0, 1, 0], sizes = [2, 1, 32], strides = [1, 1, 1]} : vector<2x8x32xf32> to vector<2x1x32xf32>
    %70 = vector.shape_cast %69 : vector<2x1x32xf32> to vector<2x32xf32>
    %71 = vector.extract_strided_slice %21 {offsets = [0, 1, 0], sizes = [2, 1, 32], strides = [1, 1, 1]} : vector<2x8x32xf32> to vector<2x1x32xf32>
    %72 = vector.shape_cast %71 : vector<2x1x32xf32> to vector<2x32xf32>
    %73 = vector.extract_strided_slice %23 {offsets = [0, 1, 0], sizes = [2, 1, 32], strides = [1, 1, 1]} : vector<2x8x32xf32> to vector<2x1x32xf32>
    %74 = vector.shape_cast %73 : vector<2x1x32xf32> to vector<2x32xf32>
    %75 = arith.addf %70, %65 : vector<2x32xf32>
    %76 = arith.negf %75 : vector<2x32xf32>
    %77 = math.exp %76 : vector<2x32xf32>
    %cst_45 = arith.constant 1.000000e+00 : f32
    %78 = vector.broadcast %cst_45 : f32 to vector<2x32xf32>
    %79 = arith.addf %78, %77 : vector<2x32xf32>
    %80 = arith.divf %78, %79 : vector<2x32xf32>
    %81 = arith.addf %72, %66 : vector<2x32xf32>
    %82 = arith.negf %81 : vector<2x32xf32>
    %83 = math.exp %82 : vector<2x32xf32>
    %cst_46 = arith.constant 1.000000e+00 : f32
    %84 = vector.broadcast %cst_46 : f32 to vector<2x32xf32>
    %85 = arith.addf %84, %83 : vector<2x32xf32>
    %86 = arith.divf %84, %85 : vector<2x32xf32>
    %87 = arith.mulf %80, %68 : vector<2x32xf32>
    %88 = arith.addf %74, %87 : vector<2x32xf32>
    %89 = math.tanh %88 : vector<2x32xf32>
    %cst_47 = arith.constant 1.000000e+00 : f32
    %90 = vector.broadcast %cst_47 : f32 to vector<2x32xf32>
    %91 = arith.subf %90, %86 : vector<2x32xf32>
    %92 = arith.mulf %91, %89 : vector<2x32xf32>
    %93 = arith.mulf %86, %54 : vector<2x32xf32>
    %94 = arith.addf %92, %93 : vector<2x32xf32>
    %cst_48 = arith.constant dense<0.000000e+00> : vector<2x64xf32>
    %95 = tpu.matmul %94, %12, %cst_48 {dimension_numbers = #tpu.dot_dimension_numbers<[1], [0], [0], [1], [0, 0, 1, 1], [], []>} : vector<2x32xf32>, vector<32x64xf32>, vector<2x64xf32> -> vector<2x64xf32>
    %96 = arith.addf %95, %16 : vector<2x64xf32>
    %cst_49 = arith.constant 0.000000e+00 : f32
    %97 = vector.broadcast %cst_49 : f32 to vector<2x64xf32>
    %98 = arith.maximumf %96, %97 : vector<2x64xf32>
    %cst_50 = arith.constant dense<0.000000e+00> : vector<2x8xf32>
    %99 = tpu.matmul %98, %13, %cst_50 {dimension_numbers = #tpu.dot_dimension_numbers<[1], [0], [0], [1], [0, 0, 1, 1], [], []>} : vector<2x64xf32>, vector<64x8xf32>, vector<2x8xf32> -> vector<2x8xf32>
    %100 = vector.broadcast %17 : vector<1x8xf32> to vector<2x8xf32>
    %101 = arith.addf %99, %100 : vector<2x8xf32>
    %c1_51 = arith.constant 1 : index
    %c0_52 = arith.constant 0 : index
    %c0_53 = arith.constant 0 : index
    %102 = vector.load %arg10[%c1_51, %c0_52, %c0_53] : memref<8x2x8xf32, #tpu.memory_space<vmem>>, vector<1x2x8xf32>
    %103 = vector.shape_cast %102 : vector<1x2x8xf32> to vector<2x8xf32>
    %104 = vector.shape_cast %101 : vector<2x8xf32> to vector<1x2x8xf32>
    tpu.vector_store %arg10[%c1_51, %c0_52, %c0_53], %104 {strides = array<i32>} : memref<8x2x8xf32, #tpu.memory_space<vmem>>, vector<1x2x8xf32>,
    %cst_54 = arith.constant dense<0.000000e+00> : vector<2x32xf32>
    %105 = tpu.matmul %94, %4, %cst_54 {dimension_numbers = #tpu.dot_dimension_numbers<[1], [0], [0], [1], [0, 0, 1, 1], [], []>} : vector<2x32xf32>, vector<32x32xf32>, vector<2x32xf32> -> vector<2x32xf32>
    %cst_55 = arith.constant dense<0.000000e+00> : vector<2x32xf32>
    %106 = tpu.matmul %94, %6, %cst_55 {dimension_numbers = #tpu.dot_dimension_numbers<[1], [0], [0], [1], [0, 0, 1, 1], [], []>} : vector<2x32xf32>, vector<32x32xf32>, vector<2x32xf32> -> vector<2x32xf32>
    %cst_56 = arith.constant dense<0.000000e+00> : vector<2x32xf32>
    %107 = tpu.matmul %94, %8, %cst_56 {dimension_numbers = #tpu.dot_dimension_numbers<[1], [0], [0], [1], [0, 0, 1, 1], [], []>} : vector<2x32xf32>, vector<32x32xf32>, vector<2x32xf32> -> vector<2x32xf32>
    %108 = arith.addf %107, %11 : vector<2x32xf32>
    %109 = vector.extract_strided_slice %19 {offsets = [0, 2, 0], sizes = [2, 1, 32], strides = [1, 1, 1]} : vector<2x8x32xf32> to vector<2x1x32xf32>
    %110 = vector.shape_cast %109 : vector<2x1x32xf32> to vector<2x32xf32>
    %111 = vector.extract_strided_slice %21 {offsets = [0, 2, 0], sizes = [2, 1, 32], strides = [1, 1, 1]} : vector<2x8x32xf32> to vector<2x1x32xf32>
    %112 = vector.shape_cast %111 : vector<2x1x32xf32> to vector<2x32xf32>
    %113 = vector.extract_strided_slice %23 {offsets = [0, 2, 0], sizes = [2, 1, 32], strides = [1, 1, 1]} : vector<2x8x32xf32> to vector<2x1x32xf32>
    %114 = vector.shape_cast %113 : vector<2x1x32xf32> to vector<2x32xf32>
    %115 = arith.addf %110, %105 : vector<2x32xf32>
    %116 = arith.negf %115 : vector<2x32xf32>
    %117 = math.exp %116 : vector<2x32xf32>
    %cst_57 = arith.constant 1.000000e+00 : f32
    %118 = vector.broadcast %cst_57 : f32 to vector<2x32xf32>
    %119 = arith.addf %118, %117 : vector<2x32xf32>
    %120 = arith.divf %118, %119 : vector<2x32xf32>
    %121 = arith.addf %112, %106 : vector<2x32xf32>
    %122 = arith.negf %121 : vector<2x32xf32>
    %123 = math.exp %122 : vector<2x32xf32>
    %cst_58 = arith.constant 1.000000e+00 : f32
    %124 = vector.broadcast %cst_58 : f32 to vector<2x32xf32>
    %125 = arith.addf %124, %123 : vector<2x32xf32>
    %126 = arith.divf %124, %125 : vector<2x32xf32>
    %127 = arith.mulf %120, %108 : vector<2x32xf32>
    %128 = arith.addf %114, %127 : vector<2x32xf32>
    %129 = math.tanh %128 : vector<2x32xf32>
    %cst_59 = arith.constant 1.000000e+00 : f32
    %130 = vector.broadcast %cst_59 : f32 to vector<2x32xf32>
    %131 = arith.subf %130, %126 : vector<2x32xf32>
    %132 = arith.mulf %131, %129 : vector<2x32xf32>
    %133 = arith.mulf %126, %94 : vector<2x32xf32>
    %134 = arith.addf %132, %133 : vector<2x32xf32>
    %cst_60 = arith.constant dense<0.000000e+00> : vector<2x64xf32>
    %135 = tpu.matmul %134, %12, %cst_60 {dimension_numbers = #tpu.dot_dimension_numbers<[1], [0], [0], [1], [0, 0, 1, 1], [], []>} : vector<2x32xf32>, vector<32x64xf32>, vector<2x64xf32> -> vector<2x64xf32>
    %136 = arith.addf %135, %16 : vector<2x64xf32>
    %cst_61 = arith.constant 0.000000e+00 : f32
    %137 = vector.broadcast %cst_61 : f32 to vector<2x64xf32>
    %138 = arith.maximumf %136, %137 : vector<2x64xf32>
    %cst_62 = arith.constant dense<0.000000e+00> : vector<2x8xf32>
    %139 = tpu.matmul %138, %13, %cst_62 {dimension_numbers = #tpu.dot_dimension_numbers<[1], [0], [0], [1], [0, 0, 1, 1], [], []>} : vector<2x64xf32>, vector<64x8xf32>, vector<2x8xf32> -> vector<2x8xf32>
    %140 = vector.broadcast %17 : vector<1x8xf32> to vector<2x8xf32>
    %141 = arith.addf %139, %140 : vector<2x8xf32>
    %c2_63 = arith.constant 2 : index
    %c0_64 = arith.constant 0 : index
    %c0_65 = arith.constant 0 : index
    %142 = vector.load %arg10[%c2_63, %c0_64, %c0_65] : memref<8x2x8xf32, #tpu.memory_space<vmem>>, vector<1x2x8xf32>
    %143 = vector.shape_cast %142 : vector<1x2x8xf32> to vector<2x8xf32>
    %144 = vector.shape_cast %141 : vector<2x8xf32> to vector<1x2x8xf32>
    tpu.vector_store %arg10[%c2_63, %c0_64, %c0_65], %144 {strides = array<i32>} : memref<8x2x8xf32, #tpu.memory_space<vmem>>, vector<1x2x8xf32>,
    %cst_66 = arith.constant dense<0.000000e+00> : vector<2x32xf32>
    %145 = tpu.matmul %134, %4, %cst_66 {dimension_numbers = #tpu.dot_dimension_numbers<[1], [0], [0], [1], [0, 0, 1, 1], [], []>} : vector<2x32xf32>, vector<32x32xf32>, vector<2x32xf32> -> vector<2x32xf32>
    %cst_67 = arith.constant dense<0.000000e+00> : vector<2x32xf32>
    %146 = tpu.matmul %134, %6, %cst_67 {dimension_numbers = #tpu.dot_dimension_numbers<[1], [0], [0], [1], [0, 0, 1, 1], [], []>} : vector<2x32xf32>, vector<32x32xf32>, vector<2x32xf32> -> vector<2x32xf32>
    %cst_68 = arith.constant dense<0.000000e+00> : vector<2x32xf32>
    %147 = tpu.matmul %134, %8, %cst_68 {dimension_numbers = #tpu.dot_dimension_numbers<[1], [0], [0], [1], [0, 0, 1, 1], [], []>} : vector<2x32xf32>, vector<32x32xf32>, vector<2x32xf32> -> vector<2x32xf32>
    %148 = arith.addf %147, %11 : vector<2x32xf32>
    %149 = vector.extract_strided_slice %19 {offsets = [0, 3, 0], sizes = [2, 1, 32], strides = [1, 1, 1]} : vector<2x8x32xf32> to vector<2x1x32xf32>
    %150 = vector.shape_cast %149 : vector<2x1x32xf32> to vector<2x32xf32>
    %151 = vector.extract_strided_slice %21 {offsets = [0, 3, 0], sizes = [2, 1, 32], strides = [1, 1, 1]} : vector<2x8x32xf32> to vector<2x1x32xf32>
    %152 = vector.shape_cast %151 : vector<2x1x32xf32> to vector<2x32xf32>
    %153 = vector.extract_strided_slice %23 {offsets = [0, 3, 0], sizes = [2, 1, 32], strides = [1, 1, 1]} : vector<2x8x32xf32> to vector<2x1x32xf32>
    %154 = vector.shape_cast %153 : vector<2x1x32xf32> to vector<2x32xf32>
    %155 = arith.addf %150, %145 : vector<2x32xf32>
    %156 = arith.negf %155 : vector<2x32xf32>
    %157 = math.exp %156 : vector<2x32xf32>
    %cst_69 = arith.constant 1.000000e+00 : f32
    %158 = vector.broadcast %cst_69 : f32 to vector<2x32xf32>
    %159 = arith.addf %158, %157 : vector<2x32xf32>
    %160 = arith.divf %158, %159 : vector<2x32xf32>
    %161 = arith.addf %152, %146 : vector<2x32xf32>
    %162 = arith.negf %161 : vector<2x32xf32>
    %163 = math.exp %162 : vector<2x32xf32>
    %cst_70 = arith.constant 1.000000e+00 : f32
    %164 = vector.broadcast %cst_70 : f32 to vector<2x32xf32>
    %165 = arith.addf %164, %163 : vector<2x32xf32>
    %166 = arith.divf %164, %165 : vector<2x32xf32>
    %167 = arith.mulf %160, %148 : vector<2x32xf32>
    %168 = arith.addf %154, %167 : vector<2x32xf32>
    %169 = math.tanh %168 : vector<2x32xf32>
    %cst_71 = arith.constant 1.000000e+00 : f32
    %170 = vector.broadcast %cst_71 : f32 to vector<2x32xf32>
    %171 = arith.subf %170, %166 : vector<2x32xf32>
    %172 = arith.mulf %171, %169 : vector<2x32xf32>
    %173 = arith.mulf %166, %134 : vector<2x32xf32>
    %174 = arith.addf %172, %173 : vector<2x32xf32>
    %cst_72 = arith.constant dense<0.000000e+00> : vector<2x64xf32>
    %175 = tpu.matmul %174, %12, %cst_72 {dimension_numbers = #tpu.dot_dimension_numbers<[1], [0], [0], [1], [0, 0, 1, 1], [], []>} : vector<2x32xf32>, vector<32x64xf32>, vector<2x64xf32> -> vector<2x64xf32>
    %176 = arith.addf %175, %16 : vector<2x64xf32>
    %cst_73 = arith.constant 0.000000e+00 : f32
    %177 = vector.broadcast %cst_73 : f32 to vector<2x64xf32>
    %178 = arith.maximumf %176, %177 : vector<2x64xf32>
    %cst_74 = arith.constant dense<0.000000e+00> : vector<2x8xf32>
    %179 = tpu.matmul %178, %13, %cst_74 {dimension_numbers = #tpu.dot_dimension_numbers<[1], [0], [0], [1], [0, 0, 1, 1], [], []>} : vector<2x64xf32>, vector<64x8xf32>, vector<2x8xf32> -> vector<2x8xf32>
    %180 = vector.broadcast %17 : vector<1x8xf32> to vector<2x8xf32>
    %181 = arith.addf %179, %180 : vector<2x8xf32>
    %c3 = arith.constant 3 : index
    %c0_75 = arith.constant 0 : index
    %c0_76 = arith.constant 0 : index
    %182 = vector.load %arg10[%c3, %c0_75, %c0_76] : memref<8x2x8xf32, #tpu.memory_space<vmem>>, vector<1x2x8xf32>
    %183 = vector.shape_cast %182 : vector<1x2x8xf32> to vector<2x8xf32>
    %184 = vector.shape_cast %181 : vector<2x8xf32> to vector<1x2x8xf32>
    tpu.vector_store %arg10[%c3, %c0_75, %c0_76], %184 {strides = array<i32>} : memref<8x2x8xf32, #tpu.memory_space<vmem>>, vector<1x2x8xf32>,
    %cst_77 = arith.constant dense<0.000000e+00> : vector<2x32xf32>
    %185 = tpu.matmul %174, %4, %cst_77 {dimension_numbers = #tpu.dot_dimension_numbers<[1], [0], [0], [1], [0, 0, 1, 1], [], []>} : vector<2x32xf32>, vector<32x32xf32>, vector<2x32xf32> -> vector<2x32xf32>
    %cst_78 = arith.constant dense<0.000000e+00> : vector<2x32xf32>
    %186 = tpu.matmul %174, %6, %cst_78 {dimension_numbers = #tpu.dot_dimension_numbers<[1], [0], [0], [1], [0, 0, 1, 1], [], []>} : vector<2x32xf32>, vector<32x32xf32>, vector<2x32xf32> -> vector<2x32xf32>
    %cst_79 = arith.constant dense<0.000000e+00> : vector<2x32xf32>
    %187 = tpu.matmul %174, %8, %cst_79 {dimension_numbers = #tpu.dot_dimension_numbers<[1], [0], [0], [1], [0, 0, 1, 1], [], []>} : vector<2x32xf32>, vector<32x32xf32>, vector<2x32xf32> -> vector<2x32xf32>
    %188 = arith.addf %187, %11 : vector<2x32xf32>
    %189 = vector.extract_strided_slice %19 {offsets = [0, 4, 0], sizes = [2, 1, 32], strides = [1, 1, 1]} : vector<2x8x32xf32> to vector<2x1x32xf32>
    %190 = vector.shape_cast %189 : vector<2x1x32xf32> to vector<2x32xf32>
    %191 = vector.extract_strided_slice %21 {offsets = [0, 4, 0], sizes = [2, 1, 32], strides = [1, 1, 1]} : vector<2x8x32xf32> to vector<2x1x32xf32>
    %192 = vector.shape_cast %191 : vector<2x1x32xf32> to vector<2x32xf32>
    %193 = vector.extract_strided_slice %23 {offsets = [0, 4, 0], sizes = [2, 1, 32], strides = [1, 1, 1]} : vector<2x8x32xf32> to vector<2x1x32xf32>
    %194 = vector.shape_cast %193 : vector<2x1x32xf32> to vector<2x32xf32>
    %195 = arith.addf %190, %185 : vector<2x32xf32>
    %196 = arith.negf %195 : vector<2x32xf32>
    %197 = math.exp %196 : vector<2x32xf32>
    %cst_80 = arith.constant 1.000000e+00 : f32
    %198 = vector.broadcast %cst_80 : f32 to vector<2x32xf32>
    %199 = arith.addf %198, %197 : vector<2x32xf32>
    %200 = arith.divf %198, %199 : vector<2x32xf32>
    %201 = arith.addf %192, %186 : vector<2x32xf32>
    %202 = arith.negf %201 : vector<2x32xf32>
    %203 = math.exp %202 : vector<2x32xf32>
    %cst_81 = arith.constant 1.000000e+00 : f32
    %204 = vector.broadcast %cst_81 : f32 to vector<2x32xf32>
    %205 = arith.addf %204, %203 : vector<2x32xf32>
    %206 = arith.divf %204, %205 : vector<2x32xf32>
    %207 = arith.mulf %200, %188 : vector<2x32xf32>
    %208 = arith.addf %194, %207 : vector<2x32xf32>
    %209 = math.tanh %208 : vector<2x32xf32>
    %cst_82 = arith.constant 1.000000e+00 : f32
    %210 = vector.broadcast %cst_82 : f32 to vector<2x32xf32>
    %211 = arith.subf %210, %206 : vector<2x32xf32>
    %212 = arith.mulf %211, %209 : vector<2x32xf32>
    %213 = arith.mulf %206, %174 : vector<2x32xf32>
    %214 = arith.addf %212, %213 : vector<2x32xf32>
    %cst_83 = arith.constant dense<0.000000e+00> : vector<2x64xf32>
    %215 = tpu.matmul %214, %12, %cst_83 {dimension_numbers = #tpu.dot_dimension_numbers<[1], [0], [0], [1], [0, 0, 1, 1], [], []>} : vector<2x32xf32>, vector<32x64xf32>, vector<2x64xf32> -> vector<2x64xf32>
    %216 = arith.addf %215, %16 : vector<2x64xf32>
    %cst_84 = arith.constant 0.000000e+00 : f32
    %217 = vector.broadcast %cst_84 : f32 to vector<2x64xf32>
    %218 = arith.maximumf %216, %217 : vector<2x64xf32>
    %cst_85 = arith.constant dense<0.000000e+00> : vector<2x8xf32>
    %219 = tpu.matmul %218, %13, %cst_85 {dimension_numbers = #tpu.dot_dimension_numbers<[1], [0], [0], [1], [0, 0, 1, 1], [], []>} : vector<2x64xf32>, vector<64x8xf32>, vector<2x8xf32> -> vector<2x8xf32>
    %220 = vector.broadcast %17 : vector<1x8xf32> to vector<2x8xf32>
    %221 = arith.addf %219, %220 : vector<2x8xf32>
    %c4 = arith.constant 4 : index
    %c0_86 = arith.constant 0 : index
    %c0_87 = arith.constant 0 : index
    %222 = vector.load %arg10[%c4, %c0_86, %c0_87] : memref<8x2x8xf32, #tpu.memory_space<vmem>>, vector<1x2x8xf32>
    %223 = vector.shape_cast %222 : vector<1x2x8xf32> to vector<2x8xf32>
    %224 = vector.shape_cast %221 : vector<2x8xf32> to vector<1x2x8xf32>
    tpu.vector_store %arg10[%c4, %c0_86, %c0_87], %224 {strides = array<i32>} : memref<8x2x8xf32, #tpu.memory_space<vmem>>, vector<1x2x8xf32>,
    %cst_88 = arith.constant dense<0.000000e+00> : vector<2x32xf32>
    %225 = tpu.matmul %214, %4, %cst_88 {dimension_numbers = #tpu.dot_dimension_numbers<[1], [0], [0], [1], [0, 0, 1, 1], [], []>} : vector<2x32xf32>, vector<32x32xf32>, vector<2x32xf32> -> vector<2x32xf32>
    %cst_89 = arith.constant dense<0.000000e+00> : vector<2x32xf32>
    %226 = tpu.matmul %214, %6, %cst_89 {dimension_numbers = #tpu.dot_dimension_numbers<[1], [0], [0], [1], [0, 0, 1, 1], [], []>} : vector<2x32xf32>, vector<32x32xf32>, vector<2x32xf32> -> vector<2x32xf32>
    %cst_90 = arith.constant dense<0.000000e+00> : vector<2x32xf32>
    %227 = tpu.matmul %214, %8, %cst_90 {dimension_numbers = #tpu.dot_dimension_numbers<[1], [0], [0], [1], [0, 0, 1, 1], [], []>} : vector<2x32xf32>, vector<32x32xf32>, vector<2x32xf32> -> vector<2x32xf32>
    %228 = arith.addf %227, %11 : vector<2x32xf32>
    %229 = vector.extract_strided_slice %19 {offsets = [0, 5, 0], sizes = [2, 1, 32], strides = [1, 1, 1]} : vector<2x8x32xf32> to vector<2x1x32xf32>
    %230 = vector.shape_cast %229 : vector<2x1x32xf32> to vector<2x32xf32>
    %231 = vector.extract_strided_slice %21 {offsets = [0, 5, 0], sizes = [2, 1, 32], strides = [1, 1, 1]} : vector<2x8x32xf32> to vector<2x1x32xf32>
    %232 = vector.shape_cast %231 : vector<2x1x32xf32> to vector<2x32xf32>
    %233 = vector.extract_strided_slice %23 {offsets = [0, 5, 0], sizes = [2, 1, 32], strides = [1, 1, 1]} : vector<2x8x32xf32> to vector<2x1x32xf32>
    %234 = vector.shape_cast %233 : vector<2x1x32xf32> to vector<2x32xf32>
    %235 = arith.addf %230, %225 : vector<2x32xf32>
    %236 = arith.negf %235 : vector<2x32xf32>
    %237 = math.exp %236 : vector<2x32xf32>
    %cst_91 = arith.constant 1.000000e+00 : f32
    %238 = vector.broadcast %cst_91 : f32 to vector<2x32xf32>
    %239 = arith.addf %238, %237 : vector<2x32xf32>
    %240 = arith.divf %238, %239 : vector<2x32xf32>
    %241 = arith.addf %232, %226 : vector<2x32xf32>
    %242 = arith.negf %241 : vector<2x32xf32>
    %243 = math.exp %242 : vector<2x32xf32>
    %cst_92 = arith.constant 1.000000e+00 : f32
    %244 = vector.broadcast %cst_92 : f32 to vector<2x32xf32>
    %245 = arith.addf %244, %243 : vector<2x32xf32>
    %246 = arith.divf %244, %245 : vector<2x32xf32>
    %247 = arith.mulf %240, %228 : vector<2x32xf32>
    %248 = arith.addf %234, %247 : vector<2x32xf32>
    %249 = math.tanh %248 : vector<2x32xf32>
    %cst_93 = arith.constant 1.000000e+00 : f32
    %250 = vector.broadcast %cst_93 : f32 to vector<2x32xf32>
    %251 = arith.subf %250, %246 : vector<2x32xf32>
    %252 = arith.mulf %251, %249 : vector<2x32xf32>
    %253 = arith.mulf %246, %214 : vector<2x32xf32>
    %254 = arith.addf %252, %253 : vector<2x32xf32>
    %cst_94 = arith.constant dense<0.000000e+00> : vector<2x64xf32>
    %255 = tpu.matmul %254, %12, %cst_94 {dimension_numbers = #tpu.dot_dimension_numbers<[1], [0], [0], [1], [0, 0, 1, 1], [], []>} : vector<2x32xf32>, vector<32x64xf32>, vector<2x64xf32> -> vector<2x64xf32>
    %256 = arith.addf %255, %16 : vector<2x64xf32>
    %cst_95 = arith.constant 0.000000e+00 : f32
    %257 = vector.broadcast %cst_95 : f32 to vector<2x64xf32>
    %258 = arith.maximumf %256, %257 : vector<2x64xf32>
    %cst_96 = arith.constant dense<0.000000e+00> : vector<2x8xf32>
    %259 = tpu.matmul %258, %13, %cst_96 {dimension_numbers = #tpu.dot_dimension_numbers<[1], [0], [0], [1], [0, 0, 1, 1], [], []>} : vector<2x64xf32>, vector<64x8xf32>, vector<2x8xf32> -> vector<2x8xf32>
    %260 = vector.broadcast %17 : vector<1x8xf32> to vector<2x8xf32>
    %261 = arith.addf %259, %260 : vector<2x8xf32>
    %c5 = arith.constant 5 : index
    %c0_97 = arith.constant 0 : index
    %c0_98 = arith.constant 0 : index
    %262 = vector.load %arg10[%c5, %c0_97, %c0_98] : memref<8x2x8xf32, #tpu.memory_space<vmem>>, vector<1x2x8xf32>
    %263 = vector.shape_cast %262 : vector<1x2x8xf32> to vector<2x8xf32>
    %264 = vector.shape_cast %261 : vector<2x8xf32> to vector<1x2x8xf32>
    tpu.vector_store %arg10[%c5, %c0_97, %c0_98], %264 {strides = array<i32>} : memref<8x2x8xf32, #tpu.memory_space<vmem>>, vector<1x2x8xf32>,
    %cst_99 = arith.constant dense<0.000000e+00> : vector<2x32xf32>
    %265 = tpu.matmul %254, %4, %cst_99 {dimension_numbers = #tpu.dot_dimension_numbers<[1], [0], [0], [1], [0, 0, 1, 1], [], []>} : vector<2x32xf32>, vector<32x32xf32>, vector<2x32xf32> -> vector<2x32xf32>
    %cst_100 = arith.constant dense<0.000000e+00> : vector<2x32xf32>
    %266 = tpu.matmul %254, %6, %cst_100 {dimension_numbers = #tpu.dot_dimension_numbers<[1], [0], [0], [1], [0, 0, 1, 1], [], []>} : vector<2x32xf32>, vector<32x32xf32>, vector<2x32xf32> -> vector<2x32xf32>
    %cst_101 = arith.constant dense<0.000000e+00> : vector<2x32xf32>
    %267 = tpu.matmul %254, %8, %cst_101 {dimension_numbers = #tpu.dot_dimension_numbers<[1], [0], [0], [1], [0, 0, 1, 1], [], []>} : vector<2x32xf32>, vector<32x32xf32>, vector<2x32xf32> -> vector<2x32xf32>
    %268 = arith.addf %267, %11 : vector<2x32xf32>
    %269 = vector.extract_strided_slice %19 {offsets = [0, 6, 0], sizes = [2, 1, 32], strides = [1, 1, 1]} : vector<2x8x32xf32> to vector<2x1x32xf32>
    %270 = vector.shape_cast %269 : vector<2x1x32xf32> to vector<2x32xf32>
    %271 = vector.extract_strided_slice %21 {offsets = [0, 6, 0], sizes = [2, 1, 32], strides = [1, 1, 1]} : vector<2x8x32xf32> to vector<2x1x32xf32>
    %272 = vector.shape_cast %271 : vector<2x1x32xf32> to vector<2x32xf32>
    %273 = vector.extract_strided_slice %23 {offsets = [0, 6, 0], sizes = [2, 1, 32], strides = [1, 1, 1]} : vector<2x8x32xf32> to vector<2x1x32xf32>
    %274 = vector.shape_cast %273 : vector<2x1x32xf32> to vector<2x32xf32>
    %275 = arith.addf %270, %265 : vector<2x32xf32>
    %276 = arith.negf %275 : vector<2x32xf32>
    %277 = math.exp %276 : vector<2x32xf32>
    %cst_102 = arith.constant 1.000000e+00 : f32
    %278 = vector.broadcast %cst_102 : f32 to vector<2x32xf32>
    %279 = arith.addf %278, %277 : vector<2x32xf32>
    %280 = arith.divf %278, %279 : vector<2x32xf32>
    %281 = arith.addf %272, %266 : vector<2x32xf32>
    %282 = arith.negf %281 : vector<2x32xf32>
    %283 = math.exp %282 : vector<2x32xf32>
    %cst_103 = arith.constant 1.000000e+00 : f32
    %284 = vector.broadcast %cst_103 : f32 to vector<2x32xf32>
    %285 = arith.addf %284, %283 : vector<2x32xf32>
    %286 = arith.divf %284, %285 : vector<2x32xf32>
    %287 = arith.mulf %280, %268 : vector<2x32xf32>
    %288 = arith.addf %274, %287 : vector<2x32xf32>
    %289 = math.tanh %288 : vector<2x32xf32>
    %cst_104 = arith.constant 1.000000e+00 : f32
    %290 = vector.broadcast %cst_104 : f32 to vector<2x32xf32>
    %291 = arith.subf %290, %286 : vector<2x32xf32>
    %292 = arith.mulf %291, %289 : vector<2x32xf32>
    %293 = arith.mulf %286, %254 : vector<2x32xf32>
    %294 = arith.addf %292, %293 : vector<2x32xf32>
    %cst_105 = arith.constant dense<0.000000e+00> : vector<2x64xf32>
    %295 = tpu.matmul %294, %12, %cst_105 {dimension_numbers = #tpu.dot_dimension_numbers<[1], [0], [0], [1], [0, 0, 1, 1], [], []>} : vector<2x32xf32>, vector<32x64xf32>, vector<2x64xf32> -> vector<2x64xf32>
    %296 = arith.addf %295, %16 : vector<2x64xf32>
    %cst_106 = arith.constant 0.000000e+00 : f32
    %297 = vector.broadcast %cst_106 : f32 to vector<2x64xf32>
    %298 = arith.maximumf %296, %297 : vector<2x64xf32>
    %cst_107 = arith.constant dense<0.000000e+00> : vector<2x8xf32>
    %299 = tpu.matmul %298, %13, %cst_107 {dimension_numbers = #tpu.dot_dimension_numbers<[1], [0], [0], [1], [0, 0, 1, 1], [], []>} : vector<2x64xf32>, vector<64x8xf32>, vector<2x8xf32> -> vector<2x8xf32>
    %300 = vector.broadcast %17 : vector<1x8xf32> to vector<2x8xf32>
    %301 = arith.addf %299, %300 : vector<2x8xf32>
    %c6 = arith.constant 6 : index
    %c0_108 = arith.constant 0 : index
    %c0_109 = arith.constant 0 : index
    %302 = vector.load %arg10[%c6, %c0_108, %c0_109] : memref<8x2x8xf32, #tpu.memory_space<vmem>>, vector<1x2x8xf32>
    %303 = vector.shape_cast %302 : vector<1x2x8xf32> to vector<2x8xf32>
    %304 = vector.shape_cast %301 : vector<2x8xf32> to vector<1x2x8xf32>
    tpu.vector_store %arg10[%c6, %c0_108, %c0_109], %304 {strides = array<i32>} : memref<8x2x8xf32, #tpu.memory_space<vmem>>, vector<1x2x8xf32>,
    %cst_110 = arith.constant dense<0.000000e+00> : vector<2x32xf32>
    %305 = tpu.matmul %294, %4, %cst_110 {dimension_numbers = #tpu.dot_dimension_numbers<[1], [0], [0], [1], [0, 0, 1, 1], [], []>} : vector<2x32xf32>, vector<32x32xf32>, vector<2x32xf32> -> vector<2x32xf32>
    %cst_111 = arith.constant dense<0.000000e+00> : vector<2x32xf32>
    %306 = tpu.matmul %294, %6, %cst_111 {dimension_numbers = #tpu.dot_dimension_numbers<[1], [0], [0], [1], [0, 0, 1, 1], [], []>} : vector<2x32xf32>, vector<32x32xf32>, vector<2x32xf32> -> vector<2x32xf32>
    %cst_112 = arith.constant dense<0.000000e+00> : vector<2x32xf32>
    %307 = tpu.matmul %294, %8, %cst_112 {dimension_numbers = #tpu.dot_dimension_numbers<[1], [0], [0], [1], [0, 0, 1, 1], [], []>} : vector<2x32xf32>, vector<32x32xf32>, vector<2x32xf32> -> vector<2x32xf32>
    %308 = arith.addf %307, %11 : vector<2x32xf32>
    %309 = vector.extract_strided_slice %19 {offsets = [0, 7, 0], sizes = [2, 1, 32], strides = [1, 1, 1]} : vector<2x8x32xf32> to vector<2x1x32xf32>
    %310 = vector.shape_cast %309 : vector<2x1x32xf32> to vector<2x32xf32>
    %311 = vector.extract_strided_slice %21 {offsets = [0, 7, 0], sizes = [2, 1, 32], strides = [1, 1, 1]} : vector<2x8x32xf32> to vector<2x1x32xf32>
    %312 = vector.shape_cast %311 : vector<2x1x32xf32> to vector<2x32xf32>
    %313 = vector.extract_strided_slice %23 {offsets = [0, 7, 0], sizes = [2, 1, 32], strides = [1, 1, 1]} : vector<2x8x32xf32> to vector<2x1x32xf32>
    %314 = vector.shape_cast %313 : vector<2x1x32xf32> to vector<2x32xf32>
    %315 = arith.addf %310, %305 : vector<2x32xf32>
    %316 = arith.negf %315 : vector<2x32xf32>
    %317 = math.exp %316 : vector<2x32xf32>
    %cst_113 = arith.constant 1.000000e+00 : f32
    %318 = vector.broadcast %cst_113 : f32 to vector<2x32xf32>
    %319 = arith.addf %318, %317 : vector<2x32xf32>
    %320 = arith.divf %318, %319 : vector<2x32xf32>
    %321 = arith.addf %312, %306 : vector<2x32xf32>
    %322 = arith.negf %321 : vector<2x32xf32>
    %323 = math.exp %322 : vector<2x32xf32>
    %cst_114 = arith.constant 1.000000e+00 : f32
    %324 = vector.broadcast %cst_114 : f32 to vector<2x32xf32>
    %325 = arith.addf %324, %323 : vector<2x32xf32>
    %326 = arith.divf %324, %325 : vector<2x32xf32>
    %327 = arith.mulf %320, %308 : vector<2x32xf32>
    %328 = arith.addf %314, %327 : vector<2x32xf32>
    %329 = math.tanh %328 : vector<2x32xf32>
    %cst_115 = arith.constant 1.000000e+00 : f32
    %330 = vector.broadcast %cst_115 : f32 to vector<2x32xf32>
    %331 = arith.subf %330, %326 : vector<2x32xf32>
    %332 = arith.mulf %331, %329 : vector<2x32xf32>
    %333 = arith.mulf %326, %294 : vector<2x32xf32>
    %334 = arith.addf %332, %333 : vector<2x32xf32>
    %cst_116 = arith.constant dense<0.000000e+00> : vector<2x64xf32>
    %335 = tpu.matmul %334, %12, %cst_116 {dimension_numbers = #tpu.dot_dimension_numbers<[1], [0], [0], [1], [0, 0, 1, 1], [], []>} : vector<2x32xf32>, vector<32x64xf32>, vector<2x64xf32> -> vector<2x64xf32>
    %336 = arith.addf %335, %16 : vector<2x64xf32>
    %cst_117 = arith.constant 0.000000e+00 : f32
    %337 = vector.broadcast %cst_117 : f32 to vector<2x64xf32>
    %338 = arith.maximumf %336, %337 : vector<2x64xf32>
    %cst_118 = arith.constant dense<0.000000e+00> : vector<2x8xf32>
    %339 = tpu.matmul %338, %13, %cst_118 {dimension_numbers = #tpu.dot_dimension_numbers<[1], [0], [0], [1], [0, 0, 1, 1], [], []>} : vector<2x64xf32>, vector<64x8xf32>, vector<2x8xf32> -> vector<2x8xf32>
    %340 = vector.broadcast %17 : vector<1x8xf32> to vector<2x8xf32>
    %341 = arith.addf %339, %340 : vector<2x8xf32>
    %c7 = arith.constant 7 : index
    %c0_119 = arith.constant 0 : index
    %c0_120 = arith.constant 0 : index
    %342 = vector.load %arg10[%c7, %c0_119, %c0_120] : memref<8x2x8xf32, #tpu.memory_space<vmem>>, vector<1x2x8xf32>
    %343 = vector.shape_cast %342 : vector<1x2x8xf32> to vector<2x8xf32>
    %344 = vector.shape_cast %341 : vector<2x8xf32> to vector<1x2x8xf32>
    tpu.vector_store %arg10[%c7, %c0_119, %c0_120], %344 {strides = array<i32>} : memref<8x2x8xf32, #tpu.memory_space<vmem>>, vector<1x2x8xf32>,
    %c0_i32_121 = arith.constant 0 : i32
    %345 = arith.cmpi eq, %arg1, %c0_i32_121 : i32
    %346 = arith.extui %345 : i1 to i32
    %c0_i32_122 = arith.constant 0 : i32
    %347 = arith.cmpi ne, %346, %c0_i32_122 : i32
    scf.if %347 {
      %c0_125 = arith.constant 0 : index
      %c0_126 = arith.constant 0 : index
      %349 = vector.load %arg11[%c0_125, %c0_126] : memref<2x32xf32, #tpu.memory_space<vmem>>, vector<2x32xf32>
      tpu.vector_store %arg11[%c0_125, %c0_126], %334 {strides = array<i32>} : memref<2x32xf32, #tpu.memory_space<vmem>>, vector<2x32xf32>,
    } else {
    }
    %c0_123 = arith.constant 0 : index
    %c0_124 = arith.constant 0 : index
    %348 = vector.load %arg12[%c0_123, %c0_124] : memref<2x32xf32, #tpu.memory_space<vmem>>, vector<2x32xf32>
    tpu.vector_store %arg12[%c0_123, %c0_124], %334 {strides = array<i32>} : memref<2x32xf32, #tpu.memory_space<vmem>>, vector<2x32xf32>,
    return
  }
  func.func @transform_0(%arg0: i32, %arg1: i32) -> (i32, i32, i32, i32) {
    %c0_i32 = arith.constant 0 : i32
    %c0_i32_0 = arith.constant 0 : i32
    %c0_i32_1 = arith.constant 0 : i32
    return %c0_i32, %arg0, %arg1, %c0_i32_0 : i32, i32, i32, i32
  }
  func.func @transform_1(%arg0: i32, %arg1: i32) -> (i32, i32) {
    %c0_i32 = arith.constant 0 : i32
    %c0_i32_0 = arith.constant 0 : i32
    return %arg0, %c0_i32 : i32, i32
  }
  func.func @transform_2(%arg0: i32, %arg1: i32) -> (i32, i32, i32) {
    %c0_i32 = arith.constant 0 : i32
    %c0_i32_0 = arith.constant 0 : i32
    %c0_i32_1 = arith.constant 0 : i32
    %c0_i32_2 = arith.constant 0 : i32
    return %c0_i32, %c0_i32_0, %c0_i32_1 : i32, i32, i32
  }
  func.func @transform_3(%arg0: i32, %arg1: i32) -> (i32, i32) {
    %c0_i32 = arith.constant 0 : i32
    %c0_i32_0 = arith.constant 0 : i32
    %c0_i32_1 = arith.constant 0 : i32
    return %c0_i32, %c0_i32_0 : i32, i32
  }
  func.func @transform_4(%arg0: i32, %arg1: i32) -> (i32, i32) {
    %c0_i32 = arith.constant 0 : i32
    %c0_i32_0 = arith.constant 0 : i32
    %c0_i32_1 = arith.constant 0 : i32
    return %c0_i32, %c0_i32_0 : i32, i32
  }
  func.func @transform_5(%arg0: i32, %arg1: i32) -> (i32, i32) {
    %c0_i32 = arith.constant 0 : i32
    %c0_i32_0 = arith.constant 0 : i32
    %c0_i32_1 = arith.constant 0 : i32
    return %c0_i32, %c0_i32_0 : i32, i32
  }
  func.func @transform_6(%arg0: i32, %arg1: i32) -> (i32, i32) {
    %c0_i32 = arith.constant 0 : i32
    %c0_i32_0 = arith.constant 0 : i32
    %c0_i32_1 = arith.constant 0 : i32
    return %c0_i32, %c0_i32_0 : i32, i32
  }
  func.func @transform_7(%arg0: i32, %arg1: i32) -> (i32, i32) {
    %c0_i32 = arith.constant 0 : i32
    %c0_i32_0 = arith.constant 0 : i32
    %c0_i32_1 = arith.constant 0 : i32
    return %c0_i32, %c0_i32_0 : i32, i32
  }
  func.func @transform_8(%arg0: i32, %arg1: i32) -> (i32, i32, i32) {
    %c0_i32 = arith.constant 0 : i32
    %c0_i32_0 = arith.constant 0 : i32
    return %arg1, %arg0, %c0_i32 : i32, i32, i32
  }
  func.func @transform_9(%arg0: i32, %arg1: i32) -> (i32, i32) {
    %c0_i32 = arith.constant 0 : i32
    %c0_i32_0 = arith.constant 0 : i32
    return %arg0, %c0_i32 : i32, i32
  }
}

</mosaic_0001>

<llo_original>
// kernel: gru2fc_forward.2
$region0: #{gru2fc_forward.2}
  #allocation0 [shape = 'u32[]', space=smem, size = 0x4, offset = 0x4, fixed_abs, tag = 'smem constant byte address 0x4 - core index']
  #allocation1 [shape = 'u32[144,128]{1,0:T(1,128)}', space=vmem, size = 0x12000, scoped, tag = 'internal scratch']
  %s0 = inlined_call_operand.vmem [shape: f32[16,16], index: 0, kind: input, shape index: {}]
  %s1 = inlined_call_operand.hbm [shape: f32[3,16,32], index: 1, kind: input, shape index: {}]
  %s2 = inlined_call_operand.vmem [shape: f32[3,1,32], index: 2, kind: input, shape index: {}]
  %s3 = inlined_call_operand.vmem [shape: f32[3,16,32], index: 3, kind: output, shape index: {}]
  %s4 = sld [smem:[#allocation0]]
  $region26: #{gru2fc_forward.2} parent=0
    _
  %s6 = ssub.s32 1, %s4
  %s7 = scalar_select 0, %s6, %s4
  $region1: #{gru2fc_forward.2} parent=0
    #allocation2 [shape = 'u8[24576]{0}', space=vmem, size = 0x6000, scoped, tag = 'input window, operand 1, single buffered']
    #allocation3 [shape = 's32[1]{0}', space=sflag, size = 0x4, scoped, tag = 'scoped memory for gru2fc_forward.2']
    %8 = vsyncpa [#allocation3], 0
    // Predicated region
    $region2: #{gru2fc_forward.2} parent=1 // pred_check
      _
    $region3: #{gru2fc_forward.2} parent=1 // pred_check_branch
      %10 = sbr.rel (0) target = $region5
    $region4: #{gru2fc_forward.2} parent=1 // pred_region
      _
    $region5: #{gru2fc_forward.2} parent=1 // pred_fallthru
      _
    // Predicated region
    $region6: #{gru2fc_forward.2} parent=1 // pred_check
      _
    $region7: #{gru2fc_forward.2} parent=1 // pred_check_branch
      %12 = sbr.rel (0) target = $region9
    $region8: #{gru2fc_forward.2} parent=1 // pred_region
      %s14 = ssub.s32 768, 768
      %15 = vsyncadd [#allocation3], %s14
      %s16 = sshll.u32 [#allocation2], 4
      %s17 = int_to_ptr.vmem [resolvable:$true] %s16
      %22 = dma.hbm_to_vmem [thread:$0]  %s1, 768, %s17, [#allocation3], 128, 128, 8
    $region9: #{gru2fc_forward.2} parent=1 // pred_fallthru
      _
    // Predicated region
    $region10: #{gru2fc_forward.2} parent=1 // pred_check
      _
    $region11: #{gru2fc_forward.2} parent=1 // pred_check_branch
      %24 = sbr.rel (0) target = $region13
    $region12: #{gru2fc_forward.2} parent=1 // pred_region
      _
    $region13: #{gru2fc_forward.2} parent=1 // pred_fallthru
      _
    // Predicated region
    $region14: #{gru2fc_forward.2} parent=1 // pred_check
      _
    $region15: #{gru2fc_forward.2} parent=1 // pred_check_branch
      %26 = sbr.rel (0) target = $region17
    $region16: #{gru2fc_forward.2} parent=1 // pred_region
      %27 = dma.done [#allocation3], 768
    $region17: #{gru2fc_forward.2} parent=1 // pred_fallthru
      _
    %v28 = vld [vmem:[%s0] sm:$0xff]
    %v29 = vld [vmem:[%s0 + $0x8] sm:$0xff]
    %v30 = vld [vmem:[#allocation2] sm:$0xff]
    %v31 = vld [vmem:[#allocation2 + $0x8] sm:$0xff]
    %v32 = vld [vmem:[%s2] sm:$0x1]
    %v34 = vlaneseq
    %v35 = vshrl.u32 %v34, 7
    %v36 = vsub.s32 0, %v35
    %v37 = vrot.slane %v32, %v36
    %vm39 = vcmask 130048
    %v41 = vsel %vm39, %v28, 0
    %v44 = vsel %vm39, %v29, 0
    %46 = vmatprep.subr.mxu0 0.0
    %47 = vmatpush1.msra.mxu0 %v30
    %48 = vmatprep.subr.mxu0 0.0
    %49 = vmatpush1.msra.mxu0 %v31
    %50 = vmatprep.subr.mxu0 0.0
    %51 = vmatpush1.msra.mxu0 0.0
    %52 = vmatprep.subr.mxu0 0.0
    %53 = vmatpush1.msra.mxu0 0.0
    %54 = vmatprep.subr.mxu0 0.0
    %55 = vmatpush1.msra.mxu0 0.0
    %56 = vmatprep.subr.mxu0 0.0
    %57 = vmatpush1.msra.mxu0 0.0
    %58 = vmatprep.subr.mxu0 0.0
    %59 = vmatpush1.msra.mxu0 0.0
    %60 = vmatprep.subr.mxu0 0.0
    %61 = vmatpush1.msra.mxu0 0.0
    %62 = vmatprep.subr.mxu0 0.0
    %63 = vmatpush1.msra.mxu0 0.0
    %64 = vmatprep.subr.mxu0 0.0
    %65 = vmatpush1.msra.mxu0 0.0
    %66 = vmatprep.subr.mxu0 0.0
    %67 = vmatpush1.msra.mxu0 0.0
    %68 = vmatprep.subr.mxu0 0.0
    %69 = vmatpush1.msra.mxu0 0.0
    %70 = vmatprep.subr.mxu0 0.0
    %71 = vmatpush1.msra.mxu0 0.0
    %72 = vmatprep.subr.mxu0 0.0
    %73 = vmatpush1.msra.mxu0 0.0
    %74 = vmatprep.subr.mxu0 0.0
    %75 = vmatpush1.msra.mxu0 0.0
    %76 = vmatprep.subr.mxu0 0.0
    %77 = vmatpush1.msra.mxu0 0.0
    %78 = vmatprep.subr.mxu0 0.0
    %79 = vmatpush1.msra.mxu0 0.0
    %80 = vmatprep.subr.mxu0 0.0
    %81 = vmatpush1.msra.mxu0 0.0
    %82 = vmatprep.subr.mxu0 0.0
    %83 = vmatpush1.msra.mxu0 0.0
    %84 = vmatprep.subr.mxu0 0.0
    %85 = vmatpush1.msra.mxu0 0.0
    %86 = vmatprep.subr.mxu0 0.0
    %87 = vmatpush1.msra.mxu0 0.0
    %88 = vmatprep.subr.mxu0 0.0
    %89 = vmatpush1.msra.mxu0 0.0
    %90 = vmatprep.subr.mxu0 0.0
    %91 = vmatpush1.msra.mxu0 0.0
    %92 = vmatprep.subr.mxu0 0.0
    %93 = vmatpush1.msra.mxu0 0.0
    %94 = vmatprep.subr.mxu0 0.0
    %95 = vmatpush1.msra.mxu0 0.0
    %96 = vmatprep.subr.mxu0 0.0
    %97 = vmatpush1.msra.mxu0 0.0
    %98 = vmatprep.subr.mxu0 0.0
    %99 = vmatpush1.msra.mxu0 0.0
    %100 = vmatprep.subr.mxu0 0.0
    %101 = vmatpush1.msra.mxu0 0.0
    %102 = vmatprep.subr.mxu0 0.0
    %103 = vmatpush1.msra.mxu0 0.0
    %104 = vmatprep.subr.mxu0 0.0
    %105 = vmatpush1.msra.mxu0 0.0
    %106 = vmatprep.subr.mxu0 0.0
    %107 = vmatpush1.msra.mxu0 0.0
    %108 = vmatprep.subr.mxu0 0.0
    %109 = vmatpush1.msra.mxu0 0.0
    %110 = vmatprep.mubr.f32.mxu0 0.0
    %111 = vmatmul.mubr.f32.gmra.mrb[0].mxu0 %v41
    %v112 = vpop.f32.mrb[0].mxu0
    %v113 = vadd.f32 %v37, %v112
    %v114 = vpop.f32.mrb[0].mxu0
    %115 = vmatprep.mubr.f32.mxu0 0.0
    %116 = vmatmul.mubr.f32.gmra.mrb[0].mxu0 %v44
    %v117 = vpop.f32.mrb[0].mxu0
    %v118 = vadd.f32 %v37, %v117
    %v119 = vpop.f32.mrb[0].mxu0
    %120 = vdwg.mxu0
    %vm121 = vcmask 261120
    %122 = vst.msk [vmem:[%s3] sm:$0xff] %vm121, %v113
    %123 = vst.msk [vmem:[%s3 + $0x8] sm:$0xff] %vm121, %v118
    %s124 = scalar_lea.vmem [#allocation2], 16
    %v125 = vld [vmem:[%s124] sm:$0xff]
    %v126 = vld [vmem:[%s124 + $0x8] sm:$0xff]
    %s127 = scalar_lea.vmem %s2, 1
    %v128 = vld [vmem:[%s127] sm:$0x1]
    %v130 = vlaneseq
    %v131 = vshrl.u32 %v130, 7
    %v132 = vsub.s32 0, %v131
    %v133 = vrot.slane %v128, %v132
    %135 = vmatprep.subr.mxu0 0.0
    %136 = vmatpush1.msra.mxu0 %v125
    %137 = vmatprep.subr.mxu0 0.0
    %138 = vmatpush1.msra.mxu0 %v126
    %139 = vmatprep.subr.mxu0 0.0
    %140 = vmatpush1.msra.mxu0 0.0
    %141 = vmatprep.subr.mxu0 0.0
    %142 = vmatpush1.msra.mxu0 0.0
    %143 = vmatprep.subr.mxu0 0.0
    %144 = vmatpush1.msra.mxu0 0.0
    %145 = vmatprep.subr.mxu0 0.0
    %146 = vmatpush1.msra.mxu0 0.0
    %147 = vmatprep.subr.mxu0 0.0
    %148 = vmatpush1.msra.mxu0 0.0
    %149 = vmatprep.subr.mxu0 0.0
    %150 = vmatpush1.msra.mxu0 0.0
    %151 = vmatprep.subr.mxu0 0.0
    %152 = vmatpush1.msra.mxu0 0.0
    %153 = vmatprep.subr.mxu0 0.0
    %154 = vmatpush1.msra.mxu0 0.0
    %155 = vmatprep.subr.mxu0 0.0
    %156 = vmatpush1.msra.mxu0 0.0
    %157 = vmatprep.subr.mxu0 0.0
    %158 = vmatpush1.msra.mxu0 0.0
    %159 = vmatprep.subr.mxu0 0.0
    %160 = vmatpush1.msra.mxu0 0.0
    %161 = vmatprep.subr.mxu0 0.0
    %162 = vmatpush1.msra.mxu0 0.0
    %163 = vmatprep.subr.mxu0 0.0
    %164 = vmatpush1.msra.mxu0 0.0
    %165 = vmatprep.subr.mxu0 0.0
    %166 = vmatpush1.msra.mxu0 0.0
    %167 = vmatprep.subr.mxu0 0.0
    %168 = vmatpush1.msra.mxu0 0.0
    %169 = vmatprep.subr.mxu0 0.0
    %170 = vmatpush1.msra.mxu0 0.0
    %171 = vmatprep.subr.mxu0 0.0
    %172 = vmatpush1.msra.mxu0 0.0
    %173 = vmatprep.subr.mxu0 0.0
    %174 = vmatpush1.msra.mxu0 0.0
    %175 = vmatprep.subr.mxu0 0.0
    %176 = vmatpush1.msra.mxu0 0.0
    %177 = vmatprep.subr.mxu0 0.0
    %178 = vmatpush1.msra.mxu0 0.0
    %179 = vmatprep.subr.mxu0 0.0
    %180 = vmatpush1.msra.mxu0 0.0
    %181 = vmatprep.subr.mxu0 0.0
    %182 = vmatpush1.msra.mxu0 0.0
    %183 = vmatprep.subr.mxu0 0.0
    %184 = vmatpush1.msra.mxu0 0.0
    %185 = vmatprep.subr.mxu0 0.0
    %186 = vmatpush1.msra.mxu0 0.0
    %187 = vmatprep.subr.mxu0 0.0
    %188 = vmatpush1.msra.mxu0 0.0
    %189 = vmatprep.subr.mxu0 0.0
    %190 = vmatpush1.msra.mxu0 0.0
    %191 = vmatprep.subr.mxu0 0.0
    %192 = vmatpush1.msra.mxu0 0.0
    %193 = vmatprep.subr.mxu0 0.0
    %194 = vmatpush1.msra.mxu0 0.0
    %195 = vmatprep.subr.mxu0 0.0
    %196 = vmatpush1.msra.mxu0 0.0
    %197 = vmatprep.subr.mxu0 0.0
    %198 = vmatpush1.msra.mxu0 0.0
    %199 = vmatprep.mubr.f32.mxu0 0.0
    %200 = vmatmul.mubr.f32.gmra.mrb[0].mxu0 %v41
    %v201 = vpop.f32.mrb[0].mxu0
    %v202 = vadd.f32 %v133, %v201
    %v203 = vpop.f32.mrb[0].mxu0
    %204 = vmatprep.mubr.f32.mxu0 0.0
    %205 = vmatmul.mubr.f32.gmra.mrb[0].mxu0 %v44
    %v206 = vpop.f32.mrb[0].mxu0
    %v207 = vadd.f32 %v133, %v206
    %v208 = vpop.f32.mrb[0].mxu0
    %209 = vdwg.mxu0
    %s210 = scalar_lea.vmem %s3, 16
    %211 = vst.msk [vmem:[%s210] sm:$0xff] %vm121, %v202
    %212 = vst.msk [vmem:[%s210 + $0x8] sm:$0xff] %vm121, %v207
    %s213 = scalar_lea.vmem [#allocation2], 32
    %v214 = vld [vmem:[%s213] sm:$0xff]
    %v215 = vld [vmem:[%s213 + $0x8] sm:$0xff]
    %s216 = scalar_lea.vmem %s2, 2
    %v217 = vld [vmem:[%s216] sm:$0x1]
    %v219 = vlaneseq
    %v220 = vshrl.u32 %v219, 7
    %v221 = vsub.s32 0, %v220
    %v222 = vrot.slane %v217, %v221
    %224 = vmatprep.subr.mxu0 0.0
    %225 = vmatpush1.msra.mxu0 %v214
    %226 = vmatprep.subr.mxu0 0.0
    %227 = vmatpush1.msra.mxu0 %v215
    %228 = vmatprep.subr.mxu0 0.0
    %229 = vmatpush1.msra.mxu0 0.0
    %230 = vmatprep.subr.mxu0 0.0
    %231 = vmatpush1.msra.mxu0 0.0
    %232 = vmatprep.subr.mxu0 0.0
    %233 = vmatpush1.msra.mxu0 0.0
    %234 = vmatprep.subr.mxu0 0.0
    %235 = vmatpush1.msra.mxu0 0.0
    %236 = vmatprep.subr.mxu0 0.0
    %237 = vmatpush1.msra.mxu0 0.0
    %238 = vmatprep.subr.mxu0 0.0
    %239 = vmatpush1.msra.mxu0 0.0
    %240 = vmatprep.subr.mxu0 0.0
    %241 = vmatpush1.msra.mxu0 0.0
    %242 = vmatprep.subr.mxu0 0.0
    %243 = vmatpush1.msra.mxu0 0.0
    %244 = vmatprep.subr.mxu0 0.0
    %245 = vmatpush1.msra.mxu0 0.0
    %246 = vmatprep.subr.mxu0 0.0
    %247 = vmatpush1.msra.mxu0 0.0
    %248 = vmatprep.subr.mxu0 0.0
    %249 = vmatpush1.msra.mxu0 0.0
    %250 = vmatprep.subr.mxu0 0.0
    %251 = vmatpush1.msra.mxu0 0.0
    %252 = vmatprep.subr.mxu0 0.0
    %253 = vmatpush1.msra.mxu0 0.0
    %254 = vmatprep.subr.mxu0 0.0
    %255 = vmatpush1.msra.mxu0 0.0
    %256 = vmatprep.subr.mxu0 0.0
    %257 = vmatpush1.msra.mxu0 0.0
    %258 = vmatprep.subr.mxu0 0.0
    %259 = vmatpush1.msra.mxu0 0.0
    %260 = vmatprep.subr.mxu0 0.0
    %261 = vmatpush1.msra.mxu0 0.0
    %262 = vmatprep.subr.mxu0 0.0
    %263 = vmatpush1.msra.mxu0 0.0
    %264 = vmatprep.subr.mxu0 0.0
    %265 = vmatpush1.msra.mxu0 0.0
    %266 = vmatprep.subr.mxu0 0.0
    %267 = vmatpush1.msra.mxu0 0.0
    %268 = vmatprep.subr.mxu0 0.0
    %269 = vmatpush1.msra.mxu0 0.0
    %270 = vmatprep.subr.mxu0 0.0
    %271 = vmatpush1.msra.mxu0 0.0
    %272 = vmatprep.subr.mxu0 0.0
    %273 = vmatpush1.msra.mxu0 0.0
    %274 = vmatprep.subr.mxu0 0.0
    %275 = vmatpush1.msra.mxu0 0.0
    %276 = vmatprep.subr.mxu0 0.0
    %277 = vmatpush1.msra.mxu0 0.0
    %278 = vmatprep.subr.mxu0 0.0
    %279 = vmatpush1.msra.mxu0 0.0
    %280 = vmatprep.subr.mxu0 0.0
    %281 = vmatpush1.msra.mxu0 0.0
    %282 = vmatprep.subr.mxu0 0.0
    %283 = vmatpush1.msra.mxu0 0.0
    %284 = vmatprep.subr.mxu0 0.0
    %285 = vmatpush1.msra.mxu0 0.0
    %286 = vmatprep.subr.mxu0 0.0
    %287 = vmatpush1.msra.mxu0 0.0
    %288 = vmatprep.mubr.f32.mxu0 0.0
    %289 = vmatmul.mubr.f32.gmra.mrb[0].mxu0 %v41
    %v290 = vpop.f32.mrb[0].mxu0
    %v291 = vadd.f32 %v222, %v290
    %v292 = vpop.f32.mrb[0].mxu0
    %293 = vmatprep.mubr.f32.mxu0 0.0
    %294 = vmatmul.mubr.f32.gmra.mrb[0].mxu0 %v44
    %v295 = vpop.f32.mrb[0].mxu0
    %v296 = vadd.f32 %v222, %v295
    %v297 = vpop.f32.mrb[0].mxu0
    %298 = vdwg.mxu0
    %s299 = scalar_lea.vmem %s3, 32
    %300 = vst.msk [vmem:[%s299] sm:$0xff] %vm121, %v291
    %301 = vst.msk [vmem:[%s299 + $0x8] sm:$0xff] %vm121, %v296
    // Predicated region
    $region18: #{gru2fc_forward.2} parent=1 // pred_check
      _
    $region19: #{gru2fc_forward.2} parent=1 // pred_check_branch
      %303 = sbr.rel (0) target = $region21
    $region20: #{gru2fc_forward.2} parent=1 // pred_region
      _
    $region21: #{gru2fc_forward.2} parent=1 // pred_fallthru
      _
    // Predicated region
    $region22: #{gru2fc_forward.2} parent=1 // pred_check
      _
    $region23: #{gru2fc_forward.2} parent=1 // pred_check_branch
      %305 = sbr.rel (0) target = $region25
    $region24: #{gru2fc_forward.2} parent=1 // pred_region
      _
    $region25: #{gru2fc_forward.2} parent=1 // pred_fallthru
      _
    %306 = vsyncpa [#allocation3], 1

// kernel: gru2fc_forward.3
$region0: #{gru2fc_forward.3}
  #allocation0 [shape = 'u32[]', space=smem, size = 0x4, offset = 0x4, fixed_abs, tag = 'smem constant byte address 0x4 - core index']
  #allocation1 [shape = 'u32[144,128]{1,0:T(1,128)}', space=vmem, size = 0x12000, scoped, tag = 'internal scratch']
  #allocation2 [shape = 'f32[2,32]{1,0:T(2,128)}', space=vmem, size = 0x400, scoped, tag = 'scratch operand']
  %s0 = inlined_call_operand.vmem [shape: f32[3,2,8,32], index: 0, kind: input, shape index: {}]
  %s1 = inlined_call_operand.vmem [shape: f32[2,32], index: 1, kind: input, shape index: {}]
  %s2 = inlined_call_operand.vmem [shape: f32[3,32,32], index: 2, kind: input, shape index: {}]
  %s3 = inlined_call_operand.vmem [shape: f32[1,32], index: 3, kind: input, shape index: {}]
  %s4 = inlined_call_operand.vmem [shape: f32[32,64], index: 4, kind: input, shape index: {}]
  %s5 = inlined_call_operand.vmem [shape: f32[1,64], index: 5, kind: input, shape index: {}]
  %s6 = inlined_call_operand.vmem [shape: f32[64,8], index: 6, kind: input, shape index: {}]
  %s7 = inlined_call_operand.vmem [shape: f32[1,8], index: 7, kind: input, shape index: {}]
  %s8 = inlined_call_operand.vmem [shape: f32[8,2,8], index: 8, kind: output, shape index: {0}]
  %s9 = inlined_call_operand.hbm [shape: f32[2,32], index: 9, kind: output, shape index: {1}]
  %10 = xla_tuple %s8, %s9
  %s11 = sld [smem:[#allocation0]]
  $region58: #{gru2fc_forward.3} parent=0
    _
  %s13 = ssub.s32 1, %s11
  %s14 = scalar_select 0, %s13, %s11
  $region1: #{gru2fc_forward.3} parent=0
    #allocation3 [shape = 'u8[1024]{0}', space=vmem, size = 0x400, scoped, tag = 'output window, operand 1, single buffered']
    #allocation4 [shape = 's32[1]{0}', space=sflag, size = 0x4, scoped, tag = 'scoped memory for gru2fc_forward.3']
    %15 = vsyncpa [#allocation4], 0
    // Predicated region
    $region2: #{gru2fc_forward.3} parent=1 // pred_check
      _
    $region3: #{gru2fc_forward.3} parent=1 // pred_check_branch
      %17 = sbr.rel (0) target = $region5
    $region4: #{gru2fc_forward.3} parent=1 // pred_region
      _
    $region5: #{gru2fc_forward.3} parent=1 // pred_fallthru
      _
    // Predicated region
    $region6: #{gru2fc_forward.3} parent=1 // pred_check
      _
    $region7: #{gru2fc_forward.3} parent=1 // pred_check_branch
      %19 = sbr.rel (0) target = $region9
    $region8: #{gru2fc_forward.3} parent=1 // pred_region
      _
    $region9: #{gru2fc_forward.3} parent=1 // pred_fallthru
      _
    // Predicated region
    $region10: #{gru2fc_forward.3} parent=1 // pred_check
      _
    $region11: #{gru2fc_forward.3} parent=1 // pred_check_branch
      %21 = sbr.rel (0) target = $region13
    $region12: #{gru2fc_forward.3} parent=1 // pred_region
      _
    $region13: #{gru2fc_forward.3} parent=1 // pred_fallthru
      _
    // Predicated region
    $region14: #{gru2fc_forward.3} parent=1 // pred_check
      _
    $region15: #{gru2fc_forward.3} parent=1 // pred_check_branch
      %23 = sbr.rel (0) target = $region17
    $region16: #{gru2fc_forward.3} parent=1 // pred_region
      _
    $region17: #{gru2fc_forward.3} parent=1 // pred_fallthru
      _
    // Predicated region
    $region18: #{gru2fc_forward.3} parent=1 // pred_check
      _
    $region19: #{gru2fc_forward.3} parent=1 // pred_check_branch
      %25 = sbr.rel (0) target = $region21
    $region20: #{gru2fc_forward.3} parent=1 // pred_region
      _
    $region21: #{gru2fc_forward.3} parent=1 // pred_fallthru
      _
    // Predicated region
    $region22: #{gru2fc_forward.3} parent=1 // pred_check
      _
    $region23: #{gru2fc_forward.3} parent=1 // pred_check_branch
      %27 = sbr.rel (0) target = $region25
    $region24: #{gru2fc_forward.3} parent=1 // pred_region
      _
    $region25: #{gru2fc_forward.3} parent=1 // pred_fallthru
      _
    // Predicated region
    $region26: #{gru2fc_forward.3} parent=1 // pred_check
      _
    $region27: #{gru2fc_forward.3} parent=1 // pred_check_branch
      %29 = sbr.rel (0) target = $region29
    $region28: #{gru2fc_forward.3} parent=1 // pred_region
      _
    $region29: #{gru2fc_forward.3} parent=1 // pred_fallthru
      _
    // Predicated region
    $region30: #{gru2fc_forward.3} parent=1 // pred_check
      _
    $region31: #{gru2fc_forward.3} parent=1 // pred_check_branch
      %31 = sbr.rel (0) target = $region33
    $region32: #{gru2fc_forward.3} parent=1 // pred_region
      _
    $region33: #{gru2fc_forward.3} parent=1 // pred_fallthru
      _
    %p32 = scmp.eq.s32.totalorder 0, 0
    // Predicated region
    $region34: #{gru2fc_forward.3} parent=1 // pred_check
      %p33 = pneg %p32
    $region35: #{gru2fc_forward.3} parent=1 // pred_check_branch
      %35 = sbr.rel (%p33) target = $region37
    $region36: #{gru2fc_forward.3} parent=1 // pred_region
      %v36 = vld [vmem:[%s1] sm:$0x3]
      %vm37 = vcmask 254976
      %38 = vst.msk [vmem:[#allocation2] sm:$0x3] %vm37, %v36
    $region37: #{gru2fc_forward.3} parent=1 // pred_fallthru
      _
    %v39 = vld [vmem:[%s2] sm:$0xff]
    %v40 = vld [vmem:[%s2 + $0x8] sm:$0xff]
    %v41 = vld [vmem:[%s2 + $0x10] sm:$0xff]
    %v42 = vld [vmem:[%s2 + $0x18] sm:$0xff]
    %s43 = scalar_lea.vmem %s2, 32
    %v44 = vld [vmem:[%s43] sm:$0xff]
    %v45 = vld [vmem:[%s43 + $0x8] sm:$0xff]
    %v46 = vld [vmem:[%s43 + $0x10] sm:$0xff]
    %v47 = vld [vmem:[%s43 + $0x18] sm:$0xff]
    %s48 = scalar_lea.vmem %s2, 64
    %v49 = vld [vmem:[%s48] sm:$0xff]
    %v50 = vld [vmem:[%s48 + $0x8] sm:$0xff]
    %v51 = vld [vmem:[%s48 + $0x10] sm:$0xff]
    %v52 = vld [vmem:[%s48 + $0x18] sm:$0xff]
    %v53 = vld [vmem:[%s3] sm:$0x1]
    %v55 = vlaneseq
    %v56 = vshrl.u32 %v55, 7
    %v57 = vsub.s32 0, %v56
    %v58 = vrot.slane %v53, %v57
    %v60 = vld [vmem:[%s4] sm:$0xff]
    %v61 = vld [vmem:[%s4 + $0x8] sm:$0xff]
    %v62 = vld [vmem:[%s4 + $0x10] sm:$0xff]
    %v63 = vld [vmem:[%s4 + $0x18] sm:$0xff]
    %v64 = vld [vmem:[%s6] sm:$0xff]
    %v65 = vld [vmem:[%s6 + $0x8] sm:$0xff]
    %v66 = vld [vmem:[%s6 + $0x10] sm:$0xff]
    %v67 = vld [vmem:[%s6 + $0x18] sm:$0xff]
    %v68 = vld [vmem:[%s6 + $0x20] sm:$0xff]
    %v69 = vld [vmem:[%s6 + $0x28] sm:$0xff]
    %v70 = vld [vmem:[%s6 + $0x30] sm:$0xff]
    %v71 = vld [vmem:[%s6 + $0x38] sm:$0xff]
    %v72 = vld [vmem:[%s5] sm:$0x1]
    %v74 = vlaneseq
    %v75 = vshrl.u32 %v74, 7
    %v76 = vsub.s32 0, %v75
    %v77 = vrot.slane %v72, %v76
    %v79 = vld [vmem:[%s7] sm:$0x1]
    %v80 = vld [vmem:[%s0] sm:$0xff]
    %v81 = vld [vmem:[%s0 + $0x8] sm:$0xff]
    %s82 = scalar_lea.vmem %s0, 16
    %v83 = vld [vmem:[%s82] sm:$0xff]
    %v84 = vld [vmem:[%s82 + $0x8] sm:$0xff]
    %s85 = scalar_lea.vmem %s0, 32
    %v86 = vld [vmem:[%s85] sm:$0xff]
    %v87 = vld [vmem:[%s85 + $0x8] sm:$0xff]
    %v88 = vld [vmem:[#allocation2] sm:$0x3]
    %vm89 = vcmask 261120
    %v91 = vsel %vm89, %v88, 0
    %93 = vmatprep.subr.mxu0 0.0
    %94 = vmatpush1.msra.mxu0 %v39
    %95 = vmatprep.subr.mxu0 0.0
    %96 = vmatpush1.msra.mxu0 %v40
    %97 = vmatprep.subr.mxu0 0.0
    %98 = vmatpush1.msra.mxu0 %v41
    %99 = vmatprep.subr.mxu0 0.0
    %100 = vmatpush1.msra.mxu0 %v42
    %101 = vmatprep.subr.mxu0 0.0
    %102 = vmatpush1.msra.mxu0 0.0
    %103 = vmatprep.subr.mxu0 0.0
    %104 = vmatpush1.msra.mxu0 0.0
    %105 = vmatprep.subr.mxu0 0.0
    %106 = vmatpush1.msra.mxu0 0.0
    %107 = vmatprep.subr.mxu0 0.0
    %108 = vmatpush1.msra.mxu0 0.0
    %109 = vmatprep.subr.mxu0 0.0
    %110 = vmatpush1.msra.mxu0 0.0
    %111 = vmatprep.subr.mxu0 0.0
    %112 = vmatpush1.msra.mxu0 0.0
    %113 = vmatprep.subr.mxu0 0.0
    %114 = vmatpush1.msra.mxu0 0.0
    %115 = vmatprep.subr.mxu0 0.0
    %116 = vmatpush1.msra.mxu0 0.0
    %117 = vmatprep.subr.mxu0 0.0
    %118 = vmatpush1.msra.mxu0 0.0
    %119 = vmatprep.subr.mxu0 0.0
    %120 = vmatpush1.msra.mxu0 0.0
    %121 = vmatprep.subr.mxu0 0.0
    %122 = vmatpush1.msra.mxu0 0.0
    %123 = vmatprep.subr.mxu0 0.0
    %124 = vmatpush1.msra.mxu0 0.0
    %125 = vmatprep.subr.mxu0 0.0
    %126 = vmatpush1.msra.mxu0 0.0
    %127 = vmatprep.subr.mxu0 0.0
    %128 = vmatpush1.msra.mxu0 0.0
    %129 = vmatprep.subr.mxu0 0.0
    %130 = vmatpush1.msra.mxu0 0.0
    %131 = vmatprep.subr.mxu0 0.0
    %132 = vmatpush1.msra.mxu0 0.0
    %133 = vmatprep.subr.mxu0 0.0
    %134 = vmatpush1.msra.mxu0 0.0
    %135 = vmatprep.subr.mxu0 0.0
    %136 = vmatpush1.msra.mxu0 0.0
    %137 = vmatprep.subr.mxu0 0.0
    %138 = vmatpush1.msra.mxu0 0.0
    %139 = vmatprep.subr.mxu0 0.0
    %140 = vmatpush1.msra.mxu0 0.0
    %141 = vmatprep.subr.mxu0 0.0
    %142 = vmatpush1.msra.mxu0 0.0
    %143 = vmatprep.subr.mxu0 0.0
    %144 = vmatpush1.msra.mxu0 0.0
    %145 = vmatprep.subr.mxu0 0.0
    %146 = vmatpush1.msra.mxu0 0.0
    %147 = vmatprep.subr.mxu0 0.0
    %148 = vmatpush1.msra.mxu0 0.0
    %149 = vmatprep.subr.mxu0 0.0
    %150 = vmatpush1.msra.mxu0 0.0
    %151 = vmatprep.subr.mxu0 0.0
    %152 = vmatpush1.msra.mxu0 0.0
    %153 = vmatprep.subr.mxu0 0.0
    %154 = vmatpush1.msra.mxu0 0.0
    %155 = vmatprep.subr.mxu0 0.0
    %156 = vmatpush1.msra.mxu0 0.0
    %157 = vmatprep.mubr.f32.mxu0 0.0
    %158 = vmatmul.mubr.f32.gmra.mrb[0].mxu0 %v91
    %v159 = vpop.f32.mrb[0].mxu0
    %v160 = vadd.f32 0.0, %v159
    %v161 = vpop.f32.mrb[0].mxu0
    %162 = vdwg.mxu0
    %163 = vmatprep.subr.mxu0 0.0
    %164 = vmatpush1.msra.mxu0 %v44
    %165 = vmatprep.subr.mxu0 0.0
    %166 = vmatpush1.msra.mxu0 %v45
    %167 = vmatprep.subr.mxu0 0.0
    %168 = vmatpush1.msra.mxu0 %v46
    %169 = vmatprep.subr.mxu0 0.0
    %170 = vmatpush1.msra.mxu0 %v47
    %171 = vmatprep.subr.mxu0 0.0
    %172 = vmatpush1.msra.mxu0 0.0
    %173 = vmatprep.subr.mxu0 0.0
    %174 = vmatpush1.msra.mxu0 0.0
    %175 = vmatprep.subr.mxu0 0.0
    %176 = vmatpush1.msra.mxu0 0.0
    %177 = vmatprep.subr.mxu0 0.0
    %178 = vmatpush1.msra.mxu0 0.0
    %179 = vmatprep.subr.mxu0 0.0
    %180 = vmatpush1.msra.mxu0 0.0
    %181 = vmatprep.subr.mxu0 0.0
    %182 = vmatpush1.msra.mxu0 0.0
    %183 = vmatprep.subr.mxu0 0.0
    %184 = vmatpush1.msra.mxu0 0.0
    %185 = vmatprep.subr.mxu0 0.0
    %186 = vmatpush1.msra.mxu0 0.0
    %187 = vmatprep.subr.mxu0 0.0
    %188 = vmatpush1.msra.mxu0 0.0
    %189 = vmatprep.subr.mxu0 0.0
    %190 = vmatpush1.msra.mxu0 0.0
    %191 = vmatprep.subr.mxu0 0.0
    %192 = vmatpush1.msra.mxu0 0.0
    %193 = vmatprep.subr.mxu0 0.0
    %194 = vmatpush1.msra.mxu0 0.0
    %195 = vmatprep.subr.mxu0 0.0
    %196 = vmatpush1.msra.mxu0 0.0
    %197 = vmatprep.subr.mxu0 0.0
    %198 = vmatpush1.msra.mxu0 0.0
    %199 = vmatprep.subr.mxu0 0.0
    %200 = vmatpush1.msra.mxu0 0.0
    %201 = vmatprep.subr.mxu0 0.0
    %202 = vmatpush1.msra.mxu0 0.0
    %203 = vmatprep.subr.mxu0 0.0
    %204 = vmatpush1.msra.mxu0 0.0
    %205 = vmatprep.subr.mxu0 0.0
    %206 = vmatpush1.msra.mxu0 0.0
    %207 = vmatprep.subr.mxu0 0.0
    %208 = vmatpush1.msra.mxu0 0.0
    %209 = vmatprep.subr.mxu0 0.0
    %210 = vmatpush1.msra.mxu0 0.0
    %211 = vmatprep.subr.mxu0 0.0
    %212 = vmatpush1.msra.mxu0 0.0
    %213 = vmatprep.subr.mxu0 0.0
    %214 = vmatpush1.msra.mxu0 0.0
    %215 = vmatprep.subr.mxu0 0.0
    %216 = vmatpush1.msra.mxu0 0.0
    %217 = vmatprep.subr.mxu0 0.0
    %218 = vmatpush1.msra.mxu0 0.0
    %219 = vmatprep.subr.mxu0 0.0
    %220 = vmatpush1.msra.mxu0 0.0
    %221 = vmatprep.subr.mxu0 0.0
    %222 = vmatpush1.msra.mxu0 0.0
    %223 = vmatprep.subr.mxu0 0.0
    %224 = vmatpush1.msra.mxu0 0.0
    %225 = vmatprep.subr.mxu0 0.0
    %226 = vmatpush1.msra.mxu0 0.0
    %227 = vmatprep.mubr.f32.mxu0 0.0
    %228 = vmatmul.mubr.f32.gmra.mrb[0].mxu0 %v91
    %v229 = vpop.f32.mrb[0].mxu0
    %v230 = vadd.f32 0.0, %v229
    %v231 = vpop.f32.mrb[0].mxu0
    %232 = vdwg.mxu0
    %233 = vmatprep.subr.mxu0 0.0
    %234 = vmatpush1.msra.mxu0 %v49
    %235 = vmatprep.subr.mxu0 0.0
    %236 = vmatpush1.msra.mxu0 %v50
    %237 = vmatprep.subr.mxu0 0.0
    %238 = vmatpush1.msra.mxu0 %v51
    %239 = vmatprep.subr.mxu0 0.0
    %240 = vmatpush1.msra.mxu0 %v52
    %241 = vmatprep.subr.mxu0 0.0
    %242 = vmatpush1.msra.mxu0 0.0
    %243 = vmatprep.subr.mxu0 0.0
    %244 = vmatpush1.msra.mxu0 0.0
    %245 = vmatprep.subr.mxu0 0.0
    %246 = vmatpush1.msra.mxu0 0.0
    %247 = vmatprep.subr.mxu0 0.0
    %248 = vmatpush1.msra.mxu0 0.0
    %249 = vmatprep.subr.mxu0 0.0
    %250 = vmatpush1.msra.mxu0 0.0
    %251 = vmatprep.subr.mxu0 0.0
    %252 = vmatpush1.msra.mxu0 0.0
    %253 = vmatprep.subr.mxu0 0.0
    %254 = vmatpush1.msra.mxu0 0.0
    %255 = vmatprep.subr.mxu0 0.0
    %256 = vmatpush1.msra.mxu0 0.0
    %257 = vmatprep.subr.mxu0 0.0
    %258 = vmatpush1.msra.mxu0 0.0
    %259 = vmatprep.subr.mxu0 0.0
    %260 = vmatpush1.msra.mxu0 0.0
    %261 = vmatprep.subr.mxu0 0.0
    %262 = vmatpush1.msra.mxu0 0.0
    %263 = vmatprep.subr.mxu0 0.0
    %264 = vmatpush1.msra.mxu0 0.0
    %265 = vmatprep.subr.mxu0 0.0
    %266 = vmatpush1.msra.mxu0 0.0
    %267 = vmatprep.subr.mxu0 0.0
    %268 = vmatpush1.msra.mxu0 0.0
    %269 = vmatprep.subr.mxu0 0.0
    %270 = vmatpush1.msra.mxu0 0.0
    %271 = vmatprep.subr.mxu0 0.0
    %272 = vmatpush1.msra.mxu0 0.0
    %273 = vmatprep.subr.mxu0 0.0
    %274 = vmatpush1.msra.mxu0 0.0
    %275 = vmatprep.subr.mxu0 0.0
    %276 = vmatpush1.msra.mxu0 0.0
    %277 = vmatprep.subr.mxu0 0.0
    %278 = vmatpush1.msra.mxu0 0.0
    %279 = vmatprep.subr.mxu0 0.0
    %280 = vmatpush1.msra.mxu0 0.0
    %281 = vmatprep.subr.mxu0 0.0
    %282 = vmatpush1.msra.mxu0 0.0
    %283 = vmatprep.subr.mxu0 0.0
    %284 = vmatpush1.msra.mxu0 0.0
    %285 = vmatprep.subr.mxu0 0.0
    %286 = vmatpush1.msra.mxu0 0.0
    %287 = vmatprep.subr.mxu0 0.0
    %288 = vmatpush1.msra.mxu0 0.0
    %289 = vmatprep.subr.mxu0 0.0
    %290 = vmatpush1.msra.mxu0 0.0
    %291 = vmatprep.subr.mxu0 0.0
    %292 = vmatpush1.msra.mxu0 0.0
    %293 = vmatprep.subr.mxu0 0.0
    %294 = vmatpush1.msra.mxu0 0.0
    %295 = vmatprep.subr.mxu0 0.0
    %296 = vmatpush1.msra.mxu0 0.0
    %297 = vmatprep.mubr.f32.mxu0 0.0
    %298 = vmatmul.mubr.f32.gmra.mrb[0].mxu0 %v91
    %v299 = vpop.f32.mrb[0].mxu0
    %v300 = vadd.f32 %v58, %v299
    %v301 = vpop.f32.mrb[0].mxu0
    %302 = vdwg.mxu0
    %v304 = vrot.slane %v160, 1
    %v307 = vadd.f32 %v80, %v160
    %v308 = vadd.f32 %v81, %v304
    %v309 = vxor.u32 %v307, 2147483648
    %v310 = vxor.u32 %v308, 2147483648
    %v311 = vmul.f32 %v309, 1.442695
    %v312 = vpow.pop %v311
    %v313 = vmul.f32 %v310, 1.442695
    %v314 = vpow.pop %v313
    %v315 = vadd.f32 %v312, 1.0
    %v316 = vadd.f32 %v314, 1.0
    %v317 = vrcp.pop %v315
    %v318 = vmul.f32 1.0, %v317
    %v319 = vrcp.pop %v316
    %v320 = vmul.f32 1.0, %v319
    %v322 = vrot.slane %v230, 1
    %v325 = vadd.f32 %v83, %v230
    %v326 = vadd.f32 %v84, %v322
    %v327 = vxor.u32 %v325, 2147483648
    %v328 = vxor.u32 %v326, 2147483648
    %v329 = vmul.f32 %v327, 1.442695
    %v330 = vpow.pop %v329
    %v331 = vmul.f32 %v328, 1.442695
    %v332 = vpow.pop %v331
    %v333 = vadd.f32 %v330, 1.0
    %v334 = vadd.f32 %v332, 1.0
    %v335 = vrcp.pop %v333
    %v336 = vmul.f32 1.0, %v335
    %v337 = vrcp.pop %v334
    %v338 = vmul.f32 1.0, %v337
    %v340 = vrot.slane %v300, 1
    %v343 = vmul.f32 %v318, %v300
    %v344 = vmul.f32 %v320, %v340
    %v345 = vadd.f32 %v86, %v343
    %v346 = vadd.f32 %v87, %v344
    %v347 = vtanh.pop %v345
    %v348 = vtanh.pop %v346
    %v349 = vsub.f32 1.0, %v336
    %v350 = vsub.f32 1.0, %v338
    %v351 = vmul.f32 %v349, %v347
    %v352 = vmul.f32 %v350, %v348
    %v353 = vrot.slane %v88, 1
    %v356 = vmul.f32 %v336, %v88
    %v357 = vmul.f32 %v338, %v353
    %v358 = vadd.f32 %v351, %v356
    %v359 = vadd.f32 %v352, %v357
    %v362 = vrot.slane %v359, 7
    %vm363 = vcmask 1041409
    %v364 = vsel %vm363, %v362, %v358
    %v365 = vsel %vm89, %v364, 0
    %367 = vmatprep.subr.mxu0 0.0
    %368 = vmatpush1.msra.mxu0 %v60
    %369 = vmatprep.subr.mxu0 0.0
    %370 = vmatpush1.msra.mxu0 %v61
    %371 = vmatprep.subr.mxu0 0.0
    %372 = vmatpush1.msra.mxu0 %v62
    %373 = vmatprep.subr.mxu0 0.0
    %374 = vmatpush1.msra.mxu0 %v63
    %375 = vmatprep.subr.mxu0 0.0
    %376 = vmatpush1.msra.mxu0 0.0
    %377 = vmatprep.subr.mxu0 0.0
    %378 = vmatpush1.msra.mxu0 0.0
    %379 = vmatprep.subr.mxu0 0.0
    %380 = vmatpush1.msra.mxu0 0.0
    %381 = vmatprep.subr.mxu0 0.0
    %382 = vmatpush1.msra.mxu0 0.0
    %383 = vmatprep.subr.mxu0 0.0
    %384 = vmatpush1.msra.mxu0 0.0
    %385 = vmatprep.subr.mxu0 0.0
    %386 = vmatpush1.msra.mxu0 0.0
    %387 = vmatprep.subr.mxu0 0.0
    %388 = vmatpush1.msra.mxu0 0.0
    %389 = vmatprep.subr.mxu0 0.0
    %390 = vmatpush1.msra.mxu0 0.0
    %391 = vmatprep.subr.mxu0 0.0
    %392 = vmatpush1.msra.mxu0 0.0
    %393 = vmatprep.subr.mxu0 0.0
    %394 = vmatpush1.msra.mxu0 0.0
    %395 = vmatprep.subr.mxu0 0.0
    %396 = vmatpush1.msra.mxu0 0.0
    %397 = vmatprep.subr.mxu0 0.0
    %398 = vmatpush1.msra.mxu0 0.0
    %399 = vmatprep.subr.mxu0 0.0
    %400 = vmatpush1.msra.mxu0 0.0
    %401 = vmatprep.subr.mxu0 0.0
    %402 = vmatpush1.msra.mxu0 0.0
    %403 = vmatprep.subr.mxu0 0.0
    %404 = vmatpush1.msra.mxu0 0.0
    %405 = vmatprep.subr.mxu0 0.0
    %406 = vmatpush1.msra.mxu0 0.0
    %407 = vmatprep.subr.mxu0 0.0
    %408 = vmatpush1.msra.mxu0 0.0
    %409 = vmatprep.subr.mxu0 0.0
    %410 = vmatpush1.msra.mxu0 0.0
    %411 = vmatprep.subr.mxu0 0.0
    %412 = vmatpush1.msra.mxu0 0.0
    %413 = vmatprep.subr.mxu0 0.0
    %414 = vmatpush1.msra.mxu0 0.0
    %415 = vmatprep.subr.mxu0 0.0
    %416 = vmatpush1.msra.mxu0 0.0
    %417 = vmatprep.subr.mxu0 0.0
    %418 = vmatpush1.msra.mxu0 0.0
    %419 = vmatprep.subr.mxu0 0.0
    %420 = vmatpush1.msra.mxu0 0.0
    %421 = vmatprep.subr.mxu0 0.0
    %422 = vmatpush1.msra.mxu0 0.0
    %423 = vmatprep.subr.mxu0 0.0
    %424 = vmatpush1.msra.mxu0 0.0
    %425 = vmatprep.subr.mxu0 0.0
    %426 = vmatpush1.msra.mxu0 0.0
    %427 = vmatprep.subr.mxu0 0.0
    %428 = vmatpush1.msra.mxu0 0.0
    %429 = vmatprep.subr.mxu0 0.0
    %430 = vmatpush1.msra.mxu0 0.0
    %431 = vmatprep.mubr.f32.mxu0 0.0
    %432 = vmatmul.mubr.f32.gmra.mrb[0].mxu0 %v365
    %v433 = vpop.f32.mrb[0].mxu0
    %v434 = vadd.f32 %v77, %v433
    %v435 = vpop.f32.mrb[0].mxu0
    %436 = vdwg.mxu0
    %v437 = vmax.f32 %v434, 0.0
    %v439 = vlaneseq
    %v440 = vshrl.u32 %v439, 7
    %v441 = vsub.s32 0, %v440
    %v442 = vrot.slane %v79, %v441
    %vm444 = vcmask 523264
    %v446 = vsel %vm444, %v437, 0
    %448 = vmatprep.subr.mxu0 0.0
    %449 = vmatpush1.msra.mxu0 %v64
    %450 = vmatprep.subr.mxu0 0.0
    %451 = vmatpush1.msra.mxu0 %v65
    %452 = vmatprep.subr.mxu0 0.0
    %453 = vmatpush1.msra.mxu0 %v66
    %454 = vmatprep.subr.mxu0 0.0
    %455 = vmatpush1.msra.mxu0 %v67
    %456 = vmatprep.subr.mxu0 0.0
    %457 = vmatpush1.msra.mxu0 %v68
    %458 = vmatprep.subr.mxu0 0.0
    %459 = vmatpush1.msra.mxu0 %v69
    %460 = vmatprep.subr.mxu0 0.0
    %461 = vmatpush1.msra.mxu0 %v70
    %462 = vmatprep.subr.mxu0 0.0
    %463 = vmatpush1.msra.mxu0 %v71
    %464 = vmatprep.subr.mxu0 0.0
    %465 = vmatpush1.msra.mxu0 0.0
    %466 = vmatprep.subr.mxu0 0.0
    %467 = vmatpush1.msra.mxu0 0.0
    %468 = vmatprep.subr.mxu0 0.0
    %469 = vmatpush1.msra.mxu0 0.0
    %470 = vmatprep.subr.mxu0 0.0
    %471 = vmatpush1.msra.mxu0 0.0
    %472 = vmatprep.subr.mxu0 0.0
    %473 = vmatpush1.msra.mxu0 0.0
    %474 = vmatprep.subr.mxu0 0.0
    %475 = vmatpush1.msra.mxu0 0.0
    %476 = vmatprep.subr.mxu0 0.0
    %477 = vmatpush1.msra.mxu0 0.0
    %478 = vmatprep.subr.mxu0 0.0
    %479 = vmatpush1.msra.mxu0 0.0
    %480 = vmatprep.subr.mxu0 0.0
    %481 = vmatpush1.msra.mxu0 0.0
    %482 = vmatprep.subr.mxu0 0.0
    %483 = vmatpush1.msra.mxu0 0.0
    %484 = vmatprep.subr.mxu0 0.0
    %485 = vmatpush1.msra.mxu0 0.0
    %486 = vmatprep.subr.mxu0 0.0
    %487 = vmatpush1.msra.mxu0 0.0
    %488 = vmatprep.subr.mxu0 0.0
    %489 = vmatpush1.msra.mxu0 0.0
    %490 = vmatprep.subr.mxu0 0.0
    %491 = vmatpush1.msra.mxu0 0.0
    %492 = vmatprep.subr.mxu0 0.0
    %493 = vmatpush1.msra.mxu0 0.0
    %494 = vmatprep.subr.mxu0 0.0
    %495 = vmatpush1.msra.mxu0 0.0
    %496 = vmatprep.subr.mxu0 0.0
    %497 = vmatpush1.msra.mxu0 0.0
    %498 = vmatprep.subr.mxu0 0.0
    %499 = vmatpush1.msra.mxu0 0.0
    %500 = vmatprep.subr.mxu0 0.0
    %501 = vmatpush1.msra.mxu0 0.0
    %502 = vmatprep.subr.mxu0 0.0
    %503 = vmatpush1.msra.mxu0 0.0
    %504 = vmatprep.subr.mxu0 0.0
    %505 = vmatpush1.msra.mxu0 0.0
    %506 = vmatprep.subr.mxu0 0.0
    %507 = vmatpush1.msra.mxu0 0.0
    %508 = vmatprep.subr.mxu0 0.0
    %509 = vmatpush1.msra.mxu0 0.0
    %510 = vmatprep.subr.mxu0 0.0
    %511 = vmatpush1.msra.mxu0 0.0
    %512 = vmatprep.mubr.f32.mxu0 0.0
    %513 = vmatmul.mubr.f32.gmra.mrb[0].mxu0 %v446
    %v514 = vpop.f32.mrb[0].mxu0
    %v515 = vadd.f32 %v442, %v514
    %v516 = vpop.f32.mrb[0].mxu0
    %517 = vdwg.mxu0
    %vm518 = vcmask 58368
    %519 = vst.msk [vmem:[%s8] sm:$0x3] %vm518, %v515
    %520 = vmatprep.subr.mxu0 0.0
    %521 = vmatpush1.msra.mxu0 %v39
    %522 = vmatprep.subr.mxu0 0.0
    %523 = vmatpush1.msra.mxu0 %v40
    %524 = vmatprep.subr.mxu0 0.0
    %525 = vmatpush1.msra.mxu0 %v41
    %526 = vmatprep.subr.mxu0 0.0
    %527 = vmatpush1.msra.mxu0 %v42
    %528 = vmatprep.subr.mxu0 0.0
    %529 = vmatpush1.msra.mxu0 0.0
    %530 = vmatprep.subr.mxu0 0.0
    %531 = vmatpush1.msra.mxu0 0.0
    %532 = vmatprep.subr.mxu0 0.0
    %533 = vmatpush1.msra.mxu0 0.0
    %534 = vmatprep.subr.mxu0 0.0
    %535 = vmatpush1.msra.mxu0 0.0
    %536 = vmatprep.subr.mxu0 0.0
    %537 = vmatpush1.msra.mxu0 0.0
    %538 = vmatprep.subr.mxu0 0.0
    %539 = vmatpush1.msra.mxu0 0.0
    %540 = vmatprep.subr.mxu0 0.0
    %541 = vmatpush1.msra.mxu0 0.0
    %542 = vmatprep.subr.mxu0 0.0
    %543 = vmatpush1.msra.mxu0 0.0
    %544 = vmatprep.subr.mxu0 0.0
    %545 = vmatpush1.msra.mxu0 0.0
    %546 = vmatprep.subr.mxu0 0.0
    %547 = vmatpush1.msra.mxu0 0.0
    %548 = vmatprep.subr.mxu0 0.0
    %549 = vmatpush1.msra.mxu0 0.0
    %550 = vmatprep.subr.mxu0 0.0
    %551 = vmatpush1.msra.mxu0 0.0
    %552 = vmatprep.subr.mxu0 0.0
    %553 = vmatpush1.msra.mxu0 0.0
    %554 = vmatprep.subr.mxu0 0.0
    %555 = vmatpush1.msra.mxu0 0.0
    %556 = vmatprep.subr.mxu0 0.0
    %557 = vmatpush1.msra.mxu0 0.0
    %558 = vmatprep.subr.mxu0 0.0
    %559 = vmatpush1.msra.mxu0 0.0
    %560 = vmatprep.subr.mxu0 0.0
    %561 = vmatpush1.msra.mxu0 0.0
    %562 = vmatprep.subr.mxu0 0.0
    %563 = vmatpush1.msra.mxu0 0.0
    %564 = vmatprep.subr.mxu0 0.0
    %565 = vmatpush1.msra.mxu0 0.0
    %566 = vmatprep.subr.mxu0 0.0
    %567 = vmatpush1.msra.mxu0 0.0
    %568 = vmatprep.subr.mxu0 0.0
    %569 = vmatpush1.msra.mxu0 0.0
    %570 = vmatprep.subr.mxu0 0.0
    %571 = vmatpush1.msra.mxu0 0.0
    %572 = vmatprep.subr.mxu0 0.0
    %573 = vmatpush1.msra.mxu0 0.0
    %574 = vmatprep.subr.mxu0 0.0
    %575 = vmatpush1.msra.mxu0 0.0
    %576 = vmatprep.subr.mxu0 0.0
    %577 = vmatpush1.msra.mxu0 0.0
    %578 = vmatprep.subr.mxu0 0.0
    %579 = vmatpush1.msra.mxu0 0.0
    %580 = vmatprep.subr.mxu0 0.0
    %581 = vmatpush1.msra.mxu0 0.0
    %582 = vmatprep.subr.mxu0 0.0
    %583 = vmatpush1.msra.mxu0 0.0
    %584 = vmatprep.mubr.f32.mxu0 0.0
    %585 = vmatmul.mubr.f32.gmra.mrb[0].mxu0 %v365
    %v586 = vpop.f32.mrb[0].mxu0
    %v587 = vadd.f32 0.0, %v586
    %v588 = vpop.f32.mrb[0].mxu0
    %589 = vdwg.mxu0
    %590 = vmatprep.subr.mxu0 0.0
    %591 = vmatpush1.msra.mxu0 %v44
    %592 = vmatprep.subr.mxu0 0.0
    %593 = vmatpush1.msra.mxu0 %v45
    %594 = vmatprep.subr.mxu0 0.0
    %595 = vmatpush1.msra.mxu0 %v46
    %596 = vmatprep.subr.mxu0 0.0
    %597 = vmatpush1.msra.mxu0 %v47
    %598 = vmatprep.subr.mxu0 0.0
    %599 = vmatpush1.msra.mxu0 0.0
    %600 = vmatprep.subr.mxu0 0.0
    %601 = vmatpush1.msra.mxu0 0.0
    %602 = vmatprep.subr.mxu0 0.0
    %603 = vmatpush1.msra.mxu0 0.0
    %604 = vmatprep.subr.mxu0 0.0
    %605 = vmatpush1.msra.mxu0 0.0
    %606 = vmatprep.subr.mxu0 0.0
    %607 = vmatpush1.msra.mxu0 0.0
    %608 = vmatprep.subr.mxu0 0.0
    %609 = vmatpush1.msra.mxu0 0.0
    %610 = vmatprep.subr.mxu0 0.0
    %611 = vmatpush1.msra.mxu0 0.0
    %612 = vmatprep.subr.mxu0 0.0
    %613 = vmatpush1.msra.mxu0 0.0
    %614 = vmatprep.subr.mxu0 0.0
    %615 = vmatpush1.msra.mxu0 0.0
    %616 = vmatprep.subr.mxu0 0.0
    %617 = vmatpush1.msra.mxu0 0.0
    %618 = vmatprep.subr.mxu0 0.0
    %619 = vmatpush1.msra.mxu0 0.0
    %620 = vmatprep.subr.mxu0 0.0
    %621 = vmatpush1.msra.mxu0 0.0
    %622 = vmatprep.subr.mxu0 0.0
    %623 = vmatpush1.msra.mxu0 0.0
    %624 = vmatprep.subr.mxu0 0.0
    %625 = vmatpush1.msra.mxu0 0.0
    %626 = vmatprep.subr.mxu0 0.0
    %627 = vmatpush1.msra.mxu0 0.0
    %628 = vmatprep.subr.mxu0 0.0
    %629 = vmatpush1.msra.mxu0 0.0
    %630 = vmatprep.subr.mxu0 0.0
    %631 = vmatpush1.msra.mxu0 0.0
    %632 = vmatprep.subr.mxu0 0.0
    %633 = vmatpush1.msra.mxu0 0.0
    %634 = vmatprep.subr.mxu0 0.0
    %635 = vmatpush1.msra.mxu0 0.0
    %636 = vmatprep.subr.mxu0 0.0
    %637 = vmatpush1.msra.mxu0 0.0
    %638 = vmatprep.subr.mxu0 0.0
    %639 = vmatpush1.msra.mxu0 0.0
    %640 = vmatprep.subr.mxu0 0.0
    %641 = vmatpush1.msra.mxu0 0.0
    %642 = vmatprep.subr.mxu0 0.0
    %643 = vmatpush1.msra.mxu0 0.0
    %644 = vmatprep.subr.mxu0 0.0
    %645 = vmatpush1.msra.mxu0 0.0
    %646 = vmatprep.subr.mxu0 0.0
    %647 = vmatpush1.msra.mxu0 0.0
    %648 = vmatprep.subr.mxu0 0.0
    %649 = vmatpush1.msra.mxu0 0.0
    %650 = vmatprep.subr.mxu0 0.0
    %651 = vmatpush1.msra.mxu0 0.0
    %652 = vmatprep.subr.mxu0 0.0
    %653 = vmatpush1.msra.mxu0 0.0
    %654 = vmatprep.mubr.f32.mxu0 0.0
    %655 = vmatmul.mubr.f32.gmra.mrb[0].mxu0 %v365
    %v656 = vpop.f32.mrb[0].mxu0
    %v657 = vadd.f32 0.0, %v656
    %v658 = vpop.f32.mrb[0].mxu0
    %659 = vdwg.mxu0
    %660 = vmatprep.subr.mxu0 0.0
    %661 = vmatpush1.msra.mxu0 %v49
    %662 = vmatprep.subr.mxu0 0.0
    %663 = vmatpush1.msra.mxu0 %v50
    %664 = vmatprep.subr.mxu0 0.0
    %665 = vmatpush1.msra.mxu0 %v51
    %666 = vmatprep.subr.mxu0 0.0
    %667 = vmatpush1.msra.mxu0 %v52
    %668 = vmatprep.subr.mxu0 0.0
    %669 = vmatpush1.msra.mxu0 0.0
    %670 = vmatprep.subr.mxu0 0.0
    %671 = vmatpush1.msra.mxu0 0.0
    %672 = vmatprep.subr.mxu0 0.0
    %673 = vmatpush1.msra.mxu0 0.0
    %674 = vmatprep.subr.mxu0 0.0
    %675 = vmatpush1.msra.mxu0 0.0
    %676 = vmatprep.subr.mxu0 0.0
    %677 = vmatpush1.msra.mxu0 0.0
    %678 = vmatprep.subr.mxu0 0.0
    %679 = vmatpush1.msra.mxu0 0.0
    %680 = vmatprep.subr.mxu0 0.0
    %681 = vmatpush1.msra.mxu0 0.0
    %682 = vmatprep.subr.mxu0 0.0
    %683 = vmatpush1.msra.mxu0 0.0
    %684 = vmatprep.subr.mxu0 0.0
    %685 = vmatpush1.msra.mxu0 0.0
    %686 = vmatprep.subr.mxu0 0.0
    %687 = vmatpush1.msra.mxu0 0.0
    %688 = vmatprep.subr.mxu0 0.0
    %689 = vmatpush1.msra.mxu0 0.0
    %690 = vmatprep.subr.mxu0 0.0
    %691 = vmatpush1.msra.mxu0 0.0
    %692 = vmatprep.subr.mxu0 0.0
    %693 = vmatpush1.msra.mxu0 0.0
    %694 = vmatprep.subr.mxu0 0.0
    %695 = vmatpush1.msra.mxu0 0.0
    %696 = vmatprep.subr.mxu0 0.0
    %697 = vmatpush1.msra.mxu0 0.0
    %698 = vmatprep.subr.mxu0 0.0
    %699 = vmatpush1.msra.mxu0 0.0
    %700 = vmatprep.subr.mxu0 0.0
    %701 = vmatpush1.msra.mxu0 0.0
    %702 = vmatprep.subr.mxu0 0.0
    %703 = vmatpush1.msra.mxu0 0.0
    %704 = vmatprep.subr.mxu0 0.0
    %705 = vmatpush1.msra.mxu0 0.0
    %706 = vmatprep.subr.mxu0 0.0
    %707 = vmatpush1.msra.mxu0 0.0
    %708 = vmatprep.subr.mxu0 0.0
    %709 = vmatpush1.msra.mxu0 0.0
    %710 = vmatprep.subr.mxu0 0.0
    %711 = vmatpush1.msra.mxu0 0.0
    %712 = vmatprep.subr.mxu0 0.0
    %713 = vmatpush1.msra.mxu0 0.0
    %714 = vmatprep.subr.mxu0 0.0
    %715 = vmatpush1.msra.mxu0 0.0
    %716 = vmatprep.subr.mxu0 0.0
    %717 = vmatpush1.msra.mxu0 0.0
    %718 = vmatprep.subr.mxu0 0.0
    %719 = vmatpush1.msra.mxu0 0.0
    %720 = vmatprep.subr.mxu0 0.0
    %721 = vmatpush1.msra.mxu0 0.0
    %722 = vmatprep.subr.mxu0 0.0
    %723 = vmatpush1.msra.mxu0 0.0
    %724 = vmatprep.mubr.f32.mxu0 0.0
    %725 = vmatmul.mubr.f32.gmra.mrb[0].mxu0 %v365
    %v726 = vpop.f32.mrb[0].mxu0
    %v727 = vadd.f32 %v58, %v726
    %v728 = vpop.f32.mrb[0].mxu0
    %729 = vdwg.mxu0
    %v731 = vrot.slane %v587, 7
    %v734 = vadd.f32 %v80, %v731
    %v735 = vadd.f32 %v81, %v587
    %v736 = vxor.u32 %v734, 2147483648
    %v737 = vxor.u32 %v735, 2147483648
    %v738 = vmul.f32 %v736, 1.442695
    %v739 = vpow.pop %v738
    %v740 = vmul.f32 %v737, 1.442695
    %v741 = vpow.pop %v740
    %v742 = vadd.f32 %v739, 1.0
    %v743 = vadd.f32 %v741, 1.0
    %v744 = vrcp.pop %v742
    %v745 = vmul.f32 1.0, %v744
    %v746 = vrcp.pop %v743
    %v747 = vmul.f32 1.0, %v746
    %v749 = vrot.slane %v657, 7
    %v752 = vadd.f32 %v83, %v749
    %v753 = vadd.f32 %v84, %v657
    %v754 = vxor.u32 %v752, 2147483648
    %v755 = vxor.u32 %v753, 2147483648
    %v756 = vmul.f32 %v754, 1.442695
    %v757 = vpow.pop %v756
    %v758 = vmul.f32 %v755, 1.442695
    %v759 = vpow.pop %v758
    %v760 = vadd.f32 %v757, 1.0
    %v761 = vadd.f32 %v759, 1.0
    %v762 = vrcp.pop %v760
    %v763 = vmul.f32 1.0, %v762
    %v764 = vrcp.pop %v761
    %v765 = vmul.f32 1.0, %v764
    %v767 = vrot.slane %v727, 7
    %v770 = vmul.f32 %v745, %v767
    %v771 = vmul.f32 %v747, %v727
    %v772 = vadd.f32 %v86, %v770
    %v773 = vadd.f32 %v87, %v771
    %v774 = vtanh.pop %v772
    %v775 = vtanh.pop %v773
    %v776 = vsub.f32 1.0, %v763
    %v777 = vsub.f32 1.0, %v765
    %v778 = vmul.f32 %v776, %v774
    %v779 = vmul.f32 %v777, %v775
    %v780 = vrot.slane %v358, 7
    %v783 = vmul.f32 %v763, %v780
    %v784 = vmul.f32 %v765, %v362
    %v785 = vadd.f32 %v778, %v783
    %v786 = vadd.f32 %v779, %v784
    %v789 = vrot.slane %v785, 1
    %v790 = vsel %vm363, %v786, %v789
    %v791 = vsel %vm89, %v790, 0
    %793 = vmatprep.subr.mxu0 0.0
    %794 = vmatpush1.msra.mxu0 %v60
    %795 = vmatprep.subr.mxu0 0.0
    %796 = vmatpush1.msra.mxu0 %v61
    %797 = vmatprep.subr.mxu0 0.0
    %798 = vmatpush1.msra.mxu0 %v62
    %799 = vmatprep.subr.mxu0 0.0
    %800 = vmatpush1.msra.mxu0 %v63
    %801 = vmatprep.subr.mxu0 0.0
    %802 = vmatpush1.msra.mxu0 0.0
    %803 = vmatprep.subr.mxu0 0.0
    %804 = vmatpush1.msra.mxu0 0.0
    %805 = vmatprep.subr.mxu0 0.0
    %806 = vmatpush1.msra.mxu0 0.0
    %807 = vmatprep.subr.mxu0 0.0
    %808 = vmatpush1.msra.mxu0 0.0
    %809 = vmatprep.subr.mxu0 0.0
    %810 = vmatpush1.msra.mxu0 0.0
    %811 = vmatprep.subr.mxu0 0.0
    %812 = vmatpush1.msra.mxu0 0.0
    %813 = vmatprep.subr.mxu0 0.0
    %814 = vmatpush1.msra.mxu0 0.0
    %815 = vmatprep.subr.mxu0 0.0
    %816 = vmatpush1.msra.mxu0 0.0
    %817 = vmatprep.subr.mxu0 0.0
    %818 = vmatpush1.msra.mxu0 0.0
    %819 = vmatprep.subr.mxu0 0.0
    %820 = vmatpush1.msra.mxu0 0.0
    %821 = vmatprep.subr.mxu0 0.0
    %822 = vmatpush1.msra.mxu0 0.0
    %823 = vmatprep.subr.mxu0 0.0
    %824 = vmatpush1.msra.mxu0 0.0
    %825 = vmatprep.subr.mxu0 0.0
    %826 = vmatpush1.msra.mxu0 0.0
    %827 = vmatprep.subr.mxu0 0.0
    %828 = vmatpush1.msra.mxu0 0.0
    %829 = vmatprep.subr.mxu0 0.0
    %830 = vmatpush1.msra.mxu0 0.0
    %831 = vmatprep.subr.mxu0 0.0
    %832 = vmatpush1.msra.mxu0 0.0
    %833 = vmatprep.subr.mxu0 0.0
    %834 = vmatpush1.msra.mxu0 0.0
    %835 = vmatprep.subr.mxu0 0.0
    %836 = vmatpush1.msra.mxu0 0.0
    %837 = vmatprep.subr.mxu0 0.0
    %838 = vmatpush1.msra.mxu0 0.0
    %839 = vmatprep.subr.mxu0 0.0
    %840 = vmatpush1.msra.mxu0 0.0
    %841 = vmatprep.subr.mxu0 0.0
    %842 = vmatpush1.msra.mxu0 0.0
    %843 = vmatprep.subr.mxu0 0.0
    %844 = vmatpush1.msra.mxu0 0.0
    %845 = vmatprep.subr.mxu0 0.0
    %846 = vmatpush1.msra.mxu0 0.0
    %847 = vmatprep.subr.mxu0 0.0
    %848 = vmatpush1.msra.mxu0 0.0
    %849 = vmatprep.subr.mxu0 0.0
    %850 = vmatpush1.msra.mxu0 0.0
    %851 = vmatprep.subr.mxu0 0.0
    %852 = vmatpush1.msra.mxu0 0.0
    %853 = vmatprep.subr.mxu0 0.0
    %854 = vmatpush1.msra.mxu0 0.0
    %855 = vmatprep.subr.mxu0 0.0
    %856 = vmatpush1.msra.mxu0 0.0
    %857 = vmatprep.mubr.f32.mxu0 0.0
    %858 = vmatmul.mubr.f32.gmra.mrb[0].mxu0 %v791
    %v859 = vpop.f32.mrb[0].mxu0
    %v860 = vadd.f32 %v77, %v859
    %v861 = vpop.f32.mrb[0].mxu0
    %862 = vdwg.mxu0
    %v863 = vmax.f32 %v860, 0.0
    %v865 = vsel %vm444, %v863, 0
    %867 = vmatprep.subr.mxu0 0.0
    %868 = vmatpush1.msra.mxu0 %v64
    %869 = vmatprep.subr.mxu0 0.0
    %870 = vmatpush1.msra.mxu0 %v65
    %871 = vmatprep.subr.mxu0 0.0
    %872 = vmatpush1.msra.mxu0 %v66
    %873 = vmatprep.subr.mxu0 0.0
    %874 = vmatpush1.msra.mxu0 %v67
    %875 = vmatprep.subr.mxu0 0.0
    %876 = vmatpush1.msra.mxu0 %v68
    %877 = vmatprep.subr.mxu0 0.0
    %878 = vmatpush1.msra.mxu0 %v69
    %879 = vmatprep.subr.mxu0 0.0
    %880 = vmatpush1.msra.mxu0 %v70
    %881 = vmatprep.subr.mxu0 0.0
    %882 = vmatpush1.msra.mxu0 %v71
    %883 = vmatprep.subr.mxu0 0.0
    %884 = vmatpush1.msra.mxu0 0.0
    %885 = vmatprep.subr.mxu0 0.0
    %886 = vmatpush1.msra.mxu0 0.0
    %887 = vmatprep.subr.mxu0 0.0
    %888 = vmatpush1.msra.mxu0 0.0
    %889 = vmatprep.subr.mxu0 0.0
    %890 = vmatpush1.msra.mxu0 0.0
    %891 = vmatprep.subr.mxu0 0.0
    %892 = vmatpush1.msra.mxu0 0.0
    %893 = vmatprep.subr.mxu0 0.0
    %894 = vmatpush1.msra.mxu0 0.0
    %895 = vmatprep.subr.mxu0 0.0
    %896 = vmatpush1.msra.mxu0 0.0
    %897 = vmatprep.subr.mxu0 0.0
    %898 = vmatpush1.msra.mxu0 0.0
    %899 = vmatprep.subr.mxu0 0.0
    %900 = vmatpush1.msra.mxu0 0.0
    %901 = vmatprep.subr.mxu0 0.0
    %902 = vmatpush1.msra.mxu0 0.0
    %903 = vmatprep.subr.mxu0 0.0
    %904 = vmatpush1.msra.mxu0 0.0
    %905 = vmatprep.subr.mxu0 0.0
    %906 = vmatpush1.msra.mxu0 0.0
    %907 = vmatprep.subr.mxu0 0.0
    %908 = vmatpush1.msra.mxu0 0.0
    %909 = vmatprep.subr.mxu0 0.0
    %910 = vmatpush1.msra.mxu0 0.0
    %911 = vmatprep.subr.mxu0 0.0
    %912 = vmatpush1.msra.mxu0 0.0
    %913 = vmatprep.subr.mxu0 0.0
    %914 = vmatpush1.msra.mxu0 0.0
    %915 = vmatprep.subr.mxu0 0.0
    %916 = vmatpush1.msra.mxu0 0.0
    %917 = vmatprep.subr.mxu0 0.0
    %918 = vmatpush1.msra.mxu0 0.0
    %919 = vmatprep.subr.mxu0 0.0
    %920 = vmatpush1.msra.mxu0 0.0
    %921 = vmatprep.subr.mxu0 0.0
    %922 = vmatpush1.msra.mxu0 0.0
    %923 = vmatprep.subr.mxu0 0.0
    %924 = vmatpush1.msra.mxu0 0.0
    %925 = vmatprep.subr.mxu0 0.0
    %926 = vmatpush1.msra.mxu0 0.0
    %927 = vmatprep.subr.mxu0 0.0
    %928 = vmatpush1.msra.mxu0 0.0
    %929 = vmatprep.subr.mxu0 0.0
    %930 = vmatpush1.msra.mxu0 0.0
    %931 = vmatprep.mubr.f32.mxu0 0.0
    %932 = vmatmul.mubr.f32.gmra.mrb[0].mxu0 %v865
    %v933 = vpop.f32.mrb[0].mxu0
    %v934 = vadd.f32 %v442, %v933
    %v935 = vpop.f32.mrb[0].mxu0
    %936 = vdwg.mxu0
    %s937 = scalar_lea.vmem %s8, 2
    %938 = vst.msk [vmem:[%s937] sm:$0x3] %vm518, %v934
    %939 = vmatprep.subr.mxu0 0.0
    %940 = vmatpush1.msra.mxu0 %v39
    %941 = vmatprep.subr.mxu0 0.0
    %942 = vmatpush1.msra.mxu0 %v40
    %943 = vmatprep.subr.mxu0 0.0
    %944 = vmatpush1.msra.mxu0 %v41
    %945 = vmatprep.subr.mxu0 0.0
    %946 = vmatpush1.msra.mxu0 %v42
    %947 = vmatprep.subr.mxu0 0.0
    %948 = vmatpush1.msra.mxu0 0.0
    %949 = vmatprep.subr.mxu0 0.0
    %950 = vmatpush1.msra.mxu0 0.0
    %951 = vmatprep.subr.mxu0 0.0
    %952 = vmatpush1.msra.mxu0 0.0
    %953 = vmatprep.subr.mxu0 0.0
    %954 = vmatpush1.msra.mxu0 0.0
    %955 = vmatprep.subr.mxu0 0.0
    %956 = vmatpush1.msra.mxu0 0.0
    %957 = vmatprep.subr.mxu0 0.0
    %958 = vmatpush1.msra.mxu0 0.0
    %959 = vmatprep.subr.mxu0 0.0
    %960 = vmatpush1.msra.mxu0 0.0
    %961 = vmatprep.subr.mxu0 0.0
    %962 = vmatpush1.msra.mxu0 0.0
    %963 = vmatprep.subr.mxu0 0.0
    %964 = vmatpush1.msra.mxu0 0.0
    %965 = vmatprep.subr.mxu0 0.0
    %966 = vmatpush1.msra.mxu0 0.0
    %967 = vmatprep.subr.mxu0 0.0
    %968 = vmatpush1.msra.mxu0 0.0
    %969 = vmatprep.subr.mxu0 0.0
    %970 = vmatpush1.msra.mxu0 0.0
    %971 = vmatprep.subr.mxu0 0.0
    %972 = vmatpush1.msra.mxu0 0.0
    %973 = vmatprep.subr.mxu0 0.0
    %974 = vmatpush1.msra.mxu0 0.0
    %975 = vmatprep.subr.mxu0 0.0
    %976 = vmatpush1.msra.mxu0 0.0
    %977 = vmatprep.subr.mxu0 0.0
    %978 = vmatpush1.msra.mxu0 0.0
    %979 = vmatprep.subr.mxu0 0.0
    %980 = vmatpush1.msra.mxu0 0.0
    %981 = vmatprep.subr.mxu0 0.0
    %982 = vmatpush1.msra.mxu0 0.0
    %983 = vmatprep.subr.mxu0 0.0
    %984 = vmatpush1.msra.mxu0 0.0
    %985 = vmatprep.subr.mxu0 0.0
    %986 = vmatpush1.msra.mxu0 0.0
    %987 = vmatprep.subr.mxu0 0.0
    %988 = vmatpush1.msra.mxu0 0.0
    %989 = vmatprep.subr.mxu0 0.0
    %990 = vmatpush1.msra.mxu0 0.0
    %991 = vmatprep.subr.mxu0 0.0
    %992 = vmatpush1.msra.mxu0 0.0
    %993 = vmatprep.subr.mxu0 0.0
    %994 = vmatpush1.msra.mxu0 0.0
    %995 = vmatprep.subr.mxu0 0.0
    %996 = vmatpush1.msra.mxu0 0.0
    %997 = vmatprep.subr.mxu0 0.0
    %998 = vmatpush1.msra.mxu0 0.0
    %999 = vmatprep.subr.mxu0 0.0
    %1000 = vmatpush1.msra.mxu0 0.0
    %1001 = vmatprep.subr.mxu0 0.0
    %1002 = vmatpush1.msra.mxu0 0.0
    %1003 = vmatprep.mubr.f32.mxu0 0.0
    %1004 = vmatmul.mubr.f32.gmra.mrb[0].mxu0 %v791
    %v1005 = vpop.f32.mrb[0].mxu0
    %v1006 = vadd.f32 0.0, %v1005
    %v1007 = vpop.f32.mrb[0].mxu0
    %1008 = vdwg.mxu0
    %1009 = vmatprep.subr.mxu0 0.0
    %1010 = vmatpush1.msra.mxu0 %v44
    %1011 = vmatprep.subr.mxu0 0.0
    %1012 = vmatpush1.msra.mxu0 %v45
    %1013 = vmatprep.subr.mxu0 0.0
    %1014 = vmatpush1.msra.mxu0 %v46
    %1015 = vmatprep.subr.mxu0 0.0
    %1016 = vmatpush1.msra.mxu0 %v47
    %1017 = vmatprep.subr.mxu0 0.0
    %1018 = vmatpush1.msra.mxu0 0.0
    %1019 = vmatprep.subr.mxu0 0.0
    %1020 = vmatpush1.msra.mxu0 0.0
    %1021 = vmatprep.subr.mxu0 0.0
    %1022 = vmatpush1.msra.mxu0 0.0
    %1023 = vmatprep.subr.mxu0 0.0
    %1024 = vmatpush1.msra.mxu0 0.0
    %1025 = vmatprep.subr.mxu0 0.0
    %1026 = vmatpush1.msra.mxu0 0.0
    %1027 = vmatprep.subr.mxu0 0.0
    %1028 = vmatpush1.msra.mxu0 0.0
    %1029 = vmatprep.subr.mxu0 0.0
    %1030 = vmatpush1.msra.mxu0 0.0
    %1031 = vmatprep.subr.mxu0 0.0
    %1032 = vmatpush1.msra.mxu0 0.0
    %1033 = vmatprep.subr.mxu0 0.0
    %1034 = vmatpush1.msra.mxu0 0.0
    %1035 = vmatprep.subr.mxu0 0.0
    %1036 = vmatpush1.msra.mxu0 0.0
    %1037 = vmatprep.subr.mxu0 0.0
    %1038 = vmatpush1.msra.mxu0 0.0
    %1039 = vmatprep.subr.mxu0 0.0
    %1040 = vmatpush1.msra.mxu0 0.0
    %1041 = vmatprep.subr.mxu0 0.0
    %1042 = vmatpush1.msra.mxu0 0.0
    %1043 = vmatprep.subr.mxu0 0.0
    %1044 = vmatpush1.msra.mxu0 0.0
    %1045 = vmatprep.subr.mxu0 0.0
    %1046 = vmatpush1.msra.mxu0 0.0
    %1047 = vmatprep.subr.mxu0 0.0
    %1048 = vmatpush1.msra.mxu0 0.0
    %1049 = vmatprep.subr.mxu0 0.0
    %1050 = vmatpush1.msra.mxu0 0.0
    %1051 = vmatprep.subr.mxu0 0.0
    %1052 = vmatpush1.msra.mxu0 0.0
    %1053 = vmatprep.subr.mxu0 0.0
    %1054 = vmatpush1.msra.mxu0 0.0
    %1055 = vmatprep.subr.mxu0 0.0
    %1056 = vmatpush1.msra.mxu0 0.0
    %1057 = vmatprep.subr.mxu0 0.0
    %1058 = vmatpush1.msra.mxu0 0.0
    %1059 = vmatprep.subr.mxu0 0.0
    %1060 = vmatpush1.msra.mxu0 0.0
    %1061 = vmatprep.subr.mxu0 0.0
    %1062 = vmatpush1.msra.mxu0 0.0
    %1063 = vmatprep.subr.mxu0 0.0
    %1064 = vmatpush1.msra.mxu0 0.0
    %1065 = vmatprep.subr.mxu0 0.0
    %1066 = vmatpush1.msra.mxu0 0.0
    %1067 = vmatprep.subr.mxu0 0.0
    %1068 = vmatpush1.msra.mxu0 0.0
    %1069 = vmatprep.subr.mxu0 0.0
    %1070 = vmatpush1.msra.mxu0 0.0
    %1071 = vmatprep.subr.mxu0 0.0
    %1072 = vmatpush1.msra.mxu0 0.0
    %1073 = vmatprep.mubr.f32.mxu0 0.0
    %1074 = vmatmul.mubr.f32.gmra.mrb[0].mxu0 %v791
    %v1075 = vpop.f32.mrb[0].mxu0
    %v1076 = vadd.f32 0.0, %v1075
    %v1077 = vpop.f32.mrb[0].mxu0
    %1078 = vdwg.mxu0
    %1079 = vmatprep.subr.mxu0 0.0
    %1080 = vmatpush1.msra.mxu0 %v49
    %1081 = vmatprep.subr.mxu0 0.0
    %1082 = vmatpush1.msra.mxu0 %v50
    %1083 = vmatprep.subr.mxu0 0.0
    %1084 = vmatpush1.msra.mxu0 %v51
    %1085 = vmatprep.subr.mxu0 0.0
    %1086 = vmatpush1.msra.mxu0 %v52
    %1087 = vmatprep.subr.mxu0 0.0
    %1088 = vmatpush1.msra.mxu0 0.0
    %1089 = vmatprep.subr.mxu0 0.0
    %1090 = vmatpush1.msra.mxu0 0.0
    %1091 = vmatprep.subr.mxu0 0.0
    %1092 = vmatpush1.msra.mxu0 0.0
    %1093 = vmatprep.subr.mxu0 0.0
    %1094 = vmatpush1.msra.mxu0 0.0
    %1095 = vmatprep.subr.mxu0 0.0
    %1096 = vmatpush1.msra.mxu0 0.0
    %1097 = vmatprep.subr.mxu0 0.0
    %1098 = vmatpush1.msra.mxu0 0.0
    %1099 = vmatprep.subr.mxu0 0.0
    %1100 = vmatpush1.msra.mxu0 0.0
    %1101 = vmatprep.subr.mxu0 0.0
    %1102 = vmatpush1.msra.mxu0 0.0
    %1103 = vmatprep.subr.mxu0 0.0
    %1104 = vmatpush1.msra.mxu0 0.0
    %1105 = vmatprep.subr.mxu0 0.0
    %1106 = vmatpush1.msra.mxu0 0.0
    %1107 = vmatprep.subr.mxu0 0.0
    %1108 = vmatpush1.msra.mxu0 0.0
    %1109 = vmatprep.subr.mxu0 0.0
    %1110 = vmatpush1.msra.mxu0 0.0
    %1111 = vmatprep.subr.mxu0 0.0
    %1112 = vmatpush1.msra.mxu0 0.0
    %1113 = vmatprep.subr.mxu0 0.0
    %1114 = vmatpush1.msra.mxu0 0.0
    %1115 = vmatprep.subr.mxu0 0.0
    %1116 = vmatpush1.msra.mxu0 0.0
    %1117 = vmatprep.subr.mxu0 0.0
    %1118 = vmatpush1.msra.mxu0 0.0
    %1119 = vmatprep.subr.mxu0 0.0
    %1120 = vmatpush1.msra.mxu0 0.0
    %1121 = vmatprep.subr.mxu0 0.0
    %1122 = vmatpush1.msra.mxu0 0.0
    %1123 = vmatprep.subr.mxu0 0.0
    %1124 = vmatpush1.msra.mxu0 0.0
    %1125 = vmatprep.subr.mxu0 0.0
    %1126 = vmatpush1.msra.mxu0 0.0
    %1127 = vmatprep.subr.mxu0 0.0
    %1128 = vmatpush1.msra.mxu0 0.0
    %1129 = vmatprep.subr.mxu0 0.0
    %1130 = vmatpush1.msra.mxu0 0.0
    %1131 = vmatprep.subr.mxu0 0.0
    %1132 = vmatpush1.msra.mxu0 0.0
    %1133 = vmatprep.subr.mxu0 0.0
    %1134 = vmatpush1.msra.mxu0 0.0
    %1135 = vmatprep.subr.mxu0 0.0
    %1136 = vmatpush1.msra.mxu0 0.0
    %1137 = vmatprep.subr.mxu0 0.0
    %1138 = vmatpush1.msra.mxu0 0.0
    %1139 = vmatprep.subr.mxu0 0.0
    %1140 = vmatpush1.msra.mxu0 0.0
    %1141 = vmatprep.subr.mxu0 0.0
    %1142 = vmatpush1.msra.mxu0 0.0
    %1143 = vmatprep.mubr.f32.mxu0 0.0
    %1144 = vmatmul.mubr.f32.gmra.mrb[0].mxu0 %v791
    %v1145 = vpop.f32.mrb[0].mxu0
    %v1146 = vadd.f32 %v58, %v1145
    %v1147 = vpop.f32.mrb[0].mxu0
    %1148 = vdwg.mxu0
    %v1150 = vrot.slane %v1006, 6
    %v1151 = vrot.slane %v1006, 7
    %v1154 = vadd.f32 %v80, %v1150
    %v1155 = vadd.f32 %v81, %v1151
    %v1156 = vxor.u32 %v1154, 2147483648
    %v1157 = vxor.u32 %v1155, 2147483648
    %v1158 = vmul.f32 %v1156, 1.442695
    %v1159 = vpow.pop %v1158
    %v1160 = vmul.f32 %v1157, 1.442695
    %v1161 = vpow.pop %v1160
    %v1162 = vadd.f32 %v1159, 1.0
    %v1163 = vadd.f32 %v1161, 1.0
    %v1164 = vrcp.pop %v1162
    %v1165 = vmul.f32 1.0, %v1164
    %v1166 = vrcp.pop %v1163
    %v1167 = vmul.f32 1.0, %v1166
    %v1169 = vrot.slane %v1076, 6
    %v1170 = vrot.slane %v1076, 7
    %v1173 = vadd.f32 %v83, %v1169
    %v1174 = vadd.f32 %v84, %v1170
    %v1175 = vxor.u32 %v1173, 2147483648
    %v1176 = vxor.u32 %v1174, 2147483648
    %v1177 = vmul.f32 %v1175, 1.442695
    %v1178 = vpow.pop %v1177
    %v1179 = vmul.f32 %v1176, 1.442695
    %v1180 = vpow.pop %v1179
    %v1181 = vadd.f32 %v1178, 1.0
    %v1182 = vadd.f32 %v1180, 1.0
    %v1183 = vrcp.pop %v1181
    %v1184 = vmul.f32 1.0, %v1183
    %v1185 = vrcp.pop %v1182
    %v1186 = vmul.f32 1.0, %v1185
    %v1188 = vrot.slane %v1146, 6
    %v1189 = vrot.slane %v1146, 7
    %v1192 = vmul.f32 %v1165, %v1188
    %v1193 = vmul.f32 %v1167, %v1189
    %v1194 = vadd.f32 %v86, %v1192
    %v1195 = vadd.f32 %v87, %v1193
    %v1196 = vtanh.pop %v1194
    %v1197 = vtanh.pop %v1195
    %v1198 = vsub.f32 1.0, %v1184
    %v1199 = vsub.f32 1.0, %v1186
    %v1200 = vmul.f32 %v1198, %v1196
    %v1201 = vmul.f32 %v1199, %v1197
    %v1202 = vrot.slane %v785, 7
    %v1203 = vrot.slane %v786, 7
    %v1206 = vmul.f32 %v1184, %v1202
    %v1207 = vmul.f32 %v1186, %v1203
    %v1208 = vadd.f32 %v1200, %v1206
    %v1209 = vadd.f32 %v1201, %v1207
    %v1212 = vrot.slane %v1208, 2
    %v1213 = vrot.slane %v1209, 1
    %v1214 = vsel %vm363, %v1213, %v1212
    %v1215 = vsel %vm89, %v1214, 0
    %1217 = vmatprep.subr.mxu0 0.0
    %1218 = vmatpush1.msra.mxu0 %v60
    %1219 = vmatprep.subr.mxu0 0.0
    %1220 = vmatpush1.msra.mxu0 %v61
    %1221 = vmatprep.subr.mxu0 0.0
    %1222 = vmatpush1.msra.mxu0 %v62
    %1223 = vmatprep.subr.mxu0 0.0
    %1224 = vmatpush1.msra.mxu0 %v63
    %1225 = vmatprep.subr.mxu0 0.0
    %1226 = vmatpush1.msra.mxu0 0.0
    %1227 = vmatprep.subr.mxu0 0.0
    %1228 = vmatpush1.msra.mxu0 0.0
    %1229 = vmatprep.subr.mxu0 0.0
    %1230 = vmatpush1.msra.mxu0 0.0
    %1231 = vmatprep.subr.mxu0 0.0
    %1232 = vmatpush1.msra.mxu0 0.0
    %1233 = vmatprep.subr.mxu0 0.0
    %1234 = vmatpush1.msra.mxu0 0.0
    %1235 = vmatprep.subr.mxu0 0.0
    %1236 = vmatpush1.msra.mxu0 0.0
    %1237 = vmatprep.subr.mxu0 0.0
    %1238 = vmatpush1.msra.mxu0 0.0
    %1239 = vmatprep.subr.mxu0 0.0
    %1240 = vmatpush1.msra.mxu0 0.0
    %1241 = vmatprep.subr.mxu0 0.0
    %1242 = vmatpush1.msra.mxu0 0.0
    %1243 = vmatprep.subr.mxu0 0.0
    %1244 = vmatpush1.msra.mxu0 0.0
    %1245 = vmatprep.subr.mxu0 0.0
    %1246 = vmatpush1.msra.mxu0 0.0
    %1247 = vmatprep.subr.mxu0 0.0
    %1248 = vmatpush1.msra.mxu0 0.0
    %1249 = vmatprep.subr.mxu0 0.0
    %1250 = vmatpush1.msra.mxu0 0.0
    %1251 = vmatprep.subr.mxu0 0.0
    %1252 = vmatpush1.msra.mxu0 0.0
    %1253 = vmatprep.subr.mxu0 0.0
    %1254 = vmatpush1.msra.mxu0 0.0
    %1255 = vmatprep.subr.mxu0 0.0
    %1256 = vmatpush1.msra.mxu0 0.0
    %1257 = vmatprep.subr.mxu0 0.0
    %1258 = vmatpush1.msra.mxu0 0.0
    %1259 = vmatprep.subr.mxu0 0.0
    %1260 = vmatpush1.msra.mxu0 0.0
    %1261 = vmatprep.subr.mxu0 0.0
    %1262 = vmatpush1.msra.mxu0 0.0
    %1263 = vmatprep.subr.mxu0 0.0
    %1264 = vmatpush1.msra.mxu0 0.0
    %1265 = vmatprep.subr.mxu0 0.0
    %1266 = vmatpush1.msra.mxu0 0.0
    %1267 = vmatprep.subr.mxu0 0.0
    %1268 = vmatpush1.msra.mxu0 0.0
    %1269 = vmatprep.subr.mxu0 0.0
    %1270 = vmatpush1.msra.mxu0 0.0
    %1271 = vmatprep.subr.mxu0 0.0
    %1272 = vmatpush1.msra.mxu0 0.0
    %1273 = vmatprep.subr.mxu0 0.0
    %1274 = vmatpush1.msra.mxu0 0.0
    %1275 = vmatprep.subr.mxu0 0.0
    %1276 = vmatpush1.msra.mxu0 0.0
    %1277 = vmatprep.subr.mxu0 0.0
    %1278 = vmatpush1.msra.mxu0 0.0
    %1279 = vmatprep.subr.mxu0 0.0
    %1280 = vmatpush1.msra.mxu0 0.0
    %1281 = vmatprep.mubr.f32.mxu0 0.0
    %1282 = vmatmul.mubr.f32.gmra.mrb[0].mxu0 %v1215
    %v1283 = vpop.f32.mrb[0].mxu0
    %v1284 = vadd.f32 %v77, %v1283
    %v1285 = vpop.f32.mrb[0].mxu0
    %1286 = vdwg.mxu0
    %v1287 = vmax.f32 %v1284, 0.0
    %v1289 = vsel %vm444, %v1287, 0
    %1291 = vmatprep.subr.mxu0 0.0
    %1292 = vmatpush1.msra.mxu0 %v64
    %1293 = vmatprep.subr.mxu0 0.0
    %1294 = vmatpush1.msra.mxu0 %v65
    %1295 = vmatprep.subr.mxu0 0.0
    %1296 = vmatpush1.msra.mxu0 %v66
    %1297 = vmatprep.subr.mxu0 0.0
    %1298 = vmatpush1.msra.mxu0 %v67
    %1299 = vmatprep.subr.mxu0 0.0
    %1300 = vmatpush1.msra.mxu0 %v68
    %1301 = vmatprep.subr.mxu0 0.0
    %1302 = vmatpush1.msra.mxu0 %v69
    %1303 = vmatprep.subr.mxu0 0.0
    %1304 = vmatpush1.msra.mxu0 %v70
    %1305 = vmatprep.subr.mxu0 0.0
    %1306 = vmatpush1.msra.mxu0 %v71
    %1307 = vmatprep.subr.mxu0 0.0
    %1308 = vmatpush1.msra.mxu0 0.0
    %1309 = vmatprep.subr.mxu0 0.0
    %1310 = vmatpush1.msra.mxu0 0.0
    %1311 = vmatprep.subr.mxu0 0.0
    %1312 = vmatpush1.msra.mxu0 0.0
    %1313 = vmatprep.subr.mxu0 0.0
    %1314 = vmatpush1.msra.mxu0 0.0
    %1315 = vmatprep.subr.mxu0 0.0
    %1316 = vmatpush1.msra.mxu0 0.0
    %1317 = vmatprep.subr.mxu0 0.0
    %1318 = vmatpush1.msra.mxu0 0.0
    %1319 = vmatprep.subr.mxu0 0.0
    %1320 = vmatpush1.msra.mxu0 0.0
    %1321 = vmatprep.subr.mxu0 0.0
    %1322 = vmatpush1.msra.mxu0 0.0
    %1323 = vmatprep.subr.mxu0 0.0
    %1324 = vmatpush1.msra.mxu0 0.0
    %1325 = vmatprep.subr.mxu0 0.0
    %1326 = vmatpush1.msra.mxu0 0.0
    %1327 = vmatprep.subr.mxu0 0.0
    %1328 = vmatpush1.msra.mxu0 0.0
    %1329 = vmatprep.subr.mxu0 0.0
    %1330 = vmatpush1.msra.mxu0 0.0
    %1331 = vmatprep.subr.mxu0 0.0
    %1332 = vmatpush1.msra.mxu0 0.0
    %1333 = vmatprep.subr.mxu0 0.0
    %1334 = vmatpush1.msra.mxu0 0.0
    %1335 = vmatprep.subr.mxu0 0.0
    %1336 = vmatpush1.msra.mxu0 0.0
    %1337 = vmatprep.subr.mxu0 0.0
    %1338 = vmatpush1.msra.mxu0 0.0
    %1339 = vmatprep.subr.mxu0 0.0
    %1340 = vmatpush1.msra.mxu0 0.0
    %1341 = vmatprep.subr.mxu0 0.0
    %1342 = vmatpush1.msra.mxu0 0.0
    %1343 = vmatprep.subr.mxu0 0.0
    %1344 = vmatpush1.msra.mxu0 0.0
    %1345 = vmatprep.subr.mxu0 0.0
    %1346 = vmatpush1.msra.mxu0 0.0
    %1347 = vmatprep.subr.mxu0 0.0
    %1348 = vmatpush1.msra.mxu0 0.0
    %1349 = vmatprep.subr.mxu0 0.0
    %1350 = vmatpush1.msra.mxu0 0.0
    %1351 = vmatprep.subr.mxu0 0.0
    %1352 = vmatpush1.msra.mxu0 0.0
    %1353 = vmatprep.subr.mxu0 0.0
    %1354 = vmatpush1.msra.mxu0 0.0
    %1355 = vmatprep.mubr.f32.mxu0 0.0
    %1356 = vmatmul.mubr.f32.gmra.mrb[0].mxu0 %v1289
    %v1357 = vpop.f32.mrb[0].mxu0
    %v1358 = vadd.f32 %v442, %v1357
    %v1359 = vpop.f32.mrb[0].mxu0
    %1360 = vdwg.mxu0
    %s1361 = scalar_lea.vmem %s8, 4
    %1362 = vst.msk [vmem:[%s1361] sm:$0x3] %vm518, %v1358
    %1363 = vmatprep.subr.mxu0 0.0
    %1364 = vmatpush1.msra.mxu0 %v39
    %1365 = vmatprep.subr.mxu0 0.0
    %1366 = vmatpush1.msra.mxu0 %v40
    %1367 = vmatprep.subr.mxu0 0.0
    %1368 = vmatpush1.msra.mxu0 %v41
    %1369 = vmatprep.subr.mxu0 0.0
    %1370 = vmatpush1.msra.mxu0 %v42
    %1371 = vmatprep.subr.mxu0 0.0
    %1372 = vmatpush1.msra.mxu0 0.0
    %1373 = vmatprep.subr.mxu0 0.0
    %1374 = vmatpush1.msra.mxu0 0.0
    %1375 = vmatprep.subr.mxu0 0.0
    %1376 = vmatpush1.msra.mxu0 0.0
    %1377 = vmatprep.subr.mxu0 0.0
    %1378 = vmatpush1.msra.mxu0 0.0
    %1379 = vmatprep.subr.mxu0 0.0
    %1380 = vmatpush1.msra.mxu0 0.0
    %1381 = vmatprep.subr.mxu0 0.0
    %1382 = vmatpush1.msra.mxu0 0.0
    %1383 = vmatprep.subr.mxu0 0.0
    %1384 = vmatpush1.msra.mxu0 0.0
    %1385 = vmatprep.subr.mxu0 0.0
    %1386 = vmatpush1.msra.mxu0 0.0
    %1387 = vmatprep.subr.mxu0 0.0
    %1388 = vmatpush1.msra.mxu0 0.0
    %1389 = vmatprep.subr.mxu0 0.0
    %1390 = vmatpush1.msra.mxu0 0.0
    %1391 = vmatprep.subr.mxu0 0.0
    %1392 = vmatpush1.msra.mxu0 0.0
    %1393 = vmatprep.subr.mxu0 0.0
    %1394 = vmatpush1.msra.mxu0 0.0
    %1395 = vmatprep.subr.mxu0 0.0
    %1396 = vmatpush1.msra.mxu0 0.0
    %1397 = vmatprep.subr.mxu0 0.0
    %1398 = vmatpush1.msra.mxu0 0.0
    %1399 = vmatprep.subr.mxu0 0.0
    %1400 = vmatpush1.msra.mxu0 0.0
    %1401 = vmatprep.subr.mxu0 0.0
    %1402 = vmatpush1.msra.mxu0 0.0
    %1403 = vmatprep.subr.mxu0 0.0
    %1404 = vmatpush1.msra.mxu0 0.0
    %1405 = vmatprep.subr.mxu0 0.0
    %1406 = vmatpush1.msra.mxu0 0.0
    %1407 = vmatprep.subr.mxu0 0.0
    %1408 = vmatpush1.msra.mxu0 0.0
    %1409 = vmatprep.subr.mxu0 0.0
    %1410 = vmatpush1.msra.mxu0 0.0
    %1411 = vmatprep.subr.mxu0 0.0
    %1412 = vmatpush1.msra.mxu0 0.0
    %1413 = vmatprep.subr.mxu0 0.0
    %1414 = vmatpush1.msra.mxu0 0.0
    %1415 = vmatprep.subr.mxu0 0.0
    %1416 = vmatpush1.msra.mxu0 0.0
    %1417 = vmatprep.subr.mxu0 0.0
    %1418 = vmatpush1.msra.mxu0 0.0
    %1419 = vmatprep.subr.mxu0 0.0
    %1420 = vmatpush1.msra.mxu0 0.0
    %1421 = vmatprep.subr.mxu0 0.0
    %1422 = vmatpush1.msra.mxu0 0.0
    %1423 = vmatprep.subr.mxu0 0.0
    %1424 = vmatpush1.msra.mxu0 0.0
    %1425 = vmatprep.subr.mxu0 0.0
    %1426 = vmatpush1.msra.mxu0 0.0
    %1427 = vmatprep.mubr.f32.mxu0 0.0
    %1428 = vmatmul.mubr.f32.gmra.mrb[0].mxu0 %v1215
    %v1429 = vpop.f32.mrb[0].mxu0
    %v1430 = vadd.f32 0.0, %v1429
    %v1431 = vpop.f32.mrb[0].mxu0
    %1432 = vdwg.mxu0
    %1433 = vmatprep.subr.mxu0 0.0
    %1434 = vmatpush1.msra.mxu0 %v44
    %1435 = vmatprep.subr.mxu0 0.0
    %1436 = vmatpush1.msra.mxu0 %v45
    %1437 = vmatprep.subr.mxu0 0.0
    %1438 = vmatpush1.msra.mxu0 %v46
    %1439 = vmatprep.subr.mxu0 0.0
    %1440 = vmatpush1.msra.mxu0 %v47
    %1441 = vmatprep.subr.mxu0 0.0
    %1442 = vmatpush1.msra.mxu0 0.0
    %1443 = vmatprep.subr.mxu0 0.0
    %1444 = vmatpush1.msra.mxu0 0.0
    %1445 = vmatprep.subr.mxu0 0.0
    %1446 = vmatpush1.msra.mxu0 0.0
    %1447 = vmatprep.subr.mxu0 0.0
    %1448 = vmatpush1.msra.mxu0 0.0
    %1449 = vmatprep.subr.mxu0 0.0
    %1450 = vmatpush1.msra.mxu0 0.0
    %1451 = vmatprep.subr.mxu0 0.0
    %1452 = vmatpush1.msra.mxu0 0.0
    %1453 = vmatprep.subr.mxu0 0.0
    %1454 = vmatpush1.msra.mxu0 0.0
    %1455 = vmatprep.subr.mxu0 0.0
    %1456 = vmatpush1.msra.mxu0 0.0
    %1457 = vmatprep.subr.mxu0 0.0
    %1458 = vmatpush1.msra.mxu0 0.0
    %1459 = vmatprep.subr.mxu0 0.0
    %1460 = vmatpush1.msra.mxu0 0.0
    %1461 = vmatprep.subr.mxu0 0.0
    %1462 = vmatpush1.msra.mxu0 0.0
    %1463 = vmatprep.subr.mxu0 0.0
    %1464 = vmatpush1.msra.mxu0 0.0
    %1465 = vmatprep.subr.mxu0 0.0
    %1466 = vmatpush1.msra.mxu0 0.0
    %1467 = vmatprep.subr.mxu0 0.0
    %1468 = vmatpush1.msra.mxu0 0.0
    %1469 = vmatprep.subr.mxu0 0.0
    %1470 = vmatpush1.msra.mxu0 0.0
    %1471 = vmatprep.subr.mxu0 0.0
    %1472 = vmatpush1.msra.mxu0 0.0
    %1473 = vmatprep.subr.mxu0 0.0
    %1474 = vmatpush1.msra.mxu0 0.0
    %1475 = vmatprep.subr.mxu0 0.0
    %1476 = vmatpush1.msra.mxu0 0.0
    %1477 = vmatprep.subr.mxu0 0.0
    %1478 = vmatpush1.msra.mxu0 0.0
    %1479 = vmatprep.subr.mxu0 0.0
    %1480 = vmatpush1.msra.mxu0 0.0
    %1481 = vmatprep.subr.mxu0 0.0
    %1482 = vmatpush1.msra.mxu0 0.0
    %1483 = vmatprep.subr.mxu0 0.0
    %1484 = vmatpush1.msra.mxu0 0.0
    %1485 = vmatprep.subr.mxu0 0.0
    %1486 = vmatpush1.msra.mxu0 0.0
    %1487 = vmatprep.subr.mxu0 0.0
    %1488 = vmatpush1.msra.mxu0 0.0
    %1489 = vmatprep.subr.mxu0 0.0
    %1490 = vmatpush1.msra.mxu0 0.0
    %1491 = vmatprep.subr.mxu0 0.0
    %1492 = vmatpush1.msra.mxu0 0.0
    %1493 = vmatprep.subr.mxu0 0.0
    %1494 = vmatpush1.msra.mxu0 0.0
    %1495 = vmatprep.subr.mxu0 0.0
    %1496 = vmatpush1.msra.mxu0 0.0
    %1497 = vmatprep.mubr.f32.mxu0 0.0
    %1498 = vmatmul.mubr.f32.gmra.mrb[0].mxu0 %v1215
    %v1499 = vpop.f32.mrb[0].mxu0
    %v1500 = vadd.f32 0.0, %v1499
    %v1501 = vpop.f32.mrb[0].mxu0
    %1502 = vdwg.mxu0
    %1503 = vmatprep.subr.mxu0 0.0
    %1504 = vmatpush1.msra.mxu0 %v49
    %1505 = vmatprep.subr.mxu0 0.0
    %1506 = vmatpush1.msra.mxu0 %v50
    %1507 = vmatprep.subr.mxu0 0.0
    %1508 = vmatpush1.msra.mxu0 %v51
    %1509 = vmatprep.subr.mxu0 0.0
    %1510 = vmatpush1.msra.mxu0 %v52
    %1511 = vmatprep.subr.mxu0 0.0
    %1512 = vmatpush1.msra.mxu0 0.0
    %1513 = vmatprep.subr.mxu0 0.0
    %1514 = vmatpush1.msra.mxu0 0.0
    %1515 = vmatprep.subr.mxu0 0.0
    %1516 = vmatpush1.msra.mxu0 0.0
    %1517 = vmatprep.subr.mxu0 0.0
    %1518 = vmatpush1.msra.mxu0 0.0
    %1519 = vmatprep.subr.mxu0 0.0
    %1520 = vmatpush1.msra.mxu0 0.0
    %1521 = vmatprep.subr.mxu0 0.0
    %1522 = vmatpush1.msra.mxu0 0.0
    %1523 = vmatprep.subr.mxu0 0.0
    %1524 = vmatpush1.msra.mxu0 0.0
    %1525 = vmatprep.subr.mxu0 0.0
    %1526 = vmatpush1.msra.mxu0 0.0
    %1527 = vmatprep.subr.mxu0 0.0
    %1528 = vmatpush1.msra.mxu0 0.0
    %1529 = vmatprep.subr.mxu0 0.0
    %1530 = vmatpush1.msra.mxu0 0.0
    %1531 = vmatprep.subr.mxu0 0.0
    %1532 = vmatpush1.msra.mxu0 0.0
    %1533 = vmatprep.subr.mxu0 0.0
    %1534 = vmatpush1.msra.mxu0 0.0
    %1535 = vmatprep.subr.mxu0 0.0
    %1536 = vmatpush1.msra.mxu0 0.0
    %1537 = vmatprep.subr.mxu0 0.0
    %1538 = vmatpush1.msra.mxu0 0.0
    %1539 = vmatprep.subr.mxu0 0.0
    %1540 = vmatpush1.msra.mxu0 0.0
    %1541 = vmatprep.subr.mxu0 0.0
    %1542 = vmatpush1.msra.mxu0 0.0
    %1543 = vmatprep.subr.mxu0 0.0
    %1544 = vmatpush1.msra.mxu0 0.0
    %1545 = vmatprep.subr.mxu0 0.0
    %1546 = vmatpush1.msra.mxu0 0.0
    %1547 = vmatprep.subr.mxu0 0.0
    %1548 = vmatpush1.msra.mxu0 0.0
    %1549 = vmatprep.subr.mxu0 0.0
    %1550 = vmatpush1.msra.mxu0 0.0
    %1551 = vmatprep.subr.mxu0 0.0
    %1552 = vmatpush1.msra.mxu0 0.0
    %1553 = vmatprep.subr.mxu0 0.0
    %1554 = vmatpush1.msra.mxu0 0.0
    %1555 = vmatprep.subr.mxu0 0.0
    %1556 = vmatpush1.msra.mxu0 0.0
    %1557 = vmatprep.subr.mxu0 0.0
    %1558 = vmatpush1.msra.mxu0 0.0
    %1559 = vmatprep.subr.mxu0 0.0
    %1560 = vmatpush1.msra.mxu0 0.0
    %1561 = vmatprep.subr.mxu0 0.0
    %1562 = vmatpush1.msra.mxu0 0.0
    %1563 = vmatprep.subr.mxu0 0.0
    %1564 = vmatpush1.msra.mxu0 0.0
    %1565 = vmatprep.subr.mxu0 0.0
    %1566 = vmatpush1.msra.mxu0 0.0
    %1567 = vmatprep.mubr.f32.mxu0 0.0
    %1568 = vmatmul.mubr.f32.gmra.mrb[0].mxu0 %v1215
    %v1569 = vpop.f32.mrb[0].mxu0
    %v1570 = vadd.f32 %v58, %v1569
    %v1571 = vpop.f32.mrb[0].mxu0
    %1572 = vdwg.mxu0
    %v1574 = vrot.slane %v1430, 5
    %v1575 = vrot.slane %v1430, 6
    %v1578 = vadd.f32 %v80, %v1574
    %v1579 = vadd.f32 %v81, %v1575
    %v1580 = vxor.u32 %v1578, 2147483648
    %v1581 = vxor.u32 %v1579, 2147483648
    %v1582 = vmul.f32 %v1580, 1.442695
    %v1583 = vpow.pop %v1582
    %v1584 = vmul.f32 %v1581, 1.442695
    %v1585 = vpow.pop %v1584
    %v1586 = vadd.f32 %v1583, 1.0
    %v1587 = vadd.f32 %v1585, 1.0
    %v1588 = vrcp.pop %v1586
    %v1589 = vmul.f32 1.0, %v1588
    %v1590 = vrcp.pop %v1587
    %v1591 = vmul.f32 1.0, %v1590
    %v1593 = vrot.slane %v1500, 5
    %v1594 = vrot.slane %v1500, 6
    %v1597 = vadd.f32 %v83, %v1593
    %v1598 = vadd.f32 %v84, %v1594
    %v1599 = vxor.u32 %v1597, 2147483648
    %v1600 = vxor.u32 %v1598, 2147483648
    %v1601 = vmul.f32 %v1599, 1.442695
    %v1602 = vpow.pop %v1601
    %v1603 = vmul.f32 %v1600, 1.442695
    %v1604 = vpow.pop %v1603
    %v1605 = vadd.f32 %v1602, 1.0
    %v1606 = vadd.f32 %v1604, 1.0
    %v1607 = vrcp.pop %v1605
    %v1608 = vmul.f32 1.0, %v1607
    %v1609 = vrcp.pop %v1606
    %v1610 = vmul.f32 1.0, %v1609
    %v1612 = vrot.slane %v1570, 5
    %v1613 = vrot.slane %v1570, 6
    %v1616 = vmul.f32 %v1589, %v1612
    %v1617 = vmul.f32 %v1591, %v1613
    %v1618 = vadd.f32 %v86, %v1616
    %v1619 = vadd.f32 %v87, %v1617
    %v1620 = vtanh.pop %v1618
    %v1621 = vtanh.pop %v1619
    %v1622 = vsub.f32 1.0, %v1608
    %v1623 = vsub.f32 1.0, %v1610
    %v1624 = vmul.f32 %v1622, %v1620
    %v1625 = vmul.f32 %v1623, %v1621
    %v1626 = vrot.slane %v1208, 7
    %v1627 = vrot.slane %v1209, 7
    %v1630 = vmul.f32 %v1608, %v1626
    %v1631 = vmul.f32 %v1610, %v1627
    %v1632 = vadd.f32 %v1624, %v1630
    %v1633 = vadd.f32 %v1625, %v1631
    %v1636 = vrot.slane %v1632, 3
    %v1637 = vrot.slane %v1633, 2
    %v1638 = vsel %vm363, %v1637, %v1636
    %v1639 = vsel %vm89, %v1638, 0
    %1641 = vmatprep.subr.mxu0 0.0
    %1642 = vmatpush1.msra.mxu0 %v60
    %1643 = vmatprep.subr.mxu0 0.0
    %1644 = vmatpush1.msra.mxu0 %v61
    %1645 = vmatprep.subr.mxu0 0.0
    %1646 = vmatpush1.msra.mxu0 %v62
    %1647 = vmatprep.subr.mxu0 0.0
    %1648 = vmatpush1.msra.mxu0 %v63
    %1649 = vmatprep.subr.mxu0 0.0
    %1650 = vmatpush1.msra.mxu0 0.0
    %1651 = vmatprep.subr.mxu0 0.0
    %1652 = vmatpush1.msra.mxu0 0.0
    %1653 = vmatprep.subr.mxu0 0.0
    %1654 = vmatpush1.msra.mxu0 0.0
    %1655 = vmatprep.subr.mxu0 0.0
    %1656 = vmatpush1.msra.mxu0 0.0
    %1657 = vmatprep.subr.mxu0 0.0
    %1658 = vmatpush1.msra.mxu0 0.0
    %1659 = vmatprep.subr.mxu0 0.0
    %1660 = vmatpush1.msra.mxu0 0.0
    %1661 = vmatprep.subr.mxu0 0.0
    %1662 = vmatpush1.msra.mxu0 0.0
    %1663 = vmatprep.subr.mxu0 0.0
    %1664 = vmatpush1.msra.mxu0 0.0
    %1665 = vmatprep.subr.mxu0 0.0
    %1666 = vmatpush1.msra.mxu0 0.0
    %1667 = vmatprep.subr.mxu0 0.0
    %1668 = vmatpush1.msra.mxu0 0.0
    %1669 = vmatprep.subr.mxu0 0.0
    %1670 = vmatpush1.msra.mxu0 0.0
    %1671 = vmatprep.subr.mxu0 0.0
    %1672 = vmatpush1.msra.mxu0 0.0
    %1673 = vmatprep.subr.mxu0 0.0
    %1674 = vmatpush1.msra.mxu0 0.0
    %1675 = vmatprep.subr.mxu0 0.0
    %1676 = vmatpush1.msra.mxu0 0.0
    %1677 = vmatprep.subr.mxu0 0.0
    %1678 = vmatpush1.msra.mxu0 0.0
    %1679 = vmatprep.subr.mxu0 0.0
    %1680 = vmatpush1.msra.mxu0 0.0
    %1681 = vmatprep.subr.mxu0 0.0
    %1682 = vmatpush1.msra.mxu0 0.0
    %1683 = vmatprep.subr.mxu0 0.0
    %1684 = vmatpush1.msra.mxu0 0.0
    %1685 = vmatprep.subr.mxu0 0.0
    %1686 = vmatpush1.msra.mxu0 0.0
    %1687 = vmatprep.subr.mxu0 0.0
    %1688 = vmatpush1.msra.mxu0 0.0
    %1689 = vmatprep.subr.mxu0 0.0
    %1690 = vmatpush1.msra.mxu0 0.0
    %1691 = vmatprep.subr.mxu0 0.0
    %1692 = vmatpush1.msra.mxu0 0.0
    %1693 = vmatprep.subr.mxu0 0.0
    %1694 = vmatpush1.msra.mxu0 0.0
    %1695 = vmatprep.subr.mxu0 0.0
    %1696 = vmatpush1.msra.mxu0 0.0
    %1697 = vmatprep.subr.mxu0 0.0
    %1698 = vmatpush1.msra.mxu0 0.0
    %1699 = vmatprep.subr.mxu0 0.0
    %1700 = vmatpush1.msra.mxu0 0.0
    %1701 = vmatprep.subr.mxu0 0.0
    %1702 = vmatpush1.msra.mxu0 0.0
    %1703 = vmatprep.subr.mxu0 0.0
    %1704 = vmatpush1.msra.mxu0 0.0
    %1705 = vmatprep.mubr.f32.mxu0 0.0
    %1706 = vmatmul.mubr.f32.gmra.mrb[0].mxu0 %v1639
    %v1707 = vpop.f32.mrb[0].mxu0
    %v1708 = vadd.f32 %v77, %v1707
    %v1709 = vpop.f32.mrb[0].mxu0
    %1710 = vdwg.mxu0
    %v1711 = vmax.f32 %v1708, 0.0
    %v1713 = vsel %vm444, %v1711, 0
    %1715 = vmatprep.subr.mxu0 0.0
    %1716 = vmatpush1.msra.mxu0 %v64
    %1717 = vmatprep.subr.mxu0 0.0
    %1718 = vmatpush1.msra.mxu0 %v65
    %1719 = vmatprep.subr.mxu0 0.0
    %1720 = vmatpush1.msra.mxu0 %v66
    %1721 = vmatprep.subr.mxu0 0.0
    %1722 = vmatpush1.msra.mxu0 %v67
    %1723 = vmatprep.subr.mxu0 0.0
    %1724 = vmatpush1.msra.mxu0 %v68
    %1725 = vmatprep.subr.mxu0 0.0
    %1726 = vmatpush1.msra.mxu0 %v69
    %1727 = vmatprep.subr.mxu0 0.0
    %1728 = vmatpush1.msra.mxu0 %v70
    %1729 = vmatprep.subr.mxu0 0.0
    %1730 = vmatpush1.msra.mxu0 %v71
    %1731 = vmatprep.subr.mxu0 0.0
    %1732 = vmatpush1.msra.mxu0 0.0
    %1733 = vmatprep.subr.mxu0 0.0
    %1734 = vmatpush1.msra.mxu0 0.0
    %1735 = vmatprep.subr.mxu0 0.0
    %1736 = vmatpush1.msra.mxu0 0.0
    %1737 = vmatprep.subr.mxu0 0.0
    %1738 = vmatpush1.msra.mxu0 0.0
    %1739 = vmatprep.subr.mxu0 0.0
    %1740 = vmatpush1.msra.mxu0 0.0
    %1741 = vmatprep.subr.mxu0 0.0
    %1742 = vmatpush1.msra.mxu0 0.0
    %1743 = vmatprep.subr.mxu0 0.0
    %1744 = vmatpush1.msra.mxu0 0.0
    %1745 = vmatprep.subr.mxu0 0.0
    %1746 = vmatpush1.msra.mxu0 0.0
    %1747 = vmatprep.subr.mxu0 0.0
    %1748 = vmatpush1.msra.mxu0 0.0
    %1749 = vmatprep.subr.mxu0 0.0
    %1750 = vmatpush1.msra.mxu0 0.0
    %1751 = vmatprep.subr.mxu0 0.0
    %1752 = vmatpush1.msra.mxu0 0.0
    %1753 = vmatprep.subr.mxu0 0.0
    %1754 = vmatpush1.msra.mxu0 0.0
    %1755 = vmatprep.subr.mxu0 0.0
    %1756 = vmatpush1.msra.mxu0 0.0
    %1757 = vmatprep.subr.mxu0 0.0
    %1758 = vmatpush1.msra.mxu0 0.0
    %1759 = vmatprep.subr.mxu0 0.0
    %1760 = vmatpush1.msra.mxu0 0.0
    %1761 = vmatprep.subr.mxu0 0.0
    %1762 = vmatpush1.msra.mxu0 0.0
    %1763 = vmatprep.subr.mxu0 0.0
    %1764 = vmatpush1.msra.mxu0 0.0
    %1765 = vmatprep.subr.mxu0 0.0
    %1766 = vmatpush1.msra.mxu0 0.0
    %1767 = vmatprep.subr.mxu0 0.0
    %1768 = vmatpush1.msra.mxu0 0.0
    %1769 = vmatprep.subr.mxu0 0.0
    %1770 = vmatpush1.msra.mxu0 0.0
    %1771 = vmatprep.subr.mxu0 0.0
    %1772 = vmatpush1.msra.mxu0 0.0
    %1773 = vmatprep.subr.mxu0 0.0
    %1774 = vmatpush1.msra.mxu0 0.0
    %1775 = vmatprep.subr.mxu0 0.0
    %1776 = vmatpush1.msra.mxu0 0.0
    %1777 = vmatprep.subr.mxu0 0.0
    %1778 = vmatpush1.msra.mxu0 0.0
    %1779 = vmatprep.mubr.f32.mxu0 0.0
    %1780 = vmatmul.mubr.f32.gmra.mrb[0].mxu0 %v1713
    %v1781 = vpop.f32.mrb[0].mxu0
    %v1782 = vadd.f32 %v442, %v1781
    %v1783 = vpop.f32.mrb[0].mxu0
    %1784 = vdwg.mxu0
    %s1785 = scalar_lea.vmem %s8, 6
    %1786 = vst.msk [vmem:[%s1785] sm:$0x3] %vm518, %v1782
    %1787 = vmatprep.subr.mxu0 0.0
    %1788 = vmatpush1.msra.mxu0 %v39
    %1789 = vmatprep.subr.mxu0 0.0
    %1790 = vmatpush1.msra.mxu0 %v40
    %1791 = vmatprep.subr.mxu0 0.0
    %1792 = vmatpush1.msra.mxu0 %v41
    %1793 = vmatprep.subr.mxu0 0.0
    %1794 = vmatpush1.msra.mxu0 %v42
    %1795 = vmatprep.subr.mxu0 0.0
    %1796 = vmatpush1.msra.mxu0 0.0
    %1797 = vmatprep.subr.mxu0 0.0
    %1798 = vmatpush1.msra.mxu0 0.0
    %1799 = vmatprep.subr.mxu0 0.0
    %1800 = vmatpush1.msra.mxu0 0.0
    %1801 = vmatprep.subr.mxu0 0.0
    %1802 = vmatpush1.msra.mxu0 0.0
    %1803 = vmatprep.subr.mxu0 0.0
    %1804 = vmatpush1.msra.mxu0 0.0
    %1805 = vmatprep.subr.mxu0 0.0
    %1806 = vmatpush1.msra.mxu0 0.0
    %1807 = vmatprep.subr.mxu0 0.0
    %1808 = vmatpush1.msra.mxu0 0.0
    %1809 = vmatprep.subr.mxu0 0.0
    %1810 = vmatpush1.msra.mxu0 0.0
    %1811 = vmatprep.subr.mxu0 0.0
    %1812 = vmatpush1.msra.mxu0 0.0
    %1813 = vmatprep.subr.mxu0 0.0
    %1814 = vmatpush1.msra.mxu0 0.0
    %1815 = vmatprep.subr.mxu0 0.0
    %1816 = vmatpush1.msra.mxu0 0.0
    %1817 = vmatprep.subr.mxu0 0.0
    %1818 = vmatpush1.msra.mxu0 0.0
    %1819 = vmatprep.subr.mxu0 0.0
    %1820 = vmatpush1.msra.mxu0 0.0
    %1821 = vmatprep.subr.mxu0 0.0
    %1822 = vmatpush1.msra.mxu0 0.0
    %1823 = vmatprep.subr.mxu0 0.0
    %1824 = vmatpush1.msra.mxu0 0.0
    %1825 = vmatprep.subr.mxu0 0.0
    %1826 = vmatpush1.msra.mxu0 0.0
    %1827 = vmatprep.subr.mxu0 0.0
    %1828 = vmatpush1.msra.mxu0 0.0
    %1829 = vmatprep.subr.mxu0 0.0
    %1830 = vmatpush1.msra.mxu0 0.0
    %1831 = vmatprep.subr.mxu0 0.0
    %1832 = vmatpush1.msra.mxu0 0.0
    %1833 = vmatprep.subr.mxu0 0.0
    %1834 = vmatpush1.msra.mxu0 0.0
    %1835 = vmatprep.subr.mxu0 0.0
    %1836 = vmatpush1.msra.mxu0 0.0
    %1837 = vmatprep.subr.mxu0 0.0
    %1838 = vmatpush1.msra.mxu0 0.0
    %1839 = vmatprep.subr.mxu0 0.0
    %1840 = vmatpush1.msra.mxu0 0.0
    %1841 = vmatprep.subr.mxu0 0.0
    %1842 = vmatpush1.msra.mxu0 0.0
    %1843 = vmatprep.subr.mxu0 0.0
    %1844 = vmatpush1.msra.mxu0 0.0
    %1845 = vmatprep.subr.mxu0 0.0
    %1846 = vmatpush1.msra.mxu0 0.0
    %1847 = vmatprep.subr.mxu0 0.0
    %1848 = vmatpush1.msra.mxu0 0.0
    %1849 = vmatprep.subr.mxu0 0.0
    %1850 = vmatpush1.msra.mxu0 0.0
    %1851 = vmatprep.mubr.f32.mxu0 0.0
    %1852 = vmatmul.mubr.f32.gmra.mrb[0].mxu0 %v1639
    %v1853 = vpop.f32.mrb[0].mxu0
    %v1854 = vadd.f32 0.0, %v1853
    %v1855 = vpop.f32.mrb[0].mxu0
    %1856 = vdwg.mxu0
    %1857 = vmatprep.subr.mxu0 0.0
    %1858 = vmatpush1.msra.mxu0 %v44
    %1859 = vmatprep.subr.mxu0 0.0
    %1860 = vmatpush1.msra.mxu0 %v45
    %1861 = vmatprep.subr.mxu0 0.0
    %1862 = vmatpush1.msra.mxu0 %v46
    %1863 = vmatprep.subr.mxu0 0.0
    %1864 = vmatpush1.msra.mxu0 %v47
    %1865 = vmatprep.subr.mxu0 0.0
    %1866 = vmatpush1.msra.mxu0 0.0
    %1867 = vmatprep.subr.mxu0 0.0
    %1868 = vmatpush1.msra.mxu0 0.0
    %1869 = vmatprep.subr.mxu0 0.0
    %1870 = vmatpush1.msra.mxu0 0.0
    %1871 = vmatprep.subr.mxu0 0.0
    %1872 = vmatpush1.msra.mxu0 0.0
    %1873 = vmatprep.subr.mxu0 0.0
    %1874 = vmatpush1.msra.mxu0 0.0
    %1875 = vmatprep.subr.mxu0 0.0
    %1876 = vmatpush1.msra.mxu0 0.0
    %1877 = vmatprep.subr.mxu0 0.0
    %1878 = vmatpush1.msra.mxu0 0.0
    %1879 = vmatprep.subr.mxu0 0.0
    %1880 = vmatpush1.msra.mxu0 0.0
    %1881 = vmatprep.subr.mxu0 0.0
    %1882 = vmatpush1.msra.mxu0 0.0
    %1883 = vmatprep.subr.mxu0 0.0
    %1884 = vmatpush1.msra.mxu0 0.0
    %1885 = vmatprep.subr.mxu0 0.0
    %1886 = vmatpush1.msra.mxu0 0.0
    %1887 = vmatprep.subr.mxu0 0.0
    %1888 = vmatpush1.msra.mxu0 0.0
    %1889 = vmatprep.subr.mxu0 0.0
    %1890 = vmatpush1.msra.mxu0 0.0
    %1891 = vmatprep.subr.mxu0 0.0
    %1892 = vmatpush1.msra.mxu0 0.0
    %1893 = vmatprep.subr.mxu0 0.0
    %1894 = vmatpush1.msra.mxu0 0.0
    %1895 = vmatprep.subr.mxu0 0.0
    %1896 = vmatpush1.msra.mxu0 0.0
    %1897 = vmatprep.subr.mxu0 0.0
    %1898 = vmatpush1.msra.mxu0 0.0
    %1899 = vmatprep.subr.mxu0 0.0
    %1900 = vmatpush1.msra.mxu0 0.0
    %1901 = vmatprep.subr.mxu0 0.0
    %1902 = vmatpush1.msra.mxu0 0.0
    %1903 = vmatprep.subr.mxu0 0.0
    %1904 = vmatpush1.msra.mxu0 0.0
    %1905 = vmatprep.subr.mxu0 0.0
    %1906 = vmatpush1.msra.mxu0 0.0
    %1907 = vmatprep.subr.mxu0 0.0
    %1908 = vmatpush1.msra.mxu0 0.0
    %1909 = vmatprep.subr.mxu0 0.0
    %1910 = vmatpush1.msra.mxu0 0.0
    %1911 = vmatprep.subr.mxu0 0.0
    %1912 = vmatpush1.msra.mxu0 0.0
    %1913 = vmatprep.subr.mxu0 0.0
    %1914 = vmatpush1.msra.mxu0 0.0
    %1915 = vmatprep.subr.mxu0 0.0
    %1916 = vmatpush1.msra.mxu0 0.0
    %1917 = vmatprep.subr.mxu0 0.0
    %1918 = vmatpush1.msra.mxu0 0.0
    %1919 = vmatprep.subr.mxu0 0.0
    %1920 = vmatpush1.msra.mxu0 0.0
    %1921 = vmatprep.mubr.f32.mxu0 0.0
    %1922 = vmatmul.mubr.f32.gmra.mrb[0].mxu0 %v1639
    %v1923 = vpop.f32.mrb[0].mxu0
    %v1924 = vadd.f32 0.0, %v1923
    %v1925 = vpop.f32.mrb[0].mxu0
    %1926 = vdwg.mxu0
    %1927 = vmatprep.subr.mxu0 0.0
    %1928 = vmatpush1.msra.mxu0 %v49
    %1929 = vmatprep.subr.mxu0 0.0
    %1930 = vmatpush1.msra.mxu0 %v50
    %1931 = vmatprep.subr.mxu0 0.0
    %1932 = vmatpush1.msra.mxu0 %v51
    %1933 = vmatprep.subr.mxu0 0.0
    %1934 = vmatpush1.msra.mxu0 %v52
    %1935 = vmatprep.subr.mxu0 0.0
    %1936 = vmatpush1.msra.mxu0 0.0
    %1937 = vmatprep.subr.mxu0 0.0
    %1938 = vmatpush1.msra.mxu0 0.0
    %1939 = vmatprep.subr.mxu0 0.0
    %1940 = vmatpush1.msra.mxu0 0.0
    %1941 = vmatprep.subr.mxu0 0.0
    %1942 = vmatpush1.msra.mxu0 0.0
    %1943 = vmatprep.subr.mxu0 0.0
    %1944 = vmatpush1.msra.mxu0 0.0
    %1945 = vmatprep.subr.mxu0 0.0
    %1946 = vmatpush1.msra.mxu0 0.0
    %1947 = vmatprep.subr.mxu0 0.0
    %1948 = vmatpush1.msra.mxu0 0.0
    %1949 = vmatprep.subr.mxu0 0.0
    %1950 = vmatpush1.msra.mxu0 0.0
    %1951 = vmatprep.subr.mxu0 0.0
    %1952 = vmatpush1.msra.mxu0 0.0
    %1953 = vmatprep.subr.mxu0 0.0
    %1954 = vmatpush1.msra.mxu0 0.0
    %1955 = vmatprep.subr.mxu0 0.0
    %1956 = vmatpush1.msra.mxu0 0.0
    %1957 = vmatprep.subr.mxu0 0.0
    %1958 = vmatpush1.msra.mxu0 0.0
    %1959 = vmatprep.subr.mxu0 0.0
    %1960 = vmatpush1.msra.mxu0 0.0
    %1961 = vmatprep.subr.mxu0 0.0
    %1962 = vmatpush1.msra.mxu0 0.0
    %1963 = vmatprep.subr.mxu0 0.0
    %1964 = vmatpush1.msra.mxu0 0.0
    %1965 = vmatprep.subr.mxu0 0.0
    %1966 = vmatpush1.msra.mxu0 0.0
    %1967 = vmatprep.subr.mxu0 0.0
    %1968 = vmatpush1.msra.mxu0 0.0
    %1969 = vmatprep.subr.mxu0 0.0
    %1970 = vmatpush1.msra.mxu0 0.0
    %1971 = vmatprep.subr.mxu0 0.0
    %1972 = vmatpush1.msra.mxu0 0.0
    %1973 = vmatprep.subr.mxu0 0.0
    %1974 = vmatpush1.msra.mxu0 0.0
    %1975 = vmatprep.subr.mxu0 0.0
    %1976 = vmatpush1.msra.mxu0 0.0
    %1977 = vmatprep.subr.mxu0 0.0
    %1978 = vmatpush1.msra.mxu0 0.0
    %1979 = vmatprep.subr.mxu0 0.0
    %1980 = vmatpush1.msra.mxu0 0.0
    %1981 = vmatprep.subr.mxu0 0.0
    %1982 = vmatpush1.msra.mxu0 0.0
    %1983 = vmatprep.subr.mxu0 0.0
    %1984 = vmatpush1.msra.mxu0 0.0
    %1985 = vmatprep.subr.mxu0 0.0
    %1986 = vmatpush1.msra.mxu0 0.0
    %1987 = vmatprep.subr.mxu0 0.0
    %1988 = vmatpush1.msra.mxu0 0.0
    %1989 = vmatprep.subr.mxu0 0.0
    %1990 = vmatpush1.msra.mxu0 0.0
    %1991 = vmatprep.mubr.f32.mxu0 0.0
    %1992 = vmatmul.mubr.f32.gmra.mrb[0].mxu0 %v1639
    %v1993 = vpop.f32.mrb[0].mxu0
    %v1994 = vadd.f32 %v58, %v1993
    %v1995 = vpop.f32.mrb[0].mxu0
    %1996 = vdwg.mxu0
    %v1998 = vrot.slane %v1854, 4
    %v1999 = vrot.slane %v1854, 5
    %v2002 = vadd.f32 %v80, %v1998
    %v2003 = vadd.f32 %v81, %v1999
    %v2004 = vxor.u32 %v2002, 2147483648
    %v2005 = vxor.u32 %v2003, 2147483648
    %v2006 = vmul.f32 %v2004, 1.442695
    %v2007 = vpow.pop %v2006
    %v2008 = vmul.f32 %v2005, 1.442695
    %v2009 = vpow.pop %v2008
    %v2010 = vadd.f32 %v2007, 1.0
    %v2011 = vadd.f32 %v2009, 1.0
    %v2012 = vrcp.pop %v2010
    %v2013 = vmul.f32 1.0, %v2012
    %v2014 = vrcp.pop %v2011
    %v2015 = vmul.f32 1.0, %v2014
    %v2017 = vrot.slane %v1924, 4
    %v2018 = vrot.slane %v1924, 5
    %v2021 = vadd.f32 %v83, %v2017
    %v2022 = vadd.f32 %v84, %v2018
    %v2023 = vxor.u32 %v2021, 2147483648
    %v2024 = vxor.u32 %v2022, 2147483648
    %v2025 = vmul.f32 %v2023, 1.442695
    %v2026 = vpow.pop %v2025
    %v2027 = vmul.f32 %v2024, 1.442695
    %v2028 = vpow.pop %v2027
    %v2029 = vadd.f32 %v2026, 1.0
    %v2030 = vadd.f32 %v2028, 1.0
    %v2031 = vrcp.pop %v2029
    %v2032 = vmul.f32 1.0, %v2031
    %v2033 = vrcp.pop %v2030
    %v2034 = vmul.f32 1.0, %v2033
    %v2036 = vrot.slane %v1994, 4
    %v2037 = vrot.slane %v1994, 5
    %v2040 = vmul.f32 %v2013, %v2036
    %v2041 = vmul.f32 %v2015, %v2037
    %v2042 = vadd.f32 %v86, %v2040
    %v2043 = vadd.f32 %v87, %v2041
    %v2044 = vtanh.pop %v2042
    %v2045 = vtanh.pop %v2043
    %v2046 = vsub.f32 1.0, %v2032
    %v2047 = vsub.f32 1.0, %v2034
    %v2048 = vmul.f32 %v2046, %v2044
    %v2049 = vmul.f32 %v2047, %v2045
    %v2050 = vrot.slane %v1632, 7
    %v2051 = vrot.slane %v1633, 7
    %v2054 = vmul.f32 %v2032, %v2050
    %v2055 = vmul.f32 %v2034, %v2051
    %v2056 = vadd.f32 %v2048, %v2054
    %v2057 = vadd.f32 %v2049, %v2055
    %v2060 = vrot.slane %v2056, 4
    %v2061 = vrot.slane %v2057, 3
    %v2062 = vsel %vm363, %v2061, %v2060
    %v2063 = vsel %vm89, %v2062, 0
    %2065 = vmatprep.subr.mxu0 0.0
    %2066 = vmatpush1.msra.mxu0 %v60
    %2067 = vmatprep.subr.mxu0 0.0
    %2068 = vmatpush1.msra.mxu0 %v61
    %2069 = vmatprep.subr.mxu0 0.0
    %2070 = vmatpush1.msra.mxu0 %v62
    %2071 = vmatprep.subr.mxu0 0.0
    %2072 = vmatpush1.msra.mxu0 %v63
    %2073 = vmatprep.subr.mxu0 0.0
    %2074 = vmatpush1.msra.mxu0 0.0
    %2075 = vmatprep.subr.mxu0 0.0
    %2076 = vmatpush1.msra.mxu0 0.0
    %2077 = vmatprep.subr.mxu0 0.0
    %2078 = vmatpush1.msra.mxu0 0.0
    %2079 = vmatprep.subr.mxu0 0.0
    %2080 = vmatpush1.msra.mxu0 0.0
    %2081 = vmatprep.subr.mxu0 0.0
    %2082 = vmatpush1.msra.mxu0 0.0
    %2083 = vmatprep.subr.mxu0 0.0
    %2084 = vmatpush1.msra.mxu0 0.0
    %2085 = vmatprep.subr.mxu0 0.0
    %2086 = vmatpush1.msra.mxu0 0.0
    %2087 = vmatprep.subr.mxu0 0.0
    %2088 = vmatpush1.msra.mxu0 0.0
    %2089 = vmatprep.subr.mxu0 0.0
    %2090 = vmatpush1.msra.mxu0 0.0
    %2091 = vmatprep.subr.mxu0 0.0
    %2092 = vmatpush1.msra.mxu0 0.0
    %2093 = vmatprep.subr.mxu0 0.0
    %2094 = vmatpush1.msra.mxu0 0.0
    %2095 = vmatprep.subr.mxu0 0.0
    %2096 = vmatpush1.msra.mxu0 0.0
    %2097 = vmatprep.subr.mxu0 0.0
    %2098 = vmatpush1.msra.mxu0 0.0
    %2099 = vmatprep.subr.mxu0 0.0
    %2100 = vmatpush1.msra.mxu0 0.0
    %2101 = vmatprep.subr.mxu0 0.0
    %2102 = vmatpush1.msra.mxu0 0.0
    %2103 = vmatprep.subr.mxu0 0.0
    %2104 = vmatpush1.msra.mxu0 0.0
    %2105 = vmatprep.subr.mxu0 0.0
    %2106 = vmatpush1.msra.mxu0 0.0
    %2107 = vmatprep.subr.mxu0 0.0
    %2108 = vmatpush1.msra.mxu0 0.0
    %2109 = vmatprep.subr.mxu0 0.0
    %2110 = vmatpush1.msra.mxu0 0.0
    %2111 = vmatprep.subr.mxu0 0.0
    %2112 = vmatpush1.msra.mxu0 0.0
    %2113 = vmatprep.subr.mxu0 0.0
    %2114 = vmatpush1.msra.mxu0 0.0
    %2115 = vmatprep.subr.mxu0 0.0
    %2116 = vmatpush1.msra.mxu0 0.0
    %2117 = vmatprep.subr.mxu0 0.0
    %2118 = vmatpush1.msra.mxu0 0.0
    %2119 = vmatprep.subr.mxu0 0.0
    %2120 = vmatpush1.msra.mxu0 0.0
    %2121 = vmatprep.subr.mxu0 0.0
    %2122 = vmatpush1.msra.mxu0 0.0
    %2123 = vmatprep.subr.mxu0 0.0
    %2124 = vmatpush1.msra.mxu0 0.0
    %2125 = vmatprep.subr.mxu0 0.0
    %2126 = vmatpush1.msra.mxu0 0.0
    %2127 = vmatprep.subr.mxu0 0.0
    %2128 = vmatpush1.msra.mxu0 0.0
    %2129 = vmatprep.mubr.f32.mxu0 0.0
    %2130 = vmatmul.mubr.f32.gmra.mrb[0].mxu0 %v2063
    %v2131 = vpop.f32.mrb[0].mxu0
    %v2132 = vadd.f32 %v77, %v2131
    %v2133 = vpop.f32.mrb[0].mxu0
    %2134 = vdwg.mxu0
    %v2135 = vmax.f32 %v2132, 0.0
    %v2137 = vsel %vm444, %v2135, 0
    %2139 = vmatprep.subr.mxu0 0.0
    %2140 = vmatpush1.msra.mxu0 %v64
    %2141 = vmatprep.subr.mxu0 0.0
    %2142 = vmatpush1.msra.mxu0 %v65
    %2143 = vmatprep.subr.mxu0 0.0
    %2144 = vmatpush1.msra.mxu0 %v66
    %2145 = vmatprep.subr.mxu0 0.0
    %2146 = vmatpush1.msra.mxu0 %v67
    %2147 = vmatprep.subr.mxu0 0.0
    %2148 = vmatpush1.msra.mxu0 %v68
    %2149 = vmatprep.subr.mxu0 0.0
    %2150 = vmatpush1.msra.mxu0 %v69
    %2151 = vmatprep.subr.mxu0 0.0
    %2152 = vmatpush1.msra.mxu0 %v70
    %2153 = vmatprep.subr.mxu0 0.0
    %2154 = vmatpush1.msra.mxu0 %v71
    %2155 = vmatprep.subr.mxu0 0.0
    %2156 = vmatpush1.msra.mxu0 0.0
    %2157 = vmatprep.subr.mxu0 0.0
    %2158 = vmatpush1.msra.mxu0 0.0
    %2159 = vmatprep.subr.mxu0 0.0
    %2160 = vmatpush1.msra.mxu0 0.0
    %2161 = vmatprep.subr.mxu0 0.0
    %2162 = vmatpush1.msra.mxu0 0.0
    %2163 = vmatprep.subr.mxu0 0.0
    %2164 = vmatpush1.msra.mxu0 0.0
    %2165 = vmatprep.subr.mxu0 0.0
    %2166 = vmatpush1.msra.mxu0 0.0
    %2167 = vmatprep.subr.mxu0 0.0
    %2168 = vmatpush1.msra.mxu0 0.0
    %2169 = vmatprep.subr.mxu0 0.0
    %2170 = vmatpush1.msra.mxu0 0.0
    %2171 = vmatprep.subr.mxu0 0.0
    %2172 = vmatpush1.msra.mxu0 0.0
    %2173 = vmatprep.subr.mxu0 0.0
    %2174 = vmatpush1.msra.mxu0 0.0
    %2175 = vmatprep.subr.mxu0 0.0
    %2176 = vmatpush1.msra.mxu0 0.0
    %2177 = vmatprep.subr.mxu0 0.0
    %2178 = vmatpush1.msra.mxu0 0.0
    %2179 = vmatprep.subr.mxu0 0.0
    %2180 = vmatpush1.msra.mxu0 0.0
    %2181 = vmatprep.subr.mxu0 0.0
    %2182 = vmatpush1.msra.mxu0 0.0
    %2183 = vmatprep.subr.mxu0 0.0
    %2184 = vmatpush1.msra.mxu0 0.0
    %2185 = vmatprep.subr.mxu0 0.0
    %2186 = vmatpush1.msra.mxu0 0.0
    %2187 = vmatprep.subr.mxu0 0.0
    %2188 = vmatpush1.msra.mxu0 0.0
    %2189 = vmatprep.subr.mxu0 0.0
    %2190 = vmatpush1.msra.mxu0 0.0
    %2191 = vmatprep.subr.mxu0 0.0
    %2192 = vmatpush1.msra.mxu0 0.0
    %2193 = vmatprep.subr.mxu0 0.0
    %2194 = vmatpush1.msra.mxu0 0.0
    %2195 = vmatprep.subr.mxu0 0.0
    %2196 = vmatpush1.msra.mxu0 0.0
    %2197 = vmatprep.subr.mxu0 0.0
    %2198 = vmatpush1.msra.mxu0 0.0
    %2199 = vmatprep.subr.mxu0 0.0
    %2200 = vmatpush1.msra.mxu0 0.0
    %2201 = vmatprep.subr.mxu0 0.0
    %2202 = vmatpush1.msra.mxu0 0.0
    %2203 = vmatprep.mubr.f32.mxu0 0.0
    %2204 = vmatmul.mubr.f32.gmra.mrb[0].mxu0 %v2137
    %v2205 = vpop.f32.mrb[0].mxu0
    %v2206 = vadd.f32 %v442, %v2205
    %v2207 = vpop.f32.mrb[0].mxu0
    %2208 = vdwg.mxu0
    %s2209 = scalar_lea.vmem %s8, 8
    %2210 = vst.msk [vmem:[%s2209] sm:$0x3] %vm518, %v2206
    %2211 = vmatprep.subr.mxu0 0.0
    %2212 = vmatpush1.msra.mxu0 %v39
    %2213 = vmatprep.subr.mxu0 0.0
    %2214 = vmatpush1.msra.mxu0 %v40
    %2215 = vmatprep.subr.mxu0 0.0
    %2216 = vmatpush1.msra.mxu0 %v41
    %2217 = vmatprep.subr.mxu0 0.0
    %2218 = vmatpush1.msra.mxu0 %v42
    %2219 = vmatprep.subr.mxu0 0.0
    %2220 = vmatpush1.msra.mxu0 0.0
    %2221 = vmatprep.subr.mxu0 0.0
    %2222 = vmatpush1.msra.mxu0 0.0
    %2223 = vmatprep.subr.mxu0 0.0
    %2224 = vmatpush1.msra.mxu0 0.0
    %2225 = vmatprep.subr.mxu0 0.0
    %2226 = vmatpush1.msra.mxu0 0.0
    %2227 = vmatprep.subr.mxu0 0.0
    %2228 = vmatpush1.msra.mxu0 0.0
    %2229 = vmatprep.subr.mxu0 0.0
    %2230 = vmatpush1.msra.mxu0 0.0
    %2231 = vmatprep.subr.mxu0 0.0
    %2232 = vmatpush1.msra.mxu0 0.0
    %2233 = vmatprep.subr.mxu0 0.0
    %2234 = vmatpush1.msra.mxu0 0.0
    %2235 = vmatprep.subr.mxu0 0.0
    %2236 = vmatpush1.msra.mxu0 0.0
    %2237 = vmatprep.subr.mxu0 0.0
    %2238 = vmatpush1.msra.mxu0 0.0
    %2239 = vmatprep.subr.mxu0 0.0
    %2240 = vmatpush1.msra.mxu0 0.0
    %2241 = vmatprep.subr.mxu0 0.0
    %2242 = vmatpush1.msra.mxu0 0.0
    %2243 = vmatprep.subr.mxu0 0.0
    %2244 = vmatpush1.msra.mxu0 0.0
    %2245 = vmatprep.subr.mxu0 0.0
    %2246 = vmatpush1.msra.mxu0 0.0
    %2247 = vmatprep.subr.mxu0 0.0
    %2248 = vmatpush1.msra.mxu0 0.0
    %2249 = vmatprep.subr.mxu0 0.0
    %2250 = vmatpush1.msra.mxu0 0.0
    %2251 = vmatprep.subr.mxu0 0.0
    %2252 = vmatpush1.msra.mxu0 0.0
    %2253 = vmatprep.subr.mxu0 0.0
    %2254 = vmatpush1.msra.mxu0 0.0
    %2255 = vmatprep.subr.mxu0 0.0
    %2256 = vmatpush1.msra.mxu0 0.0
    %2257 = vmatprep.subr.mxu0 0.0
    %2258 = vmatpush1.msra.mxu0 0.0
    %2259 = vmatprep.subr.mxu0 0.0
    %2260 = vmatpush1.msra.mxu0 0.0
    %2261 = vmatprep.subr.mxu0 0.0
    %2262 = vmatpush1.msra.mxu0 0.0
    %2263 = vmatprep.subr.mxu0 0.0
    %2264 = vmatpush1.msra.mxu0 0.0
    %2265 = vmatprep.subr.mxu0 0.0
    %2266 = vmatpush1.msra.mxu0 0.0
    %2267 = vmatprep.subr.mxu0 0.0
    %2268 = vmatpush1.msra.mxu0 0.0
    %2269 = vmatprep.subr.mxu0 0.0
    %2270 = vmatpush1.msra.mxu0 0.0
    %2271 = vmatprep.subr.mxu0 0.0
    %2272 = vmatpush1.msra.mxu0 0.0
    %2273 = vmatprep.subr.mxu0 0.0
    %2274 = vmatpush1.msra.mxu0 0.0
    %2275 = vmatprep.mubr.f32.mxu0 0.0
    %2276 = vmatmul.mubr.f32.gmra.mrb[0].mxu0 %v2063
    %v2277 = vpop.f32.mrb[0].mxu0
    %v2278 = vadd.f32 0.0, %v2277
    %v2279 = vpop.f32.mrb[0].mxu0
    %2280 = vdwg.mxu0
    %2281 = vmatprep.subr.mxu0 0.0
    %2282 = vmatpush1.msra.mxu0 %v44
    %2283 = vmatprep.subr.mxu0 0.0
    %2284 = vmatpush1.msra.mxu0 %v45
    %2285 = vmatprep.subr.mxu0 0.0
    %2286 = vmatpush1.msra.mxu0 %v46
    %2287 = vmatprep.subr.mxu0 0.0
    %2288 = vmatpush1.msra.mxu0 %v47
    %2289 = vmatprep.subr.mxu0 0.0
    %2290 = vmatpush1.msra.mxu0 0.0
    %2291 = vmatprep.subr.mxu0 0.0
    %2292 = vmatpush1.msra.mxu0 0.0
    %2293 = vmatprep.subr.mxu0 0.0
    %2294 = vmatpush1.msra.mxu0 0.0
    %2295 = vmatprep.subr.mxu0 0.0
    %2296 = vmatpush1.msra.mxu0 0.0
    %2297 = vmatprep.subr.mxu0 0.0
    %2298 = vmatpush1.msra.mxu0 0.0
    %2299 = vmatprep.subr.mxu0 0.0
    %2300 = vmatpush1.msra.mxu0 0.0
    %2301 = vmatprep.subr.mxu0 0.0
    %2302 = vmatpush1.msra.mxu0 0.0
    %2303 = vmatprep.subr.mxu0 0.0
    %2304 = vmatpush1.msra.mxu0 0.0
    %2305 = vmatprep.subr.mxu0 0.0
    %2306 = vmatpush1.msra.mxu0 0.0
    %2307 = vmatprep.subr.mxu0 0.0
    %2308 = vmatpush1.msra.mxu0 0.0
    %2309 = vmatprep.subr.mxu0 0.0
    %2310 = vmatpush1.msra.mxu0 0.0
    %2311 = vmatprep.subr.mxu0 0.0
    %2312 = vmatpush1.msra.mxu0 0.0
    %2313 = vmatprep.subr.mxu0 0.0
    %2314 = vmatpush1.msra.mxu0 0.0
    %2315 = vmatprep.subr.mxu0 0.0
    %2316 = vmatpush1.msra.mxu0 0.0
    %2317 = vmatprep.subr.mxu0 0.0
    %2318 = vmatpush1.msra.mxu0 0.0
    %2319 = vmatprep.subr.mxu0 0.0
    %2320 = vmatpush1.msra.mxu0 0.0
    %2321 = vmatprep.subr.mxu0 0.0
    %2322 = vmatpush1.msra.mxu0 0.0
    %2323 = vmatprep.subr.mxu0 0.0
    %2324 = vmatpush1.msra.mxu0 0.0
    %2325 = vmatprep.subr.mxu0 0.0
    %2326 = vmatpush1.msra.mxu0 0.0
    %2327 = vmatprep.subr.mxu0 0.0
    %2328 = vmatpush1.msra.mxu0 0.0
    %2329 = vmatprep.subr.mxu0 0.0
    %2330 = vmatpush1.msra.mxu0 0.0
    %2331 = vmatprep.subr.mxu0 0.0
    %2332 = vmatpush1.msra.mxu0 0.0
    %2333 = vmatprep.subr.mxu0 0.0
    %2334 = vmatpush1.msra.mxu0 0.0
    %2335 = vmatprep.subr.mxu0 0.0
    %2336 = vmatpush1.msra.mxu0 0.0
    %2337 = vmatprep.subr.mxu0 0.0
    %2338 = vmatpush1.msra.mxu0 0.0
    %2339 = vmatprep.subr.mxu0 0.0
    %2340 = vmatpush1.msra.mxu0 0.0
    %2341 = vmatprep.subr.mxu0 0.0
    %2342 = vmatpush1.msra.mxu0 0.0
    %2343 = vmatprep.subr.mxu0 0.0
    %2344 = vmatpush1.msra.mxu0 0.0
    %2345 = vmatprep.mubr.f32.mxu0 0.0
    %2346 = vmatmul.mubr.f32.gmra.mrb[0].mxu0 %v2063
    %v2347 = vpop.f32.mrb[0].mxu0
    %v2348 = vadd.f32 0.0, %v2347
    %v2349 = vpop.f32.mrb[0].mxu0
    %2350 = vdwg.mxu0
    %2351 = vmatprep.subr.mxu0 0.0
    %2352 = vmatpush1.msra.mxu0 %v49
    %2353 = vmatprep.subr.mxu0 0.0
    %2354 = vmatpush1.msra.mxu0 %v50
    %2355 = vmatprep.subr.mxu0 0.0
    %2356 = vmatpush1.msra.mxu0 %v51
    %2357 = vmatprep.subr.mxu0 0.0
    %2358 = vmatpush1.msra.mxu0 %v52
    %2359 = vmatprep.subr.mxu0 0.0
    %2360 = vmatpush1.msra.mxu0 0.0
    %2361 = vmatprep.subr.mxu0 0.0
    %2362 = vmatpush1.msra.mxu0 0.0
    %2363 = vmatprep.subr.mxu0 0.0
    %2364 = vmatpush1.msra.mxu0 0.0
    %2365 = vmatprep.subr.mxu0 0.0
    %2366 = vmatpush1.msra.mxu0 0.0
    %2367 = vmatprep.subr.mxu0 0.0
    %2368 = vmatpush1.msra.mxu0 0.0
    %2369 = vmatprep.subr.mxu0 0.0
    %2370 = vmatpush1.msra.mxu0 0.0
    %2371 = vmatprep.subr.mxu0 0.0
    %2372 = vmatpush1.msra.mxu0 0.0
    %2373 = vmatprep.subr.mxu0 0.0
    %2374 = vmatpush1.msra.mxu0 0.0
    %2375 = vmatprep.subr.mxu0 0.0
    %2376 = vmatpush1.msra.mxu0 0.0
    %2377 = vmatprep.subr.mxu0 0.0
    %2378 = vmatpush1.msra.mxu0 0.0
    %2379 = vmatprep.subr.mxu0 0.0
    %2380 = vmatpush1.msra.mxu0 0.0
    %2381 = vmatprep.subr.mxu0 0.0
    %2382 = vmatpush1.msra.mxu0 0.0
    %2383 = vmatprep.subr.mxu0 0.0
    %2384 = vmatpush1.msra.mxu0 0.0
    %2385 = vmatprep.subr.mxu0 0.0
    %2386 = vmatpush1.msra.mxu0 0.0
    %2387 = vmatprep.subr.mxu0 0.0
    %2388 = vmatpush1.msra.mxu0 0.0
    %2389 = vmatprep.subr.mxu0 0.0
    %2390 = vmatpush1.msra.mxu0 0.0
    %2391 = vmatprep.subr.mxu0 0.0
    %2392 = vmatpush1.msra.mxu0 0.0
    %2393 = vmatprep.subr.mxu0 0.0
    %2394 = vmatpush1.msra.mxu0 0.0
    %2395 = vmatprep.subr.mxu0 0.0
    %2396 = vmatpush1.msra.mxu0 0.0
    %2397 = vmatprep.subr.mxu0 0.0
    %2398 = vmatpush1.msra.mxu0 0.0
    %2399 = vmatprep.subr.mxu0 0.0
    %2400 = vmatpush1.msra.mxu0 0.0
    %2401 = vmatprep.subr.mxu0 0.0
    %2402 = vmatpush1.msra.mxu0 0.0
    %2403 = vmatprep.subr.mxu0 0.0
    %2404 = vmatpush1.msra.mxu0 0.0
    %2405 = vmatprep.subr.mxu0 0.0
    %2406 = vmatpush1.msra.mxu0 0.0
    %2407 = vmatprep.subr.mxu0 0.0
    %2408 = vmatpush1.msra.mxu0 0.0
    %2409 = vmatprep.subr.mxu0 0.0
    %2410 = vmatpush1.msra.mxu0 0.0
    %2411 = vmatprep.subr.mxu0 0.0
    %2412 = vmatpush1.msra.mxu0 0.0
    %2413 = vmatprep.subr.mxu0 0.0
    %2414 = vmatpush1.msra.mxu0 0.0
    %2415 = vmatprep.mubr.f32.mxu0 0.0
    %2416 = vmatmul.mubr.f32.gmra.mrb[0].mxu0 %v2063
    %v2417 = vpop.f32.mrb[0].mxu0
    %v2418 = vadd.f32 %v58, %v2417
    %v2419 = vpop.f32.mrb[0].mxu0
    %2420 = vdwg.mxu0
    %v2422 = vrot.slane %v2278, 3
    %v2423 = vrot.slane %v2278, 4
    %v2426 = vadd.f32 %v80, %v2422
    %v2427 = vadd.f32 %v81, %v2423
    %v2428 = vxor.u32 %v2426, 2147483648
    %v2429 = vxor.u32 %v2427, 2147483648
    %v2430 = vmul.f32 %v2428, 1.442695
    %v2431 = vpow.pop %v2430
    %v2432 = vmul.f32 %v2429, 1.442695
    %v2433 = vpow.pop %v2432
    %v2434 = vadd.f32 %v2431, 1.0
    %v2435 = vadd.f32 %v2433, 1.0
    %v2436 = vrcp.pop %v2434
    %v2437 = vmul.f32 1.0, %v2436
    %v2438 = vrcp.pop %v2435
    %v2439 = vmul.f32 1.0, %v2438
    %v2441 = vrot.slane %v2348, 3
    %v2442 = vrot.slane %v2348, 4
    %v2445 = vadd.f32 %v83, %v2441
    %v2446 = vadd.f32 %v84, %v2442
    %v2447 = vxor.u32 %v2445, 2147483648
    %v2448 = vxor.u32 %v2446, 2147483648
    %v2449 = vmul.f32 %v2447, 1.442695
    %v2450 = vpow.pop %v2449
    %v2451 = vmul.f32 %v2448, 1.442695
    %v2452 = vpow.pop %v2451
    %v2453 = vadd.f32 %v2450, 1.0
    %v2454 = vadd.f32 %v2452, 1.0
    %v2455 = vrcp.pop %v2453
    %v2456 = vmul.f32 1.0, %v2455
    %v2457 = vrcp.pop %v2454
    %v2458 = vmul.f32 1.0, %v2457
    %v2460 = vrot.slane %v2418, 3
    %v2461 = vrot.slane %v2418, 4
    %v2464 = vmul.f32 %v2437, %v2460
    %v2465 = vmul.f32 %v2439, %v2461
    %v2466 = vadd.f32 %v86, %v2464
    %v2467 = vadd.f32 %v87, %v2465
    %v2468 = vtanh.pop %v2466
    %v2469 = vtanh.pop %v2467
    %v2470 = vsub.f32 1.0, %v2456
    %v2471 = vsub.f32 1.0, %v2458
    %v2472 = vmul.f32 %v2470, %v2468
    %v2473 = vmul.f32 %v2471, %v2469
    %v2474 = vrot.slane %v2056, 7
    %v2475 = vrot.slane %v2057, 7
    %v2478 = vmul.f32 %v2456, %v2474
    %v2479 = vmul.f32 %v2458, %v2475
    %v2480 = vadd.f32 %v2472, %v2478
    %v2481 = vadd.f32 %v2473, %v2479
    %v2484 = vrot.slane %v2480, 5
    %v2485 = vrot.slane %v2481, 4
    %v2486 = vsel %vm363, %v2485, %v2484
    %v2487 = vsel %vm89, %v2486, 0
    %2489 = vmatprep.subr.mxu0 0.0
    %2490 = vmatpush1.msra.mxu0 %v60
    %2491 = vmatprep.subr.mxu0 0.0
    %2492 = vmatpush1.msra.mxu0 %v61
    %2493 = vmatprep.subr.mxu0 0.0
    %2494 = vmatpush1.msra.mxu0 %v62
    %2495 = vmatprep.subr.mxu0 0.0
    %2496 = vmatpush1.msra.mxu0 %v63
    %2497 = vmatprep.subr.mxu0 0.0
    %2498 = vmatpush1.msra.mxu0 0.0
    %2499 = vmatprep.subr.mxu0 0.0
    %2500 = vmatpush1.msra.mxu0 0.0
    %2501 = vmatprep.subr.mxu0 0.0
    %2502 = vmatpush1.msra.mxu0 0.0
    %2503 = vmatprep.subr.mxu0 0.0
    %2504 = vmatpush1.msra.mxu0 0.0
    %2505 = vmatprep.subr.mxu0 0.0
    %2506 = vmatpush1.msra.mxu0 0.0
    %2507 = vmatprep.subr.mxu0 0.0
    %2508 = vmatpush1.msra.mxu0 0.0
    %2509 = vmatprep.subr.mxu0 0.0
    %2510 = vmatpush1.msra.mxu0 0.0
    %2511 = vmatprep.subr.mxu0 0.0
    %2512 = vmatpush1.msra.mxu0 0.0
    %2513 = vmatprep.subr.mxu0 0.0
    %2514 = vmatpush1.msra.mxu0 0.0
    %2515 = vmatprep.subr.mxu0 0.0
    %2516 = vmatpush1.msra.mxu0 0.0
    %2517 = vmatprep.subr.mxu0 0.0
    %2518 = vmatpush1.msra.mxu0 0.0
    %2519 = vmatprep.subr.mxu0 0.0
    %2520 = vmatpush1.msra.mxu0 0.0
    %2521 = vmatprep.subr.mxu0 0.0
    %2522 = vmatpush1.msra.mxu0 0.0
    %2523 = vmatprep.subr.mxu0 0.0
    %2524 = vmatpush1.msra.mxu0 0.0
    %2525 = vmatprep.subr.mxu0 0.0
    %2526 = vmatpush1.msra.mxu0 0.0
    %2527 = vmatprep.subr.mxu0 0.0
    %2528 = vmatpush1.msra.mxu0 0.0
    %2529 = vmatprep.subr.mxu0 0.0
    %2530 = vmatpush1.msra.mxu0 0.0
    %2531 = vmatprep.subr.mxu0 0.0
    %2532 = vmatpush1.msra.mxu0 0.0
    %2533 = vmatprep.subr.mxu0 0.0
    %2534 = vmatpush1.msra.mxu0 0.0
    %2535 = vmatprep.subr.mxu0 0.0
    %2536 = vmatpush1.msra.mxu0 0.0
    %2537 = vmatprep.subr.mxu0 0.0
    %2538 = vmatpush1.msra.mxu0 0.0
    %2539 = vmatprep.subr.mxu0 0.0
    %2540 = vmatpush1.msra.mxu0 0.0
    %2541 = vmatprep.subr.mxu0 0.0
    %2542 = vmatpush1.msra.mxu0 0.0
    %2543 = vmatprep.subr.mxu0 0.0
    %2544 = vmatpush1.msra.mxu0 0.0
    %2545 = vmatprep.subr.mxu0 0.0
    %2546 = vmatpush1.msra.mxu0 0.0
    %2547 = vmatprep.subr.mxu0 0.0
    %2548 = vmatpush1.msra.mxu0 0.0
    %2549 = vmatprep.subr.mxu0 0.0
    %2550 = vmatpush1.msra.mxu0 0.0
    %2551 = vmatprep.subr.mxu0 0.0
    %2552 = vmatpush1.msra.mxu0 0.0
    %2553 = vmatprep.mubr.f32.mxu0 0.0
    %2554 = vmatmul.mubr.f32.gmra.mrb[0].mxu0 %v2487
    %v2555 = vpop.f32.mrb[0].mxu0
    %v2556 = vadd.f32 %v77, %v2555
    %v2557 = vpop.f32.mrb[0].mxu0
    %2558 = vdwg.mxu0
    %v2559 = vmax.f32 %v2556, 0.0
    %v2561 = vsel %vm444, %v2559, 0
    %2563 = vmatprep.subr.mxu0 0.0
    %2564 = vmatpush1.msra.mxu0 %v64
    %2565 = vmatprep.subr.mxu0 0.0
    %2566 = vmatpush1.msra.mxu0 %v65
    %2567 = vmatprep.subr.mxu0 0.0
    %2568 = vmatpush1.msra.mxu0 %v66
    %2569 = vmatprep.subr.mxu0 0.0
    %2570 = vmatpush1.msra.mxu0 %v67
    %2571 = vmatprep.subr.mxu0 0.0
    %2572 = vmatpush1.msra.mxu0 %v68
    %2573 = vmatprep.subr.mxu0 0.0
    %2574 = vmatpush1.msra.mxu0 %v69
    %2575 = vmatprep.subr.mxu0 0.0
    %2576 = vmatpush1.msra.mxu0 %v70
    %2577 = vmatprep.subr.mxu0 0.0
    %2578 = vmatpush1.msra.mxu0 %v71
    %2579 = vmatprep.subr.mxu0 0.0
    %2580 = vmatpush1.msra.mxu0 0.0
    %2581 = vmatprep.subr.mxu0 0.0
    %2582 = vmatpush1.msra.mxu0 0.0
    %2583 = vmatprep.subr.mxu0 0.0
    %2584 = vmatpush1.msra.mxu0 0.0
    %2585 = vmatprep.subr.mxu0 0.0
    %2586 = vmatpush1.msra.mxu0 0.0
    %2587 = vmatprep.subr.mxu0 0.0
    %2588 = vmatpush1.msra.mxu0 0.0
    %2589 = vmatprep.subr.mxu0 0.0
    %2590 = vmatpush1.msra.mxu0 0.0
    %2591 = vmatprep.subr.mxu0 0.0
    %2592 = vmatpush1.msra.mxu0 0.0
    %2593 = vmatprep.subr.mxu0 0.0
    %2594 = vmatpush1.msra.mxu0 0.0
    %2595 = vmatprep.subr.mxu0 0.0
    %2596 = vmatpush1.msra.mxu0 0.0
    %2597 = vmatprep.subr.mxu0 0.0
    %2598 = vmatpush1.msra.mxu0 0.0
    %2599 = vmatprep.subr.mxu0 0.0
    %2600 = vmatpush1.msra.mxu0 0.0
    %2601 = vmatprep.subr.mxu0 0.0
    %2602 = vmatpush1.msra.mxu0 0.0
    %2603 = vmatprep.subr.mxu0 0.0
    %2604 = vmatpush1.msra.mxu0 0.0
    %2605 = vmatprep.subr.mxu0 0.0
    %2606 = vmatpush1.msra.mxu0 0.0
    %2607 = vmatprep.subr.mxu0 0.0
    %2608 = vmatpush1.msra.mxu0 0.0
    %2609 = vmatprep.subr.mxu0 0.0
    %2610 = vmatpush1.msra.mxu0 0.0
    %2611 = vmatprep.subr.mxu0 0.0
    %2612 = vmatpush1.msra.mxu0 0.0
    %2613 = vmatprep.subr.mxu0 0.0
    %2614 = vmatpush1.msra.mxu0 0.0
    %2615 = vmatprep.subr.mxu0 0.0
    %2616 = vmatpush1.msra.mxu0 0.0
    %2617 = vmatprep.subr.mxu0 0.0
    %2618 = vmatpush1.msra.mxu0 0.0
    %2619 = vmatprep.subr.mxu0 0.0
    %2620 = vmatpush1.msra.mxu0 0.0
    %2621 = vmatprep.subr.mxu0 0.0
    %2622 = vmatpush1.msra.mxu0 0.0
    %2623 = vmatprep.subr.mxu0 0.0
    %2624 = vmatpush1.msra.mxu0 0.0
    %2625 = vmatprep.subr.mxu0 0.0
    %2626 = vmatpush1.msra.mxu0 0.0
    %2627 = vmatprep.mubr.f32.mxu0 0.0
    %2628 = vmatmul.mubr.f32.gmra.mrb[0].mxu0 %v2561
    %v2629 = vpop.f32.mrb[0].mxu0
    %v2630 = vadd.f32 %v442, %v2629
    %v2631 = vpop.f32.mrb[0].mxu0
    %2632 = vdwg.mxu0
    %s2633 = scalar_lea.vmem %s8, 10
    %2634 = vst.msk [vmem:[%s2633] sm:$0x3] %vm518, %v2630
    %2635 = vmatprep.subr.mxu0 0.0
    %2636 = vmatpush1.msra.mxu0 %v39
    %2637 = vmatprep.subr.mxu0 0.0
    %2638 = vmatpush1.msra.mxu0 %v40
    %2639 = vmatprep.subr.mxu0 0.0
    %2640 = vmatpush1.msra.mxu0 %v41
    %2641 = vmatprep.subr.mxu0 0.0
    %2642 = vmatpush1.msra.mxu0 %v42
    %2643 = vmatprep.subr.mxu0 0.0
    %2644 = vmatpush1.msra.mxu0 0.0
    %2645 = vmatprep.subr.mxu0 0.0
    %2646 = vmatpush1.msra.mxu0 0.0
    %2647 = vmatprep.subr.mxu0 0.0
    %2648 = vmatpush1.msra.mxu0 0.0
    %2649 = vmatprep.subr.mxu0 0.0
    %2650 = vmatpush1.msra.mxu0 0.0
    %2651 = vmatprep.subr.mxu0 0.0
    %2652 = vmatpush1.msra.mxu0 0.0
    %2653 = vmatprep.subr.mxu0 0.0
    %2654 = vmatpush1.msra.mxu0 0.0
    %2655 = vmatprep.subr.mxu0 0.0
    %2656 = vmatpush1.msra.mxu0 0.0
    %2657 = vmatprep.subr.mxu0 0.0
    %2658 = vmatpush1.msra.mxu0 0.0
    %2659 = vmatprep.subr.mxu0 0.0
    %2660 = vmatpush1.msra.mxu0 0.0
    %2661 = vmatprep.subr.mxu0 0.0
    %2662 = vmatpush1.msra.mxu0 0.0
    %2663 = vmatprep.subr.mxu0 0.0
    %2664 = vmatpush1.msra.mxu0 0.0
    %2665 = vmatprep.subr.mxu0 0.0
    %2666 = vmatpush1.msra.mxu0 0.0
    %2667 = vmatprep.subr.mxu0 0.0
    %2668 = vmatpush1.msra.mxu0 0.0
    %2669 = vmatprep.subr.mxu0 0.0
    %2670 = vmatpush1.msra.mxu0 0.0
    %2671 = vmatprep.subr.mxu0 0.0
    %2672 = vmatpush1.msra.mxu0 0.0
    %2673 = vmatprep.subr.mxu0 0.0
    %2674 = vmatpush1.msra.mxu0 0.0
    %2675 = vmatprep.subr.mxu0 0.0
    %2676 = vmatpush1.msra.mxu0 0.0
    %2677 = vmatprep.subr.mxu0 0.0
    %2678 = vmatpush1.msra.mxu0 0.0
    %2679 = vmatprep.subr.mxu0 0.0
    %2680 = vmatpush1.msra.mxu0 0.0
    %2681 = vmatprep.subr.mxu0 0.0
    %2682 = vmatpush1.msra.mxu0 0.0
    %2683 = vmatprep.subr.mxu0 0.0
    %2684 = vmatpush1.msra.mxu0 0.0
    %2685 = vmatprep.subr.mxu0 0.0
    %2686 = vmatpush1.msra.mxu0 0.0
    %2687 = vmatprep.subr.mxu0 0.0
    %2688 = vmatpush1.msra.mxu0 0.0
    %2689 = vmatprep.subr.mxu0 0.0
    %2690 = vmatpush1.msra.mxu0 0.0
    %2691 = vmatprep.subr.mxu0 0.0
    %2692 = vmatpush1.msra.mxu0 0.0
    %2693 = vmatprep.subr.mxu0 0.0
    %2694 = vmatpush1.msra.mxu0 0.0
    %2695 = vmatprep.subr.mxu0 0.0
    %2696 = vmatpush1.msra.mxu0 0.0
    %2697 = vmatprep.subr.mxu0 0.0
    %2698 = vmatpush1.msra.mxu0 0.0
    %2699 = vmatprep.mubr.f32.mxu0 0.0
    %2700 = vmatmul.mubr.f32.gmra.mrb[0].mxu0 %v2487
    %v2701 = vpop.f32.mrb[0].mxu0
    %v2702 = vadd.f32 0.0, %v2701
    %v2703 = vpop.f32.mrb[0].mxu0
    %2704 = vdwg.mxu0
    %2705 = vmatprep.subr.mxu0 0.0
    %2706 = vmatpush1.msra.mxu0 %v44
    %2707 = vmatprep.subr.mxu0 0.0
    %2708 = vmatpush1.msra.mxu0 %v45
    %2709 = vmatprep.subr.mxu0 0.0
    %2710 = vmatpush1.msra.mxu0 %v46
    %2711 = vmatprep.subr.mxu0 0.0
    %2712 = vmatpush1.msra.mxu0 %v47
    %2713 = vmatprep.subr.mxu0 0.0
    %2714 = vmatpush1.msra.mxu0 0.0
    %2715 = vmatprep.subr.mxu0 0.0
    %2716 = vmatpush1.msra.mxu0 0.0
    %2717 = vmatprep.subr.mxu0 0.0
    %2718 = vmatpush1.msra.mxu0 0.0
    %2719 = vmatprep.subr.mxu0 0.0
    %2720 = vmatpush1.msra.mxu0 0.0
    %2721 = vmatprep.subr.mxu0 0.0
    %2722 = vmatpush1.msra.mxu0 0.0
    %2723 = vmatprep.subr.mxu0 0.0
    %2724 = vmatpush1.msra.mxu0 0.0
    %2725 = vmatprep.subr.mxu0 0.0
    %2726 = vmatpush1.msra.mxu0 0.0
    %2727 = vmatprep.subr.mxu0 0.0
    %2728 = vmatpush1.msra.mxu0 0.0
    %2729 = vmatprep.subr.mxu0 0.0
    %2730 = vmatpush1.msra.mxu0 0.0
    %2731 = vmatprep.subr.mxu0 0.0
    %2732 = vmatpush1.msra.mxu0 0.0
    %2733 = vmatprep.subr.mxu0 0.0
    %2734 = vmatpush1.msra.mxu0 0.0
    %2735 = vmatprep.subr.mxu0 0.0
    %2736 = vmatpush1.msra.mxu0 0.0
    %2737 = vmatprep.subr.mxu0 0.0
    %2738 = vmatpush1.msra.mxu0 0.0
    %2739 = vmatprep.subr.mxu0 0.0
    %2740 = vmatpush1.msra.mxu0 0.0
    %2741 = vmatprep.subr.mxu0 0.0
    %2742 = vmatpush1.msra.mxu0 0.0
    %2743 = vmatprep.subr.mxu0 0.0
    %2744 = vmatpush1.msra.mxu0 0.0
    %2745 = vmatprep.subr.mxu0 0.0
    %2746 = vmatpush1.msra.mxu0 0.0
    %2747 = vmatprep.subr.mxu0 0.0
    %2748 = vmatpush1.msra.mxu0 0.0
    %2749 = vmatprep.subr.mxu0 0.0
    %2750 = vmatpush1.msra.mxu0 0.0
    %2751 = vmatprep.subr.mxu0 0.0
    %2752 = vmatpush1.msra.mxu0 0.0
    %2753 = vmatprep.subr.mxu0 0.0
    %2754 = vmatpush1.msra.mxu0 0.0
    %2755 = vmatprep.subr.mxu0 0.0
    %2756 = vmatpush1.msra.mxu0 0.0
    %2757 = vmatprep.subr.mxu0 0.0
    %2758 = vmatpush1.msra.mxu0 0.0
    %2759 = vmatprep.subr.mxu0 0.0
    %2760 = vmatpush1.msra.mxu0 0.0
    %2761 = vmatprep.subr.mxu0 0.0
    %2762 = vmatpush1.msra.mxu0 0.0
    %2763 = vmatprep.subr.mxu0 0.0
    %2764 = vmatpush1.msra.mxu0 0.0
    %2765 = vmatprep.subr.mxu0 0.0
    %2766 = vmatpush1.msra.mxu0 0.0
    %2767 = vmatprep.subr.mxu0 0.0
    %2768 = vmatpush1.msra.mxu0 0.0
    %2769 = vmatprep.mubr.f32.mxu0 0.0
    %2770 = vmatmul.mubr.f32.gmra.mrb[0].mxu0 %v2487
    %v2771 = vpop.f32.mrb[0].mxu0
    %v2772 = vadd.f32 0.0, %v2771
    %v2773 = vpop.f32.mrb[0].mxu0
    %2774 = vdwg.mxu0
    %2775 = vmatprep.subr.mxu0 0.0
    %2776 = vmatpush1.msra.mxu0 %v49
    %2777 = vmatprep.subr.mxu0 0.0
    %2778 = vmatpush1.msra.mxu0 %v50
    %2779 = vmatprep.subr.mxu0 0.0
    %2780 = vmatpush1.msra.mxu0 %v51
    %2781 = vmatprep.subr.mxu0 0.0
    %2782 = vmatpush1.msra.mxu0 %v52
    %2783 = vmatprep.subr.mxu0 0.0
    %2784 = vmatpush1.msra.mxu0 0.0
    %2785 = vmatprep.subr.mxu0 0.0
    %2786 = vmatpush1.msra.mxu0 0.0
    %2787 = vmatprep.subr.mxu0 0.0
    %2788 = vmatpush1.msra.mxu0 0.0
    %2789 = vmatprep.subr.mxu0 0.0
    %2790 = vmatpush1.msra.mxu0 0.0
    %2791 = vmatprep.subr.mxu0 0.0
    %2792 = vmatpush1.msra.mxu0 0.0
    %2793 = vmatprep.subr.mxu0 0.0
    %2794 = vmatpush1.msra.mxu0 0.0
    %2795 = vmatprep.subr.mxu0 0.0
    %2796 = vmatpush1.msra.mxu0 0.0
    %2797 = vmatprep.subr.mxu0 0.0
    %2798 = vmatpush1.msra.mxu0 0.0
    %2799 = vmatprep.subr.mxu0 0.0
    %2800 = vmatpush1.msra.mxu0 0.0
    %2801 = vmatprep.subr.mxu0 0.0
    %2802 = vmatpush1.msra.mxu0 0.0
    %2803 = vmatprep.subr.mxu0 0.0
    %2804 = vmatpush1.msra.mxu0 0.0
    %2805 = vmatprep.subr.mxu0 0.0
    %2806 = vmatpush1.msra.mxu0 0.0
    %2807 = vmatprep.subr.mxu0 0.0
    %2808 = vmatpush1.msra.mxu0 0.0
    %2809 = vmatprep.subr.mxu0 0.0
    %2810 = vmatpush1.msra.mxu0 0.0
    %2811 = vmatprep.subr.mxu0 0.0
    %2812 = vmatpush1.msra.mxu0 0.0
    %2813 = vmatprep.subr.mxu0 0.0
    %2814 = vmatpush1.msra.mxu0 0.0
    %2815 = vmatprep.subr.mxu0 0.0
    %2816 = vmatpush1.msra.mxu0 0.0
    %2817 = vmatprep.subr.mxu0 0.0
    %2818 = vmatpush1.msra.mxu0 0.0
    %2819 = vmatprep.subr.mxu0 0.0
    %2820 = vmatpush1.msra.mxu0 0.0
    %2821 = vmatprep.subr.mxu0 0.0
    %2822 = vmatpush1.msra.mxu0 0.0
    %2823 = vmatprep.subr.mxu0 0.0
    %2824 = vmatpush1.msra.mxu0 0.0
    %2825 = vmatprep.subr.mxu0 0.0
    %2826 = vmatpush1.msra.mxu0 0.0
    %2827 = vmatprep.subr.mxu0 0.0
    %2828 = vmatpush1.msra.mxu0 0.0
    %2829 = vmatprep.subr.mxu0 0.0
    %2830 = vmatpush1.msra.mxu0 0.0
    %2831 = vmatprep.subr.mxu0 0.0
    %2832 = vmatpush1.msra.mxu0 0.0
    %2833 = vmatprep.subr.mxu0 0.0
    %2834 = vmatpush1.msra.mxu0 0.0
    %2835 = vmatprep.subr.mxu0 0.0
    %2836 = vmatpush1.msra.mxu0 0.0
    %2837 = vmatprep.subr.mxu0 0.0
    %2838 = vmatpush1.msra.mxu0 0.0
    %2839 = vmatprep.mubr.f32.mxu0 0.0
    %2840 = vmatmul.mubr.f32.gmra.mrb[0].mxu0 %v2487
    %v2841 = vpop.f32.mrb[0].mxu0
    %v2842 = vadd.f32 %v58, %v2841
    %v2843 = vpop.f32.mrb[0].mxu0
    %2844 = vdwg.mxu0
    %v2846 = vrot.slane %v2702, 2
    %v2847 = vrot.slane %v2702, 3
    %v2850 = vadd.f32 %v80, %v2846
    %v2851 = vadd.f32 %v81, %v2847
    %v2852 = vxor.u32 %v2850, 2147483648
    %v2853 = vxor.u32 %v2851, 2147483648
    %v2854 = vmul.f32 %v2852, 1.442695
    %v2855 = vpow.pop %v2854
    %v2856 = vmul.f32 %v2853, 1.442695
    %v2857 = vpow.pop %v2856
    %v2858 = vadd.f32 %v2855, 1.0
    %v2859 = vadd.f32 %v2857, 1.0
    %v2860 = vrcp.pop %v2858
    %v2861 = vmul.f32 1.0, %v2860
    %v2862 = vrcp.pop %v2859
    %v2863 = vmul.f32 1.0, %v2862
    %v2865 = vrot.slane %v2772, 2
    %v2866 = vrot.slane %v2772, 3
    %v2869 = vadd.f32 %v83, %v2865
    %v2870 = vadd.f32 %v84, %v2866
    %v2871 = vxor.u32 %v2869, 2147483648
    %v2872 = vxor.u32 %v2870, 2147483648
    %v2873 = vmul.f32 %v2871, 1.442695
    %v2874 = vpow.pop %v2873
    %v2875 = vmul.f32 %v2872, 1.442695
    %v2876 = vpow.pop %v2875
    %v2877 = vadd.f32 %v2874, 1.0
    %v2878 = vadd.f32 %v2876, 1.0
    %v2879 = vrcp.pop %v2877
    %v2880 = vmul.f32 1.0, %v2879
    %v2881 = vrcp.pop %v2878
    %v2882 = vmul.f32 1.0, %v2881
    %v2884 = vrot.slane %v2842, 2
    %v2885 = vrot.slane %v2842, 3
    %v2888 = vmul.f32 %v2861, %v2884
    %v2889 = vmul.f32 %v2863, %v2885
    %v2890 = vadd.f32 %v86, %v2888
    %v2891 = vadd.f32 %v87, %v2889
    %v2892 = vtanh.pop %v2890
    %v2893 = vtanh.pop %v2891
    %v2894 = vsub.f32 1.0, %v2880
    %v2895 = vsub.f32 1.0, %v2882
    %v2896 = vmul.f32 %v2894, %v2892
    %v2897 = vmul.f32 %v2895, %v2893
    %v2898 = vrot.slane %v2480, 7
    %v2899 = vrot.slane %v2481, 7
    %v2902 = vmul.f32 %v2880, %v2898
    %v2903 = vmul.f32 %v2882, %v2899
    %v2904 = vadd.f32 %v2896, %v2902
    %v2905 = vadd.f32 %v2897, %v2903
    %v2908 = vrot.slane %v2904, 6
    %v2909 = vrot.slane %v2905, 5
    %v2910 = vsel %vm363, %v2909, %v2908
    %v2911 = vsel %vm89, %v2910, 0
    %2913 = vmatprep.subr.mxu0 0.0
    %2914 = vmatpush1.msra.mxu0 %v60
    %2915 = vmatprep.subr.mxu0 0.0
    %2916 = vmatpush1.msra.mxu0 %v61
    %2917 = vmatprep.subr.mxu0 0.0
    %2918 = vmatpush1.msra.mxu0 %v62
    %2919 = vmatprep.subr.mxu0 0.0
    %2920 = vmatpush1.msra.mxu0 %v63
    %2921 = vmatprep.subr.mxu0 0.0
    %2922 = vmatpush1.msra.mxu0 0.0
    %2923 = vmatprep.subr.mxu0 0.0
    %2924 = vmatpush1.msra.mxu0 0.0
    %2925 = vmatprep.subr.mxu0 0.0
    %2926 = vmatpush1.msra.mxu0 0.0
    %2927 = vmatprep.subr.mxu0 0.0
    %2928 = vmatpush1.msra.mxu0 0.0
    %2929 = vmatprep.subr.mxu0 0.0
    %2930 = vmatpush1.msra.mxu0 0.0
    %2931 = vmatprep.subr.mxu0 0.0
    %2932 = vmatpush1.msra.mxu0 0.0
    %2933 = vmatprep.subr.mxu0 0.0
    %2934 = vmatpush1.msra.mxu0 0.0
    %2935 = vmatprep.subr.mxu0 0.0
    %2936 = vmatpush1.msra.mxu0 0.0
    %2937 = vmatprep.subr.mxu0 0.0
    %2938 = vmatpush1.msra.mxu0 0.0
    %2939 = vmatprep.subr.mxu0 0.0
    %2940 = vmatpush1.msra.mxu0 0.0
    %2941 = vmatprep.subr.mxu0 0.0
    %2942 = vmatpush1.msra.mxu0 0.0
    %2943 = vmatprep.subr.mxu0 0.0
    %2944 = vmatpush1.msra.mxu0 0.0
    %2945 = vmatprep.subr.mxu0 0.0
    %2946 = vmatpush1.msra.mxu0 0.0
    %2947 = vmatprep.subr.mxu0 0.0
    %2948 = vmatpush1.msra.mxu0 0.0
    %2949 = vmatprep.subr.mxu0 0.0
    %2950 = vmatpush1.msra.mxu0 0.0
    %2951 = vmatprep.subr.mxu0 0.0
    %2952 = vmatpush1.msra.mxu0 0.0
    %2953 = vmatprep.subr.mxu0 0.0
    %2954 = vmatpush1.msra.mxu0 0.0
    %2955 = vmatprep.subr.mxu0 0.0
    %2956 = vmatpush1.msra.mxu0 0.0
    %2957 = vmatprep.subr.mxu0 0.0
    %2958 = vmatpush1.msra.mxu0 0.0
    %2959 = vmatprep.subr.mxu0 0.0
    %2960 = vmatpush1.msra.mxu0 0.0
    %2961 = vmatprep.subr.mxu0 0.0
    %2962 = vmatpush1.msra.mxu0 0.0
    %2963 = vmatprep.subr.mxu0 0.0
    %2964 = vmatpush1.msra.mxu0 0.0
    %2965 = vmatprep.subr.mxu0 0.0
    %2966 = vmatpush1.msra.mxu0 0.0
    %2967 = vmatprep.subr.mxu0 0.0
    %2968 = vmatpush1.msra.mxu0 0.0
    %2969 = vmatprep.subr.mxu0 0.0
    %2970 = vmatpush1.msra.mxu0 0.0
    %2971 = vmatprep.subr.mxu0 0.0
    %2972 = vmatpush1.msra.mxu0 0.0
    %2973 = vmatprep.subr.mxu0 0.0
    %2974 = vmatpush1.msra.mxu0 0.0
    %2975 = vmatprep.subr.mxu0 0.0
    %2976 = vmatpush1.msra.mxu0 0.0
    %2977 = vmatprep.mubr.f32.mxu0 0.0
    %2978 = vmatmul.mubr.f32.gmra.mrb[0].mxu0 %v2911
    %v2979 = vpop.f32.mrb[0].mxu0
    %v2980 = vadd.f32 %v77, %v2979
    %v2981 = vpop.f32.mrb[0].mxu0
    %2982 = vdwg.mxu0
    %v2983 = vmax.f32 %v2980, 0.0
    %v2985 = vsel %vm444, %v2983, 0
    %2987 = vmatprep.subr.mxu0 0.0
    %2988 = vmatpush1.msra.mxu0 %v64
    %2989 = vmatprep.subr.mxu0 0.0
    %2990 = vmatpush1.msra.mxu0 %v65
    %2991 = vmatprep.subr.mxu0 0.0
    %2992 = vmatpush1.msra.mxu0 %v66
    %2993 = vmatprep.subr.mxu0 0.0
    %2994 = vmatpush1.msra.mxu0 %v67
    %2995 = vmatprep.subr.mxu0 0.0
    %2996 = vmatpush1.msra.mxu0 %v68
    %2997 = vmatprep.subr.mxu0 0.0
    %2998 = vmatpush1.msra.mxu0 %v69
    %2999 = vmatprep.subr.mxu0 0.0
    %3000 = vmatpush1.msra.mxu0 %v70
    %3001 = vmatprep.subr.mxu0 0.0
    %3002 = vmatpush1.msra.mxu0 %v71
    %3003 = vmatprep.subr.mxu0 0.0
    %3004 = vmatpush1.msra.mxu0 0.0
    %3005 = vmatprep.subr.mxu0 0.0
    %3006 = vmatpush1.msra.mxu0 0.0
    %3007 = vmatprep.subr.mxu0 0.0
    %3008 = vmatpush1.msra.mxu0 0.0
    %3009 = vmatprep.subr.mxu0 0.0
    %3010 = vmatpush1.msra.mxu0 0.0
    %3011 = vmatprep.subr.mxu0 0.0
    %3012 = vmatpush1.msra.mxu0 0.0
    %3013 = vmatprep.subr.mxu0 0.0
    %3014 = vmatpush1.msra.mxu0 0.0
    %3015 = vmatprep.subr.mxu0 0.0
    %3016 = vmatpush1.msra.mxu0 0.0
    %3017 = vmatprep.subr.mxu0 0.0
    %3018 = vmatpush1.msra.mxu0 0.0
    %3019 = vmatprep.subr.mxu0 0.0
    %3020 = vmatpush1.msra.mxu0 0.0
    %3021 = vmatprep.subr.mxu0 0.0
    %3022 = vmatpush1.msra.mxu0 0.0
    %3023 = vmatprep.subr.mxu0 0.0
    %3024 = vmatpush1.msra.mxu0 0.0
    %3025 = vmatprep.subr.mxu0 0.0
    %3026 = vmatpush1.msra.mxu0 0.0
    %3027 = vmatprep.subr.mxu0 0.0
    %3028 = vmatpush1.msra.mxu0 0.0
    %3029 = vmatprep.subr.mxu0 0.0
    %3030 = vmatpush1.msra.mxu0 0.0
    %3031 = vmatprep.subr.mxu0 0.0
    %3032 = vmatpush1.msra.mxu0 0.0
    %3033 = vmatprep.subr.mxu0 0.0
    %3034 = vmatpush1.msra.mxu0 0.0
    %3035 = vmatprep.subr.mxu0 0.0
    %3036 = vmatpush1.msra.mxu0 0.0
    %3037 = vmatprep.subr.mxu0 0.0
    %3038 = vmatpush1.msra.mxu0 0.0
    %3039 = vmatprep.subr.mxu0 0.0
    %3040 = vmatpush1.msra.mxu0 0.0
    %3041 = vmatprep.subr.mxu0 0.0
    %3042 = vmatpush1.msra.mxu0 0.0
    %3043 = vmatprep.subr.mxu0 0.0
    %3044 = vmatpush1.msra.mxu0 0.0
    %3045 = vmatprep.subr.mxu0 0.0
    %3046 = vmatpush1.msra.mxu0 0.0
    %3047 = vmatprep.subr.mxu0 0.0
    %3048 = vmatpush1.msra.mxu0 0.0
    %3049 = vmatprep.subr.mxu0 0.0
    %3050 = vmatpush1.msra.mxu0 0.0
    %3051 = vmatprep.mubr.f32.mxu0 0.0
    %3052 = vmatmul.mubr.f32.gmra.mrb[0].mxu0 %v2985
    %v3053 = vpop.f32.mrb[0].mxu0
    %v3054 = vadd.f32 %v442, %v3053
    %v3055 = vpop.f32.mrb[0].mxu0
    %3056 = vdwg.mxu0
    %s3057 = scalar_lea.vmem %s8, 12
    %3058 = vst.msk [vmem:[%s3057] sm:$0x3] %vm518, %v3054
    %3059 = vmatprep.subr.mxu0 0.0
    %3060 = vmatpush1.msra.mxu0 %v39
    %3061 = vmatprep.subr.mxu0 0.0
    %3062 = vmatpush1.msra.mxu0 %v40
    %3063 = vmatprep.subr.mxu0 0.0
    %3064 = vmatpush1.msra.mxu0 %v41
    %3065 = vmatprep.subr.mxu0 0.0
    %3066 = vmatpush1.msra.mxu0 %v42
    %3067 = vmatprep.subr.mxu0 0.0
    %3068 = vmatpush1.msra.mxu0 0.0
    %3069 = vmatprep.subr.mxu0 0.0
    %3070 = vmatpush1.msra.mxu0 0.0
    %3071 = vmatprep.subr.mxu0 0.0
    %3072 = vmatpush1.msra.mxu0 0.0
    %3073 = vmatprep.subr.mxu0 0.0
    %3074 = vmatpush1.msra.mxu0 0.0
    %3075 = vmatprep.subr.mxu0 0.0
    %3076 = vmatpush1.msra.mxu0 0.0
    %3077 = vmatprep.subr.mxu0 0.0
    %3078 = vmatpush1.msra.mxu0 0.0
    %3079 = vmatprep.subr.mxu0 0.0
    %3080 = vmatpush1.msra.mxu0 0.0
    %3081 = vmatprep.subr.mxu0 0.0
    %3082 = vmatpush1.msra.mxu0 0.0
    %3083 = vmatprep.subr.mxu0 0.0
    %3084 = vmatpush1.msra.mxu0 0.0
    %3085 = vmatprep.subr.mxu0 0.0
    %3086 = vmatpush1.msra.mxu0 0.0
    %3087 = vmatprep.subr.mxu0 0.0
    %3088 = vmatpush1.msra.mxu0 0.0
    %3089 = vmatprep.subr.mxu0 0.0
    %3090 = vmatpush1.msra.mxu0 0.0
    %3091 = vmatprep.subr.mxu0 0.0
    %3092 = vmatpush1.msra.mxu0 0.0
    %3093 = vmatprep.subr.mxu0 0.0
    %3094 = vmatpush1.msra.mxu0 0.0
    %3095 = vmatprep.subr.mxu0 0.0
    %3096 = vmatpush1.msra.mxu0 0.0
    %3097 = vmatprep.subr.mxu0 0.0
    %3098 = vmatpush1.msra.mxu0 0.0
    %3099 = vmatprep.subr.mxu0 0.0
    %3100 = vmatpush1.msra.mxu0 0.0
    %3101 = vmatprep.subr.mxu0 0.0
    %3102 = vmatpush1.msra.mxu0 0.0
    %3103 = vmatprep.subr.mxu0 0.0
    %3104 = vmatpush1.msra.mxu0 0.0
    %3105 = vmatprep.subr.mxu0 0.0
    %3106 = vmatpush1.msra.mxu0 0.0
    %3107 = vmatprep.subr.mxu0 0.0
    %3108 = vmatpush1.msra.mxu0 0.0
    %3109 = vmatprep.subr.mxu0 0.0
    %3110 = vmatpush1.msra.mxu0 0.0
    %3111 = vmatprep.subr.mxu0 0.0
    %3112 = vmatpush1.msra.mxu0 0.0
    %3113 = vmatprep.subr.mxu0 0.0
    %3114 = vmatpush1.msra.mxu0 0.0
    %3115 = vmatprep.subr.mxu0 0.0
    %3116 = vmatpush1.msra.mxu0 0.0
    %3117 = vmatprep.subr.mxu0 0.0
    %3118 = vmatpush1.msra.mxu0 0.0
    %3119 = vmatprep.subr.mxu0 0.0
    %3120 = vmatpush1.msra.mxu0 0.0
    %3121 = vmatprep.subr.mxu0 0.0
    %3122 = vmatpush1.msra.mxu0 0.0
    %3123 = vmatprep.mubr.f32.mxu0 0.0
    %3124 = vmatmul.mubr.f32.gmra.mrb[0].mxu0 %v2911
    %v3125 = vpop.f32.mrb[0].mxu0
    %v3126 = vadd.f32 0.0, %v3125
    %v3127 = vpop.f32.mrb[0].mxu0
    %3128 = vdwg.mxu0
    %3129 = vmatprep.subr.mxu0 0.0
    %3130 = vmatpush1.msra.mxu0 %v44
    %3131 = vmatprep.subr.mxu0 0.0
    %3132 = vmatpush1.msra.mxu0 %v45
    %3133 = vmatprep.subr.mxu0 0.0
    %3134 = vmatpush1.msra.mxu0 %v46
    %3135 = vmatprep.subr.mxu0 0.0
    %3136 = vmatpush1.msra.mxu0 %v47
    %3137 = vmatprep.subr.mxu0 0.0
    %3138 = vmatpush1.msra.mxu0 0.0
    %3139 = vmatprep.subr.mxu0 0.0
    %3140 = vmatpush1.msra.mxu0 0.0
    %3141 = vmatprep.subr.mxu0 0.0
    %3142 = vmatpush1.msra.mxu0 0.0
    %3143 = vmatprep.subr.mxu0 0.0
    %3144 = vmatpush1.msra.mxu0 0.0
    %3145 = vmatprep.subr.mxu0 0.0
    %3146 = vmatpush1.msra.mxu0 0.0
    %3147 = vmatprep.subr.mxu0 0.0
    %3148 = vmatpush1.msra.mxu0 0.0
    %3149 = vmatprep.subr.mxu0 0.0
    %3150 = vmatpush1.msra.mxu0 0.0
    %3151 = vmatprep.subr.mxu0 0.0
    %3152 = vmatpush1.msra.mxu0 0.0
    %3153 = vmatprep.subr.mxu0 0.0
    %3154 = vmatpush1.msra.mxu0 0.0
    %3155 = vmatprep.subr.mxu0 0.0
    %3156 = vmatpush1.msra.mxu0 0.0
    %3157 = vmatprep.subr.mxu0 0.0
    %3158 = vmatpush1.msra.mxu0 0.0
    %3159 = vmatprep.subr.mxu0 0.0
    %3160 = vmatpush1.msra.mxu0 0.0
    %3161 = vmatprep.subr.mxu0 0.0
    %3162 = vmatpush1.msra.mxu0 0.0
    %3163 = vmatprep.subr.mxu0 0.0
    %3164 = vmatpush1.msra.mxu0 0.0
    %3165 = vmatprep.subr.mxu0 0.0
    %3166 = vmatpush1.msra.mxu0 0.0
    %3167 = vmatprep.subr.mxu0 0.0
    %3168 = vmatpush1.msra.mxu0 0.0
    %3169 = vmatprep.subr.mxu0 0.0
    %3170 = vmatpush1.msra.mxu0 0.0
    %3171 = vmatprep.subr.mxu0 0.0
    %3172 = vmatpush1.msra.mxu0 0.0
    %3173 = vmatprep.subr.mxu0 0.0
    %3174 = vmatpush1.msra.mxu0 0.0
    %3175 = vmatprep.subr.mxu0 0.0
    %3176 = vmatpush1.msra.mxu0 0.0
    %3177 = vmatprep.subr.mxu0 0.0
    %3178 = vmatpush1.msra.mxu0 0.0
    %3179 = vmatprep.subr.mxu0 0.0
    %3180 = vmatpush1.msra.mxu0 0.0
    %3181 = vmatprep.subr.mxu0 0.0
    %3182 = vmatpush1.msra.mxu0 0.0
    %3183 = vmatprep.subr.mxu0 0.0
    %3184 = vmatpush1.msra.mxu0 0.0
    %3185 = vmatprep.subr.mxu0 0.0
    %3186 = vmatpush1.msra.mxu0 0.0
    %3187 = vmatprep.subr.mxu0 0.0
    %3188 = vmatpush1.msra.mxu0 0.0
    %3189 = vmatprep.subr.mxu0 0.0
    %3190 = vmatpush1.msra.mxu0 0.0
    %3191 = vmatprep.subr.mxu0 0.0
    %3192 = vmatpush1.msra.mxu0 0.0
    %3193 = vmatprep.mubr.f32.mxu0 0.0
    %3194 = vmatmul.mubr.f32.gmra.mrb[0].mxu0 %v2911
    %v3195 = vpop.f32.mrb[0].mxu0
    %v3196 = vadd.f32 0.0, %v3195
    %v3197 = vpop.f32.mrb[0].mxu0
    %3198 = vdwg.mxu0
    %3199 = vmatprep.subr.mxu0 0.0
    %3200 = vmatpush1.msra.mxu0 %v49
    %3201 = vmatprep.subr.mxu0 0.0
    %3202 = vmatpush1.msra.mxu0 %v50
    %3203 = vmatprep.subr.mxu0 0.0
    %3204 = vmatpush1.msra.mxu0 %v51
    %3205 = vmatprep.subr.mxu0 0.0
    %3206 = vmatpush1.msra.mxu0 %v52
    %3207 = vmatprep.subr.mxu0 0.0
    %3208 = vmatpush1.msra.mxu0 0.0
    %3209 = vmatprep.subr.mxu0 0.0
    %3210 = vmatpush1.msra.mxu0 0.0
    %3211 = vmatprep.subr.mxu0 0.0
    %3212 = vmatpush1.msra.mxu0 0.0
    %3213 = vmatprep.subr.mxu0 0.0
    %3214 = vmatpush1.msra.mxu0 0.0
    %3215 = vmatprep.subr.mxu0 0.0
    %3216 = vmatpush1.msra.mxu0 0.0
    %3217 = vmatprep.subr.mxu0 0.0
    %3218 = vmatpush1.msra.mxu0 0.0
    %3219 = vmatprep.subr.mxu0 0.0
    %3220 = vmatpush1.msra.mxu0 0.0
    %3221 = vmatprep.subr.mxu0 0.0
    %3222 = vmatpush1.msra.mxu0 0.0
    %3223 = vmatprep.subr.mxu0 0.0
    %3224 = vmatpush1.msra.mxu0 0.0
    %3225 = vmatprep.subr.mxu0 0.0
    %3226 = vmatpush1.msra.mxu0 0.0
    %3227 = vmatprep.subr.mxu0 0.0
    %3228 = vmatpush1.msra.mxu0 0.0
    %3229 = vmatprep.subr.mxu0 0.0
    %3230 = vmatpush1.msra.mxu0 0.0
    %3231 = vmatprep.subr.mxu0 0.0
    %3232 = vmatpush1.msra.mxu0 0.0
    %3233 = vmatprep.subr.mxu0 0.0
    %3234 = vmatpush1.msra.mxu0 0.0
    %3235 = vmatprep.subr.mxu0 0.0
    %3236 = vmatpush1.msra.mxu0 0.0
    %3237 = vmatprep.subr.mxu0 0.0
    %3238 = vmatpush1.msra.mxu0 0.0
    %3239 = vmatprep.subr.mxu0 0.0
    %3240 = vmatpush1.msra.mxu0 0.0
    %3241 = vmatprep.subr.mxu0 0.0
    %3242 = vmatpush1.msra.mxu0 0.0
    %3243 = vmatprep.subr.mxu0 0.0
    %3244 = vmatpush1.msra.mxu0 0.0
    %3245 = vmatprep.subr.mxu0 0.0
    %3246 = vmatpush1.msra.mxu0 0.0
    %3247 = vmatprep.subr.mxu0 0.0
    %3248 = vmatpush1.msra.mxu0 0.0
    %3249 = vmatprep.subr.mxu0 0.0
    %3250 = vmatpush1.msra.mxu0 0.0
    %3251 = vmatprep.subr.mxu0 0.0
    %3252 = vmatpush1.msra.mxu0 0.0
    %3253 = vmatprep.subr.mxu0 0.0
    %3254 = vmatpush1.msra.mxu0 0.0
    %3255 = vmatprep.subr.mxu0 0.0
    %3256 = vmatpush1.msra.mxu0 0.0
    %3257 = vmatprep.subr.mxu0 0.0
    %3258 = vmatpush1.msra.mxu0 0.0
    %3259 = vmatprep.subr.mxu0 0.0
    %3260 = vmatpush1.msra.mxu0 0.0
    %3261 = vmatprep.subr.mxu0 0.0
    %3262 = vmatpush1.msra.mxu0 0.0
    %3263 = vmatprep.mubr.f32.mxu0 0.0
    %3264 = vmatmul.mubr.f32.gmra.mrb[0].mxu0 %v2911
    %v3265 = vpop.f32.mrb[0].mxu0
    %v3266 = vadd.f32 %v58, %v3265
    %v3267 = vpop.f32.mrb[0].mxu0
    %3268 = vdwg.mxu0
    %v3270 = vrot.slane %v3126, 1
    %v3271 = vrot.slane %v3126, 2
    %v3274 = vadd.f32 %v80, %v3270
    %v3275 = vadd.f32 %v81, %v3271
    %v3276 = vxor.u32 %v3274, 2147483648
    %v3277 = vxor.u32 %v3275, 2147483648
    %v3278 = vmul.f32 %v3276, 1.442695
    %v3279 = vpow.pop %v3278
    %v3280 = vmul.f32 %v3277, 1.442695
    %v3281 = vpow.pop %v3280
    %v3282 = vadd.f32 %v3279, 1.0
    %v3283 = vadd.f32 %v3281, 1.0
    %v3284 = vrcp.pop %v3282
    %v3285 = vmul.f32 1.0, %v3284
    %v3286 = vrcp.pop %v3283
    %v3287 = vmul.f32 1.0, %v3286
    %v3289 = vrot.slane %v3196, 1
    %v3290 = vrot.slane %v3196, 2
    %v3293 = vadd.f32 %v83, %v3289
    %v3294 = vadd.f32 %v84, %v3290
    %v3295 = vxor.u32 %v3293, 2147483648
    %v3296 = vxor.u32 %v3294, 2147483648
    %v3297 = vmul.f32 %v3295, 1.442695
    %v3298 = vpow.pop %v3297
    %v3299 = vmul.f32 %v3296, 1.442695
    %v3300 = vpow.pop %v3299
    %v3301 = vadd.f32 %v3298, 1.0
    %v3302 = vadd.f32 %v3300, 1.0
    %v3303 = vrcp.pop %v3301
    %v3304 = vmul.f32 1.0, %v3303
    %v3305 = vrcp.pop %v3302
    %v3306 = vmul.f32 1.0, %v3305
    %v3308 = vrot.slane %v3266, 1
    %v3309 = vrot.slane %v3266, 2
    %v3312 = vmul.f32 %v3285, %v3308
    %v3313 = vmul.f32 %v3287, %v3309
    %v3314 = vadd.f32 %v86, %v3312
    %v3315 = vadd.f32 %v87, %v3313
    %v3316 = vtanh.pop %v3314
    %v3317 = vtanh.pop %v3315
    %v3318 = vsub.f32 1.0, %v3304
    %v3319 = vsub.f32 1.0, %v3306
    %v3320 = vmul.f32 %v3318, %v3316
    %v3321 = vmul.f32 %v3319, %v3317
    %v3322 = vrot.slane %v2904, 7
    %v3323 = vrot.slane %v2905, 7
    %v3326 = vmul.f32 %v3304, %v3322
    %v3327 = vmul.f32 %v3306, %v3323
    %v3328 = vadd.f32 %v3320, %v3326
    %v3329 = vadd.f32 %v3321, %v3327
    %v3332 = vrot.slane %v3328, 7
    %v3333 = vrot.slane %v3329, 6
    %v3334 = vsel %vm363, %v3333, %v3332
    %v3335 = vsel %vm89, %v3334, 0
    %3337 = vmatprep.subr.mxu0 0.0
    %3338 = vmatpush1.msra.mxu0 %v60
    %3339 = vmatprep.subr.mxu0 0.0
    %3340 = vmatpush1.msra.mxu0 %v61
    %3341 = vmatprep.subr.mxu0 0.0
    %3342 = vmatpush1.msra.mxu0 %v62
    %3343 = vmatprep.subr.mxu0 0.0
    %3344 = vmatpush1.msra.mxu0 %v63
    %3345 = vmatprep.subr.mxu0 0.0
    %3346 = vmatpush1.msra.mxu0 0.0
    %3347 = vmatprep.subr.mxu0 0.0
    %3348 = vmatpush1.msra.mxu0 0.0
    %3349 = vmatprep.subr.mxu0 0.0
    %3350 = vmatpush1.msra.mxu0 0.0
    %3351 = vmatprep.subr.mxu0 0.0
    %3352 = vmatpush1.msra.mxu0 0.0
    %3353 = vmatprep.subr.mxu0 0.0
    %3354 = vmatpush1.msra.mxu0 0.0
    %3355 = vmatprep.subr.mxu0 0.0
    %3356 = vmatpush1.msra.mxu0 0.0
    %3357 = vmatprep.subr.mxu0 0.0
    %3358 = vmatpush1.msra.mxu0 0.0
    %3359 = vmatprep.subr.mxu0 0.0
    %3360 = vmatpush1.msra.mxu0 0.0
    %3361 = vmatprep.subr.mxu0 0.0
    %3362 = vmatpush1.msra.mxu0 0.0
    %3363 = vmatprep.subr.mxu0 0.0
    %3364 = vmatpush1.msra.mxu0 0.0
    %3365 = vmatprep.subr.mxu0 0.0
    %3366 = vmatpush1.msra.mxu0 0.0
    %3367 = vmatprep.subr.mxu0 0.0
    %3368 = vmatpush1.msra.mxu0 0.0
    %3369 = vmatprep.subr.mxu0 0.0
    %3370 = vmatpush1.msra.mxu0 0.0
    %3371 = vmatprep.subr.mxu0 0.0
    %3372 = vmatpush1.msra.mxu0 0.0
    %3373 = vmatprep.subr.mxu0 0.0
    %3374 = vmatpush1.msra.mxu0 0.0
    %3375 = vmatprep.subr.mxu0 0.0
    %3376 = vmatpush1.msra.mxu0 0.0
    %3377 = vmatprep.subr.mxu0 0.0
    %3378 = vmatpush1.msra.mxu0 0.0
    %3379 = vmatprep.subr.mxu0 0.0
    %3380 = vmatpush1.msra.mxu0 0.0
    %3381 = vmatprep.subr.mxu0 0.0
    %3382 = vmatpush1.msra.mxu0 0.0
    %3383 = vmatprep.subr.mxu0 0.0
    %3384 = vmatpush1.msra.mxu0 0.0
    %3385 = vmatprep.subr.mxu0 0.0
    %3386 = vmatpush1.msra.mxu0 0.0
    %3387 = vmatprep.subr.mxu0 0.0
    %3388 = vmatpush1.msra.mxu0 0.0
    %3389 = vmatprep.subr.mxu0 0.0
    %3390 = vmatpush1.msra.mxu0 0.0
    %3391 = vmatprep.subr.mxu0 0.0
    %3392 = vmatpush1.msra.mxu0 0.0
    %3393 = vmatprep.subr.mxu0 0.0
    %3394 = vmatpush1.msra.mxu0 0.0
    %3395 = vmatprep.subr.mxu0 0.0
    %3396 = vmatpush1.msra.mxu0 0.0
    %3397 = vmatprep.subr.mxu0 0.0
    %3398 = vmatpush1.msra.mxu0 0.0
    %3399 = vmatprep.subr.mxu0 0.0
    %3400 = vmatpush1.msra.mxu0 0.0
    %3401 = vmatprep.mubr.f32.mxu0 0.0
    %3402 = vmatmul.mubr.f32.gmra.mrb[0].mxu0 %v3335
    %v3403 = vpop.f32.mrb[0].mxu0
    %v3404 = vadd.f32 %v77, %v3403
    %v3405 = vpop.f32.mrb[0].mxu0
    %3406 = vdwg.mxu0
    %v3407 = vmax.f32 %v3404, 0.0
    %v3409 = vsel %vm444, %v3407, 0
    %3411 = vmatprep.subr.mxu0 0.0
    %3412 = vmatpush1.msra.mxu0 %v64
    %3413 = vmatprep.subr.mxu0 0.0
    %3414 = vmatpush1.msra.mxu0 %v65
    %3415 = vmatprep.subr.mxu0 0.0
    %3416 = vmatpush1.msra.mxu0 %v66
    %3417 = vmatprep.subr.mxu0 0.0
    %3418 = vmatpush1.msra.mxu0 %v67
    %3419 = vmatprep.subr.mxu0 0.0
    %3420 = vmatpush1.msra.mxu0 %v68
    %3421 = vmatprep.subr.mxu0 0.0
    %3422 = vmatpush1.msra.mxu0 %v69
    %3423 = vmatprep.subr.mxu0 0.0
    %3424 = vmatpush1.msra.mxu0 %v70
    %3425 = vmatprep.subr.mxu0 0.0
    %3426 = vmatpush1.msra.mxu0 %v71
    %3427 = vmatprep.subr.mxu0 0.0
    %3428 = vmatpush1.msra.mxu0 0.0
    %3429 = vmatprep.subr.mxu0 0.0
    %3430 = vmatpush1.msra.mxu0 0.0
    %3431 = vmatprep.subr.mxu0 0.0
    %3432 = vmatpush1.msra.mxu0 0.0
    %3433 = vmatprep.subr.mxu0 0.0
    %3434 = vmatpush1.msra.mxu0 0.0
    %3435 = vmatprep.subr.mxu0 0.0
    %3436 = vmatpush1.msra.mxu0 0.0
    %3437 = vmatprep.subr.mxu0 0.0
    %3438 = vmatpush1.msra.mxu0 0.0
    %3439 = vmatprep.subr.mxu0 0.0
    %3440 = vmatpush1.msra.mxu0 0.0
    %3441 = vmatprep.subr.mxu0 0.0
    %3442 = vmatpush1.msra.mxu0 0.0
    %3443 = vmatprep.subr.mxu0 0.0
    %3444 = vmatpush1.msra.mxu0 0.0
    %3445 = vmatprep.subr.mxu0 0.0
    %3446 = vmatpush1.msra.mxu0 0.0
    %3447 = vmatprep.subr.mxu0 0.0
    %3448 = vmatpush1.msra.mxu0 0.0
    %3449 = vmatprep.subr.mxu0 0.0
    %3450 = vmatpush1.msra.mxu0 0.0
    %3451 = vmatprep.subr.mxu0 0.0
    %3452 = vmatpush1.msra.mxu0 0.0
    %3453 = vmatprep.subr.mxu0 0.0
    %3454 = vmatpush1.msra.mxu0 0.0
    %3455 = vmatprep.subr.mxu0 0.0
    %3456 = vmatpush1.msra.mxu0 0.0
    %3457 = vmatprep.subr.mxu0 0.0
    %3458 = vmatpush1.msra.mxu0 0.0
    %3459 = vmatprep.subr.mxu0 0.0
    %3460 = vmatpush1.msra.mxu0 0.0
    %3461 = vmatprep.subr.mxu0 0.0
    %3462 = vmatpush1.msra.mxu0 0.0
    %3463 = vmatprep.subr.mxu0 0.0
    %3464 = vmatpush1.msra.mxu0 0.0
    %3465 = vmatprep.subr.mxu0 0.0
    %3466 = vmatpush1.msra.mxu0 0.0
    %3467 = vmatprep.subr.mxu0 0.0
    %3468 = vmatpush1.msra.mxu0 0.0
    %3469 = vmatprep.subr.mxu0 0.0
    %3470 = vmatpush1.msra.mxu0 0.0
    %3471 = vmatprep.subr.mxu0 0.0
    %3472 = vmatpush1.msra.mxu0 0.0
    %3473 = vmatprep.subr.mxu0 0.0
    %3474 = vmatpush1.msra.mxu0 0.0
    %3475 = vmatprep.mubr.f32.mxu0 0.0
    %3476 = vmatmul.mubr.f32.gmra.mrb[0].mxu0 %v3409
    %v3477 = vpop.f32.mrb[0].mxu0
    %v3478 = vadd.f32 %v442, %v3477
    %v3479 = vpop.f32.mrb[0].mxu0
    %3480 = vdwg.mxu0
    %s3481 = scalar_lea.vmem %s8, 14
    %3482 = vst.msk [vmem:[%s3481] sm:$0x3] %vm518, %v3478
    // Predicated region
    $region38: #{gru2fc_forward.3} parent=1 // pred_check
      %p3483 = pneg %p32
    $region39: #{gru2fc_forward.3} parent=1 // pred_check_branch
      %3485 = sbr.rel (%p3483) target = $region41
    $region40: #{gru2fc_forward.3} parent=1 // pred_region
      %v3486 = vrot.slane %v3329, 7
      %vm3489 = vcmask 261127
      %3490 = vst.msk [vmem:[#allocation3 - $0x7] sm:$0x80] %vm3489, %v3328
      %vm3491 = vcmask 253952
      %3492 = vst.msk [vmem:[#allocation3 + $0x1] sm:$0x1] %vm3491, %v3486
    $region41: #{gru2fc_forward.3} parent=1 // pred_fallthru
      _
    %v3493 = vrot.slane %v3329, 7
    %vm3496 = vcmask 261127
    %3497 = vst.msk [vmem:[#allocation2 - $0x7] sm:$0x80] %vm3496, %v3328
    %vm3498 = vcmask 253952
    %3499 = vst.msk [vmem:[#allocation2 + $0x1] sm:$0x1] %vm3498, %v3493
    // Predicated region
    $region42: #{gru2fc_forward.3} parent=1 // pred_check
      _
    $region43: #{gru2fc_forward.3} parent=1 // pred_check_branch
      %3501 = sbr.rel (0) target = $region45
    $region44: #{gru2fc_forward.3} parent=1 // pred_region
      _
    $region45: #{gru2fc_forward.3} parent=1 // pred_fallthru
      _
    // Predicated region
    $region46: #{gru2fc_forward.3} parent=1 // pred_check
      _
    $region47: #{gru2fc_forward.3} parent=1 // pred_check_branch
      %3503 = sbr.rel (0) target = $region49
    $region48: #{gru2fc_forward.3} parent=1 // pred_region
      %s3505 = ssub.s32 32, 32
      %3506 = vsyncadd [#allocation4], %s3505
      %s3508 = sshll.u32 [#allocation3], 4
      %s3509 = int_to_ptr.vmem [resolvable:$true] %s3508
      %3511 = dma.vmem_to_hbm [thread:$0]  %s3509, 32, %s9, [#allocation4]
    $region49: #{gru2fc_forward.3} parent=1 // pred_fallthru
      _
    // Predicated region
    $region50: #{gru2fc_forward.3} parent=1 // pred_check
      _
    $region51: #{gru2fc_forward.3} parent=1 // pred_check_branch
      %3513 = sbr.rel (0) target = $region53
    $region52: #{gru2fc_forward.3} parent=1 // pred_region
      _
    $region53: #{gru2fc_forward.3} parent=1 // pred_fallthru
      _
    // Predicated region
    $region54: #{gru2fc_forward.3} parent=1 // pred_check
      _
    $region55: #{gru2fc_forward.3} parent=1 // pred_check_branch
      %3515 = sbr.rel (0) target = $region57
    $region56: #{gru2fc_forward.3} parent=1 // pred_region
      %3516 = dma.done [#allocation4], 32
    $region57: #{gru2fc_forward.3} parent=1 // pred_fallthru
      _
    %3517 = vsyncpa [#allocation4], 1

</llo_original>
